<compile_context>
chip_gen: v6e
topology: v6e:2x2x1
jax: 0.10.0
libtpu: 0.0.40
codegen_flags: <defaults>
</compile_context>

<pallas_src>
import functools

import jax
import jax.numpy as jnp
from jax.experimental import pallas as pl
from jax.experimental.pallas import tpu as pltpu

IN_FEATURES = 32 * 32 * 3  # 3072
LANE = 128                 # TPU lane width
B_ALIGN = 16               # bf16 sublane packing for the batch tile


def _round_up(n, m):
    return ((n + m - 1) // m) * m


def _pad_to(arr, shape):
    pads = [(0, t - s) for s, t in zip(arr.shape, shape)]
    if any(hi for _, hi in pads):
        arr = jnp.pad(arr, pads)
    return arr


def _fc_kernel(x_ref,
               w0_ref, b0_ref,
               w1_ref, b1_ref,
               w2_ref, b2_ref,
               w3_ref, b3_ref,
               w4_ref, b4_ref,
               o_ref):
    """Fused 5-layer MLP: bf16 MXU matmuls, f32 accumulation, ReLU in f32."""
    # f32 -> bf16 cast happens in-kernel: x travels HBM->VMEM exactly once.
    h = x_ref[...].astype(jnp.bfloat16)
    for w_ref, b_ref in ((w0_ref, b0_ref), (w1_ref, b1_ref),
                         (w2_ref, b2_ref), (w3_ref, b3_ref)):
        y = jnp.dot(h, w_ref[...], preferred_element_type=jnp.float32)
        y = y + b_ref[...]                            # f32 bias add
        h = jnp.maximum(y, 0.0).astype(jnp.bfloat16)  # f32 ReLU, bf16 for next MXU op
    out = jnp.dot(h, w4_ref[...], preferred_element_type=jnp.float32) + b4_ref[...]
    o_ref[...] = out.astype(o_ref.dtype)              # lane-dense (block, 128) store


def prepare_params(params):
    """One-time: pad every layer width to a multiple of 128 lanes and cast
    weights to bf16.  Call once at init; do NOT redo this per forward call."""
    prepped = {}
    for i in range(5):
        w = params[f"w{i}"]
        b = params[f"b{i}"].reshape(1, -1)
        ip = _round_up(w.shape[0], LANE)
        op = _round_up(w.shape[1], LANE)
        # Zero-padded weight rows / bias lanes keep padded activation columns
        # exactly zero through ReLU, so results are unchanged.
        prepped[f"w{i}"] = _pad_to(w, (ip, op)).astype(jnp.bfloat16)
        prepped[f"b{i}"] = _pad_to(b, (1, op)).astype(jnp.float32)
    return prepped


def _resident_spec(shape, single_buffer):
    """Whole parameter resident in VMEM; constant index_map => DMA'd once."""
    idx_map = lambda i: (0,) * len(shape)
    if single_buffer:
        try:
            # Single-buffer big weights: halves their VMEM footprint (matters
            # for starting_size >= 2048 on v7x's 64 MiB VMEM).
            return pl.BlockSpec(shape, idx_map, pipeline_mode=pl.Buffered(1))
        except Exception:
            pass
    return pl.BlockSpec(shape, idx_map)


@functools.partial(jax.jit, static_argnames=("num_classes", "block_b"))
def fcnet_forward(x_nchw, prepped, num_classes=10, block_b=512):
    """x_nchw: (B, 3, 32, 32) float32.  prepped: output of prepare_params()."""
    B = x_nchw.shape[0]
    # torch.flatten(input, start_dim=1) on NCHW -> (B, C*H*W); free reshape.
    x = x_nchw.reshape(B, -1)

    ws = [prepped[f"w{i}"] for i in range(5)]
    bs = [prepped[f"b{i}"] for i in range(5)]
    in_pad0 = ws[0].shape[0]
    out_padL = ws[-1].shape[1]

    # Feature pad (3072 is already lane-aligned; stay general).
    x = _pad_to(x, (B, in_pad0))

    # Batch tile: large (default 512), 16-row aligned.  If the whole padded
    # batch fits in one step, split it into two so both v7x TCs get work.
    B_ceil = _round_up(B, B_ALIGN)
    block = _round_up(min(block_b, B_ceil), B_ALIGN)
    if B_ceil <= block and B_ceil >= 2 * B_ALIGN:
        block = _round_up(B_ceil, 2 * B_ALIGN) // 2
    B_pad = _round_up(B_ceil, block)
    if B_pad != B:
        x = jnp.pad(x, ((0, B_pad - B), (0, 0)))

    w_bytes = sum(w.size * 2 for w in ws)   # bf16
    b_bytes = sum(b.size * 4 for b in bs)   # f32
    single_buffer_weights = w_bytes > (8 << 20)

    in_specs = [pl.BlockSpec((block, in_pad0), lambda i: (i, 0))]
    operands = [x]
    for w, b in zip(ws, bs):
        in_specs += [_resident_spec(w.shape, single_buffer_weights),
                     _resident_spec(b.shape, single_buffer_weights)]
        operands += [w, b]

    # Explicit VMEM budget so the larger batch tile also clears v5e's 16 MiB
    # default scoped limit: x tile (f32, double-buffered) + out tile +
    # weights/biases (counted double-buffered, worst case) + in-kernel temps.
    max_hidden = max(w.shape[1] for w in ws)
    vmem_est = (2 * block * in_pad0 * 4
                + 2 * block * out_padL * 4
                + 2 * (w_bytes + b_bytes)
                + block * in_pad0 * 2
                + block * max_hidden * 8)
    vmem_limit = min(max(int(vmem_est * 1.3) + (2 << 20), 32 << 20), 96 << 20)

    flops = 2 * B_pad * sum(w.shape[0] * w.shape[1] for w in ws)
    bytes_accessed = (x.size * x.dtype.itemsize      # f32 input, read once
                      + w_bytes + b_bytes
                      + B_pad * out_padL * 4)

    out = pl.pallas_call(
        _fc_kernel,
        out_shape=jax.ShapeDtypeStruct((B_pad, out_padL), jnp.float32),
        grid_spec=pltpu.PrefetchScalarGridSpec(
            num_scalar_prefetch=0,
            grid=(B_pad // block,),
            in_specs=in_specs,
            out_specs=pl.BlockSpec((block, out_padL), lambda i: (i, 0)),
        ),
        compiler_params=pltpu.CompilerParams(
            dimension_semantics=("parallel",),
            vmem_limit_bytes=int(vmem_limit),
        ),
        cost_estimate=pl.CostEstimate(
            flops=int(flops),
            transcendentals=0,
            bytes_accessed=int(bytes_accessed),
        ),
    )(*operands)

    return out[:B, :num_classes]


def init_params(key, starting_size):
    """Deterministic init matching nn.Linear shapes; weights stored as (in, out)."""
    dims = [
        (IN_FEATURES, starting_size),               # input_transform
        (starting_size, starting_size // 2),        # d1
        (starting_size // 2, starting_size // 4),   # d2
        (starting_size // 4, starting_size // 8),   # d3
        (starting_size // 8, 10),                   # d4
    ]
    params = {}
    for idx, (fan_in, fan_out) in enumerate(dims):
        key, kw, kb = jax.random.split(key, 3)
        bound = 1.0 / jnp.sqrt(fan_in)  # PyTorch nn.Linear default uniform bound
        params[f"w{idx}"] = jax.random.uniform(
            kw, (fan_in, fan_out), jnp.float32, -bound, bound)
        params[f"b{idx}"] = jax.random.uniform(
            kb, (1, fan_out), jnp.float32, -bound, bound)
    return params


def reference_forward(x_nchw, params):
    """Pure-JAX reference using the same bf16-inputs / f32-accumulation recipe."""
    h = x_nchw.reshape(x_nchw.shape[0], -1)
    for i in range(4):
        h = jnp.dot(h.astype(jnp.bfloat16), params[f"w{i}"].astype(jnp.bfloat16),
                    preferred_element_type=jnp.float32) + params[f"b{i}"]
        h = jnp.maximum(h, 0.0)
    return jnp.dot(h.astype(jnp.bfloat16), params["w4"].astype(jnp.bfloat16),
                   preferred_element_type=jnp.float32) + params["b4"]


if __name__ == "__main__":
    key = jax.random.PRNGKey(0)
    k_x, k_p = jax.random.split(key)

    starting_size = 256          # layers: 3072 -> 256 -> 128 -> 64 -> 32 -> 10
    batch = 2
    x = jax.random.normal(k_x, (batch, 3, 32, 32), jnp.float32)

    params = init_params(k_p, starting_size)
    prepped = prepare_params(params)   # one-time padding + bf16 cast (not per call)

    out = fcnet_forward(x, prepped)
    out = jax.block_until_ready(out)

    ref = reference_forward(x, params)
    assert out.shape == (batch, 10)
    assert jnp.allclose(out, ref, atol=2e-2, rtol=2e-2), \
        float(jnp.max(jnp.abs(out - ref)))

    print("KERNEL_OK")
</pallas_src>

<mosaic_0001>
module attributes {stable_mosaic.version = 11 : i64} {
  func.func @_fc_kernel(%arg0: i32, %arg1: memref<16x3072xf32, #tpu.memory_space<vmem>>, %arg2: memref<3072x256xbf16, #tpu.memory_space<vmem>>, %arg3: memref<1x256xf32, #tpu.memory_space<vmem>>, %arg4: memref<256x128xbf16, #tpu.memory_space<vmem>>, %arg5: memref<1x128xf32, #tpu.memory_space<vmem>>, %arg6: memref<128x128xbf16, #tpu.memory_space<vmem>>, %arg7: memref<1x128xf32, #tpu.memory_space<vmem>>, %arg8: memref<128x128xbf16, #tpu.memory_space<vmem>>, %arg9: memref<1x128xf32, #tpu.memory_space<vmem>>, %arg10: memref<128x128xbf16, #tpu.memory_space<vmem>>, %arg11: memref<1x128xf32, #tpu.memory_space<vmem>>, %arg12: memref<16x128xf32, #tpu.memory_space<vmem>>) attributes {dimension_semantics = [#tpu.dimension_semantics<parallel>], iteration_bounds = array<i64: 1>, scalar_prefetch = 0 : i64, scratch_operands = 0 : i64, tpu.core_type = #tpu.core_type<tc>, window_params = [{transform_indices = @transform_0, window_bounds = array<i64: 16, 3072>}, {pipeline_mode = #tpu.pipeline_mode<synchronous>, transform_indices = @transform_1, window_bounds = array<i64: 3072, 256>}, {pipeline_mode = #tpu.pipeline_mode<synchronous>, transform_indices = @transform_2, window_bounds = array<i64: 1, 256>}, {pipeline_mode = #tpu.pipeline_mode<synchronous>, transform_indices = @transform_3, window_bounds = array<i64: 256, 128>}, {pipeline_mode = #tpu.pipeline_mode<synchronous>, transform_indices = @transform_4, window_bounds = array<i64: 1, 128>}, {pipeline_mode = #tpu.pipeline_mode<synchronous>, transform_indices = @transform_5, window_bounds = array<i64: 128, 128>}, {pipeline_mode = #tpu.pipeline_mode<synchronous>, transform_indices = @transform_6, window_bounds = array<i64: 1, 128>}, {pipeline_mode = #tpu.pipeline_mode<synchronous>, transform_indices = @transform_7, window_bounds = array<i64: 128, 128>}, {pipeline_mode = #tpu.pipeline_mode<synchronous>, transform_indices = @transform_8, window_bounds = array<i64: 1, 128>}, {pipeline_mode = #tpu.pipeline_mode<synchronous>, transform_indices = @transform_9, window_bounds = array<i64: 128, 128>}, {pipeline_mode = #tpu.pipeline_mode<synchronous>, transform_indices = @transform_10, window_bounds = array<i64: 1, 128>}, {transform_indices = @transform_11, window_bounds = array<i64: 16, 128>}]} {
    %c0 = arith.constant 0 : index
    %c0_0 = arith.constant 0 : index
    %0 = vector.load %arg1[%c0, %c0_0] : memref<16x3072xf32, #tpu.memory_space<vmem>>, vector<16x3072xf32>
    %1 = arith.truncf %0 : vector<16x3072xf32> to vector<16x3072xbf16>
    %c0_1 = arith.constant 0 : index
    %c0_2 = arith.constant 0 : index
    %2 = vector.load %arg2[%c0_1, %c0_2] : memref<3072x256xbf16, #tpu.memory_space<vmem>>, vector<3072x256xbf16>
    %cst = arith.constant dense<0.000000e+00> : vector<16x256xf32>
    %3 = tpu.matmul %1, %2, %cst {dimension_numbers = #tpu.dot_dimension_numbers<[1], [0], [0], [1], [0, 0, 1, 1], [], []>} : vector<16x3072xbf16>, vector<3072x256xbf16>, vector<16x256xf32> -> vector<16x256xf32>
    %c0_3 = arith.constant 0 : index
    %c0_4 = arith.constant 0 : index
    %4 = vector.load %arg3[%c0_3, %c0_4] : memref<1x256xf32, #tpu.memory_space<vmem>>, vector<1x256xf32>
    %5 = vector.broadcast %4 : vector<1x256xf32> to vector<16x256xf32>
    %6 = arith.addf %3, %5 : vector<16x256xf32>
    %cst_5 = arith.constant 0.000000e+00 : f32
    %7 = vector.broadcast %cst_5 : f32 to vector<16x256xf32>
    %8 = arith.maximumf %6, %7 : vector<16x256xf32>
    %9 = arith.truncf %8 : vector<16x256xf32> to vector<16x256xbf16>
    %c0_6 = arith.constant 0 : index
    %c0_7 = arith.constant 0 : index
    %10 = vector.load %arg4[%c0_6, %c0_7] : memref<256x128xbf16, #tpu.memory_space<vmem>>, vector<256x128xbf16>
    %cst_8 = arith.constant dense<0.000000e+00> : vector<16x128xf32>
    %11 = tpu.matmul %9, %10, %cst_8 {dimension_numbers = #tpu.dot_dimension_numbers<[1], [0], [0], [1], [0, 0, 1, 1], [], []>} : vector<16x256xbf16>, vector<256x128xbf16>, vector<16x128xf32> -> vector<16x128xf32>
    %c0_9 = arith.constant 0 : index
    %c0_10 = arith.constant 0 : index
    %12 = vector.load %arg5[%c0_9, %c0_10] : memref<1x128xf32, #tpu.memory_space<vmem>>, vector<1x128xf32>
    %13 = vector.broadcast %12 : vector<1x128xf32> to vector<16x128xf32>
    %14 = arith.addf %11, %13 : vector<16x128xf32>
    %cst_11 = arith.constant 0.000000e+00 : f32
    %15 = vector.broadcast %cst_11 : f32 to vector<16x128xf32>
    %16 = arith.maximumf %14, %15 : vector<16x128xf32>
    %17 = arith.truncf %16 : vector<16x128xf32> to vector<16x128xbf16>
    %c0_12 = arith.constant 0 : index
    %c0_13 = arith.constant 0 : index
    %18 = vector.load %arg6[%c0_12, %c0_13] : memref<128x128xbf16, #tpu.memory_space<vmem>>, vector<128x128xbf16>
    %cst_14 = arith.constant dense<0.000000e+00> : vector<16x128xf32>
    %19 = tpu.matmul %17, %18, %cst_14 {dimension_numbers = #tpu.dot_dimension_numbers<[1], [0], [0], [1], [0, 0, 1, 1], [], []>} : vector<16x128xbf16>, vector<128x128xbf16>, vector<16x128xf32> -> vector<16x128xf32>
    %c0_15 = arith.constant 0 : index
    %c0_16 = arith.constant 0 : index
    %20 = vector.load %arg7[%c0_15, %c0_16] : memref<1x128xf32, #tpu.memory_space<vmem>>, vector<1x128xf32>
    %21 = vector.broadcast %20 : vector<1x128xf32> to vector<16x128xf32>
    %22 = arith.addf %19, %21 : vector<16x128xf32>
    %cst_17 = arith.constant 0.000000e+00 : f32
    %23 = vector.broadcast %cst_17 : f32 to vector<16x128xf32>
    %24 = arith.maximumf %22, %23 : vector<16x128xf32>
    %25 = arith.truncf %24 : vector<16x128xf32> to vector<16x128xbf16>
    %c0_18 = arith.constant 0 : index
    %c0_19 = arith.constant 0 : index
    %26 = vector.load %arg8[%c0_18, %c0_19] : memref<128x128xbf16, #tpu.memory_space<vmem>>, vector<128x128xbf16>
    %cst_20 = arith.constant dense<0.000000e+00> : vector<16x128xf32>
    %27 = tpu.matmul %25, %26, %cst_20 {dimension_numbers = #tpu.dot_dimension_numbers<[1], [0], [0], [1], [0, 0, 1, 1], [], []>} : vector<16x128xbf16>, vector<128x128xbf16>, vector<16x128xf32> -> vector<16x128xf32>
    %c0_21 = arith.constant 0 : index
    %c0_22 = arith.constant 0 : index
    %28 = vector.load %arg9[%c0_21, %c0_22] : memref<1x128xf32, #tpu.memory_space<vmem>>, vector<1x128xf32>
    %29 = vector.broadcast %28 : vector<1x128xf32> to vector<16x128xf32>
    %30 = arith.addf %27, %29 : vector<16x128xf32>
    %cst_23 = arith.constant 0.000000e+00 : f32
    %31 = vector.broadcast %cst_23 : f32 to vector<16x128xf32>
    %32 = arith.maximumf %30, %31 : vector<16x128xf32>
    %33 = arith.truncf %32 : vector<16x128xf32> to vector<16x128xbf16>
    %c0_24 = arith.constant 0 : index
    %c0_25 = arith.constant 0 : index
    %34 = vector.load %arg10[%c0_24, %c0_25] : memref<128x128xbf16, #tpu.memory_space<vmem>>, vector<128x128xbf16>
    %cst_26 = arith.constant dense<0.000000e+00> : vector<16x128xf32>
    %35 = tpu.matmul %33, %34, %cst_26 {dimension_numbers = #tpu.dot_dimension_numbers<[1], [0], [0], [1], [0, 0, 1, 1], [], []>} : vector<16x128xbf16>, vector<128x128xbf16>, vector<16x128xf32> -> vector<16x128xf32>
    %c0_27 = arith.constant 0 : index
    %c0_28 = arith.constant 0 : index
    %36 = vector.load %arg11[%c0_27, %c0_28] : memref<1x128xf32, #tpu.memory_space<vmem>>, vector<1x128xf32>
    %37 = vector.broadcast %36 : vector<1x128xf32> to vector<16x128xf32>
    %38 = arith.addf %35, %37 : vector<16x128xf32>
    %c0_29 = arith.constant 0 : index
    %c0_30 = arith.constant 0 : index
    %39 = vector.load %arg12[%c0_29, %c0_30] : memref<16x128xf32, #tpu.memory_space<vmem>>, vector<16x128xf32>
    tpu.vector_store %arg12[%c0_29, %c0_30], %38 {strides = array<i32>} : memref<16x128xf32, #tpu.memory_space<vmem>>, vector<16x128xf32>,
    return
  }
  func.func @transform_0(%arg0: i32) -> (i32, i32) {
    %c0_i32 = arith.constant 0 : i32
    %c0_i32_0 = arith.constant 0 : i32
    return %arg0, %c0_i32 : i32, i32
  }
  func.func @transform_1(%arg0: i32) -> (i32, i32) {
    %c0_i32 = arith.constant 0 : i32
    %c0_i32_0 = arith.constant 0 : i32
    %c0_i32_1 = arith.constant 0 : i32
    return %c0_i32, %c0_i32_0 : i32, i32
  }
  func.func @transform_2(%arg0: i32) -> (i32, i32) {
    %c0_i32 = arith.constant 0 : i32
    %c0_i32_0 = arith.constant 0 : i32
    %c0_i32_1 = arith.constant 0 : i32
    return %c0_i32, %c0_i32_0 : i32, i32
  }
  func.func @transform_3(%arg0: i32) -> (i32, i32) {
    %c0_i32 = arith.constant 0 : i32
    %c0_i32_0 = arith.constant 0 : i32
    %c0_i32_1 = arith.constant 0 : i32
    return %c0_i32, %c0_i32_0 : i32, i32
  }
  func.func @transform_4(%arg0: i32) -> (i32, i32) {
    %c0_i32 = arith.constant 0 : i32
    %c0_i32_0 = arith.constant 0 : i32
    %c0_i32_1 = arith.constant 0 : i32
    return %c0_i32, %c0_i32_0 : i32, i32
  }
  func.func @transform_5(%arg0: i32) -> (i32, i32) {
    %c0_i32 = arith.constant 0 : i32
    %c0_i32_0 = arith.constant 0 : i32
    %c0_i32_1 = arith.constant 0 : i32
    return %c0_i32, %c0_i32_0 : i32, i32
  }
  func.func @transform_6(%arg0: i32) -> (i32, i32) {
    %c0_i32 = arith.constant 0 : i32
    %c0_i32_0 = arith.constant 0 : i32
    %c0_i32_1 = arith.constant 0 : i32
    return %c0_i32, %c0_i32_0 : i32, i32
  }
  func.func @transform_7(%arg0: i32) -> (i32, i32) {
    %c0_i32 = arith.constant 0 : i32
    %c0_i32_0 = arith.constant 0 : i32
    %c0_i32_1 = arith.constant 0 : i32
    return %c0_i32, %c0_i32_0 : i32, i32
  }
  func.func @transform_8(%arg0: i32) -> (i32, i32) {
    %c0_i32 = arith.constant 0 : i32
    %c0_i32_0 = arith.constant 0 : i32
    %c0_i32_1 = arith.constant 0 : i32
    return %c0_i32, %c0_i32_0 : i32, i32
  }
  func.func @transform_9(%arg0: i32) -> (i32, i32) {
    %c0_i32 = arith.constant 0 : i32
    %c0_i32_0 = arith.constant 0 : i32
    %c0_i32_1 = arith.constant 0 : i32
    return %c0_i32, %c0_i32_0 : i32, i32
  }
  func.func @transform_10(%arg0: i32) -> (i32, i32) {
    %c0_i32 = arith.constant 0 : i32
    %c0_i32_0 = arith.constant 0 : i32
    %c0_i32_1 = arith.constant 0 : i32
    return %c0_i32, %c0_i32_0 : i32, i32
  }
  func.func @transform_11(%arg0: i32) -> (i32, i32) {
    %c0_i32 = arith.constant 0 : i32
    %c0_i32_0 = arith.constant 0 : i32
    return %arg0, %c0_i32 : i32, i32
  }
}

</mosaic_0001>

<llo_original>
// kernel: fcnet_forward.1
$region0: #{fcnet_forward.1}
  #allocation0 [shape = 'u32[]', space=smem, size = 0x4, offset = 0x4, fixed_abs, tag = 'smem constant byte address 0x4 - core index']
  #allocation1 [shape = 'u32[144,128]{1,0:T(1,128)}', space=vmem, size = 0x12000, scoped, tag = 'internal scratch']
  %s0 = inlined_call_operand.vmem [shape: f32[16,3072], index: 0, kind: input, shape index: {}]
  %s1 = inlined_call_operand.hbm [shape: bf16[3072,256], index: 1, kind: input, shape index: {}]
  %s2 = inlined_call_operand.hbm [shape: f32[1,256], index: 2, kind: input, shape index: {}]
  %s3 = inlined_call_operand.hbm [shape: bf16[256,128], index: 3, kind: input, shape index: {}]
  %s4 = inlined_call_operand.hbm [shape: f32[1,128], index: 4, kind: input, shape index: {}]
  %s5 = inlined_call_operand.hbm [shape: bf16[128,128], index: 5, kind: input, shape index: {}]
  %s6 = inlined_call_operand.hbm [shape: f32[1,128], index: 6, kind: input, shape index: {}]
  %s7 = inlined_call_operand.hbm [shape: bf16[128,128], index: 7, kind: input, shape index: {}]
  %s8 = inlined_call_operand.hbm [shape: f32[1,128], index: 8, kind: input, shape index: {}]
  %s9 = inlined_call_operand.hbm [shape: bf16[128,128], index: 9, kind: input, shape index: {}]
  %s10 = inlined_call_operand.hbm [shape: f32[1,128], index: 10, kind: input, shape index: {}]
  %s11 = inlined_call_operand.vmem [shape: f32[16,128], index: 11, kind: output, shape index: {}]
  %s12 = sld [smem:[#allocation0]]
  $region94: #{fcnet_forward.1} parent=0
    _
  %s14 = ssub.s32 1, %s12
  %s15 = scalar_select 0, %s14, %s12
  $region1: #{fcnet_forward.1} parent=0
    #allocation2 [shape = 'u8[1572864]{0}', space=vmem, size = 0x180000, scoped, tag = 'input window, operand 1, single buffered']
    #allocation3 [shape = 's32[1]{0}', space=sflag, size = 0x4, scoped, tag = 'scoped memory for fcnet_forward.1']
    #allocation4 [shape = 'u8[1024]{0}', space=vmem, size = 0x400, scoped, tag = 'input window, operand 2, single buffered']
    #allocation5 [shape = 's32[1]{0}', space=sflag, size = 0x4, scoped, tag = 'scoped memory for fcnet_forward.1']
    #allocation6 [shape = 'u8[65536]{0}', space=vmem, size = 0x10000, scoped, tag = 'input window, operand 3, single buffered']
    #allocation7 [shape = 'u8[512]{0}', space=vmem, size = 0x400, scoped, tag = 'input window, operand 4, single buffered']
    #allocation8 [shape = 's32[1]{0}', space=sflag, size = 0x4, scoped, tag = 'scoped memory for fcnet_forward.1']
    #allocation9 [shape = 'u8[32768]{0}', space=vmem, size = 0x8000, scoped, tag = 'input window, operand 5, single buffered']
    #allocation10 [shape = 'u8[512]{0}', space=vmem, size = 0x400, scoped, tag = 'input window, operand 6, single buffered']
    #allocation11 [shape = 's32[1]{0}', space=sflag, size = 0x4, scoped, tag = 'scoped memory for fcnet_forward.1']
    #allocation12 [shape = 'u8[32768]{0}', space=vmem, size = 0x8000, scoped, tag = 'input window, operand 7, single buffered']
    #allocation13 [shape = 'u8[512]{0}', space=vmem, size = 0x400, scoped, tag = 'input window, operand 8, single buffered']
    #allocation14 [shape = 's32[1]{0}', space=sflag, size = 0x4, scoped, tag = 'scoped memory for fcnet_forward.1']
    #allocation15 [shape = 'u8[32768]{0}', space=vmem, size = 0x8000, scoped, tag = 'input window, operand 9, single buffered']
    #allocation16 [shape = 'u8[512]{0}', space=vmem, size = 0x400, scoped, tag = 'input window, operand 10, single buffered']
    #allocation17 [shape = 's32[1]{0}', space=sflag, size = 0x4, scoped, tag = 'scoped memory for fcnet_forward.1']
    %16 = vsyncpa [#allocation3], 0
    %17 = vsyncpa [#allocation5], 0
    %18 = vsyncpa [#allocation8], 0
    %19 = vsyncpa [#allocation11], 0
    %20 = vsyncpa [#allocation14], 0
    %21 = vsyncpa [#allocation17], 0
    // Predicated region
    $region2: #{fcnet_forward.1} parent=1 // pred_check
      _
    $region3: #{fcnet_forward.1} parent=1 // pred_check_branch
      %23 = sbr.rel (0) target = $region5
    $region4: #{fcnet_forward.1} parent=1 // pred_region
      _
    $region5: #{fcnet_forward.1} parent=1 // pred_fallthru
      _
    // Predicated region
    $region6: #{fcnet_forward.1} parent=1 // pred_check
      _
    $region7: #{fcnet_forward.1} parent=1 // pred_check_branch
      %25 = sbr.rel (0) target = $region9
    $region8: #{fcnet_forward.1} parent=1 // pred_region
      %s27 = ssub.s32 49152, 49152
      %28 = vsyncadd [#allocation3], %s27
      %s29 = sshll.u32 [#allocation2], 4
      %s30 = int_to_ptr.vmem [resolvable:$true] %s29
      %35 = dma.hbm_to_vmem [thread:$0]  %s1, 49152, %s30, [#allocation3], 128, 128, 8
    $region9: #{fcnet_forward.1} parent=1 // pred_fallthru
      _
    // Predicated region
    $region10: #{fcnet_forward.1} parent=1 // pred_check
      _
    $region11: #{fcnet_forward.1} parent=1 // pred_check_branch
      %37 = sbr.rel (0) target = $region13
    $region12: #{fcnet_forward.1} parent=1 // pred_region
      %s39 = ssub.s32 32, 32
      %40 = vsyncadd [#allocation5], %s39
      %s42 = sshll.u32 [#allocation4], 4
      %s43 = int_to_ptr.vmem [resolvable:$true] %s42
      %45 = dma.hbm_to_vmem [thread:$0]  %s2, 32, %s43, [#allocation5]
    $region13: #{fcnet_forward.1} parent=1 // pred_fallthru
      _
    // Predicated region
    $region14: #{fcnet_forward.1} parent=1 // pred_check
      _
    $region15: #{fcnet_forward.1} parent=1 // pred_check_branch
      %47 = sbr.rel (0) target = $region17
    $region16: #{fcnet_forward.1} parent=1 // pred_region
      %s49 = ssub.s32 2048, 2048
      %50 = vsyncadd [#allocation5], %s49
      %s51 = sshll.u32 [#allocation6], 4
      %s52 = int_to_ptr.vmem [resolvable:$true] %s51
      %57 = dma.hbm_to_vmem [thread:$0]  %s3, 2048, %s52, [#allocation5], 64, 64, 4
    $region17: #{fcnet_forward.1} parent=1 // pred_fallthru
      _
    // Predicated region
    $region18: #{fcnet_forward.1} parent=1 // pred_check
      _
    $region19: #{fcnet_forward.1} parent=1 // pred_check_branch
      %59 = sbr.rel (0) target = $region21
    $region20: #{fcnet_forward.1} parent=1 // pred_region
      %s61 = ssub.s32 16, 16
      %62 = vsyncadd [#allocation8], %s61
      %s64 = sshll.u32 [#allocation7], 4
      %s65 = int_to_ptr.vmem [resolvable:$true] %s64
      %67 = dma.hbm_to_vmem [thread:$0]  %s4, 16, %s65, [#allocation8]
    $region21: #{fcnet_forward.1} parent=1 // pred_fallthru
      _
    // Predicated region
    $region22: #{fcnet_forward.1} parent=1 // pred_check
      _
    $region23: #{fcnet_forward.1} parent=1 // pred_check_branch
      %69 = sbr.rel (0) target = $region25
    $region24: #{fcnet_forward.1} parent=1 // pred_region
      %s71 = ssub.s32 1024, 1024
      %72 = vsyncadd [#allocation8], %s71
      %s73 = sshll.u32 [#allocation9], 4
      %s74 = int_to_ptr.vmem [resolvable:$true] %s73
      %79 = dma.hbm_to_vmem [thread:$0]  %s5, 1024, %s74, [#allocation8], 64, 64, 4
    $region25: #{fcnet_forward.1} parent=1 // pred_fallthru
      _
    // Predicated region
    $region26: #{fcnet_forward.1} parent=1 // pred_check
      _
    $region27: #{fcnet_forward.1} parent=1 // pred_check_branch
      %81 = sbr.rel (0) target = $region29
    $region28: #{fcnet_forward.1} parent=1 // pred_region
      %s83 = ssub.s32 16, 16
      %84 = vsyncadd [#allocation11], %s83
      %s86 = sshll.u32 [#allocation10], 4
      %s87 = int_to_ptr.vmem [resolvable:$true] %s86
      %89 = dma.hbm_to_vmem [thread:$0]  %s6, 16, %s87, [#allocation11]
    $region29: #{fcnet_forward.1} parent=1 // pred_fallthru
      _
    // Predicated region
    $region30: #{fcnet_forward.1} parent=1 // pred_check
      _
    $region31: #{fcnet_forward.1} parent=1 // pred_check_branch
      %91 = sbr.rel (0) target = $region33
    $region32: #{fcnet_forward.1} parent=1 // pred_region
      %s93 = ssub.s32 1024, 1024
      %94 = vsyncadd [#allocation11], %s93
      %s95 = sshll.u32 [#allocation12], 4
      %s96 = int_to_ptr.vmem [resolvable:$true] %s95
      %101 = dma.hbm_to_vmem [thread:$0]  %s7, 1024, %s96, [#allocation11], 64, 64, 4
    $region33: #{fcnet_forward.1} parent=1 // pred_fallthru
      _
    // Predicated region
    $region34: #{fcnet_forward.1} parent=1 // pred_check
      _
    $region35: #{fcnet_forward.1} parent=1 // pred_check_branch
      %103 = sbr.rel (0) target = $region37
    $region36: #{fcnet_forward.1} parent=1 // pred_region
      %s105 = ssub.s32 16, 16
      %106 = vsyncadd [#allocation14], %s105
      %s108 = sshll.u32 [#allocation13], 4
      %s109 = int_to_ptr.vmem [resolvable:$true] %s108
      %111 = dma.hbm_to_vmem [thread:$0]  %s8, 16, %s109, [#allocation14]
    $region37: #{fcnet_forward.1} parent=1 // pred_fallthru
      _
    // Predicated region
    $region38: #{fcnet_forward.1} parent=1 // pred_check
      _
    $region39: #{fcnet_forward.1} parent=1 // pred_check_branch
      %113 = sbr.rel (0) target = $region41
    $region40: #{fcnet_forward.1} parent=1 // pred_region
      %s115 = ssub.s32 1024, 1024
      %116 = vsyncadd [#allocation14], %s115
      %s117 = sshll.u32 [#allocation15], 4
      %s118 = int_to_ptr.vmem [resolvable:$true] %s117
      %123 = dma.hbm_to_vmem [thread:$0]  %s9, 1024, %s118, [#allocation14], 64, 64, 4
    $region41: #{fcnet_forward.1} parent=1 // pred_fallthru
      _
    // Predicated region
    $region42: #{fcnet_forward.1} parent=1 // pred_check
      _
    $region43: #{fcnet_forward.1} parent=1 // pred_check_branch
      %125 = sbr.rel (0) target = $region45
    $region44: #{fcnet_forward.1} parent=1 // pred_region
      %s127 = ssub.s32 16, 16
      %128 = vsyncadd [#allocation17], %s127
      %s130 = sshll.u32 [#allocation16], 4
      %s131 = int_to_ptr.vmem [resolvable:$true] %s130
      %133 = dma.hbm_to_vmem [thread:$0]  %s10, 16, %s131, [#allocation17]
    $region45: #{fcnet_forward.1} parent=1 // pred_fallthru
      _
    // Predicated region
    $region46: #{fcnet_forward.1} parent=1 // pred_check
      _
    $region47: #{fcnet_forward.1} parent=1 // pred_check_branch
      %135 = sbr.rel (0) target = $region49
    $region48: #{fcnet_forward.1} parent=1 // pred_region
      %136 = dma.done [#allocation3], 49152
    $region49: #{fcnet_forward.1} parent=1 // pred_fallthru
      _
    // Predicated region
    $region50: #{fcnet_forward.1} parent=1 // pred_check
      _
    $region51: #{fcnet_forward.1} parent=1 // pred_check_branch
      %138 = sbr.rel (0) target = $region53
    $region52: #{fcnet_forward.1} parent=1 // pred_region
      %139 = dma.done [#allocation5], 32
    $region53: #{fcnet_forward.1} parent=1 // pred_fallthru
      _
    // Predicated region
    $region54: #{fcnet_forward.1} parent=1 // pred_check
      _
    $region55: #{fcnet_forward.1} parent=1 // pred_check_branch
      %141 = sbr.rel (0) target = $region57
    $region56: #{fcnet_forward.1} parent=1 // pred_region
      %142 = dma.done [#allocation5], 2048
    $region57: #{fcnet_forward.1} parent=1 // pred_fallthru
      _
    // Predicated region
    $region58: #{fcnet_forward.1} parent=1 // pred_check
      _
    $region59: #{fcnet_forward.1} parent=1 // pred_check_branch
      %144 = sbr.rel (0) target = $region61
    $region60: #{fcnet_forward.1} parent=1 // pred_region
      %145 = dma.done [#allocation8], 16
    $region61: #{fcnet_forward.1} parent=1 // pred_fallthru
      _
    // Predicated region
    $region62: #{fcnet_forward.1} parent=1 // pred_check
      _
    $region63: #{fcnet_forward.1} parent=1 // pred_check_branch
      %147 = sbr.rel (0) target = $region65
    $region64: #{fcnet_forward.1} parent=1 // pred_region
      %148 = dma.done [#allocation8], 1024
    $region65: #{fcnet_forward.1} parent=1 // pred_fallthru
      _
    // Predicated region
    $region66: #{fcnet_forward.1} parent=1 // pred_check
      _
    $region67: #{fcnet_forward.1} parent=1 // pred_check_branch
      %150 = sbr.rel (0) target = $region69
    $region68: #{fcnet_forward.1} parent=1 // pred_region
      %151 = dma.done [#allocation11], 16
    $region69: #{fcnet_forward.1} parent=1 // pred_fallthru
      _
    // Predicated region
    $region70: #{fcnet_forward.1} parent=1 // pred_check
      _
    $region71: #{fcnet_forward.1} parent=1 // pred_check_branch
      %153 = sbr.rel (0) target = $region73
    $region72: #{fcnet_forward.1} parent=1 // pred_region
      %154 = dma.done [#allocation11], 1024
    $region73: #{fcnet_forward.1} parent=1 // pred_fallthru
      _
    // Predicated region
    $region74: #{fcnet_forward.1} parent=1 // pred_check
      _
    $region75: #{fcnet_forward.1} parent=1 // pred_check_branch
      %156 = sbr.rel (0) target = $region77
    $region76: #{fcnet_forward.1} parent=1 // pred_region
      %157 = dma.done [#allocation14], 16
    $region77: #{fcnet_forward.1} parent=1 // pred_fallthru
      _
    // Predicated region
    $region78: #{fcnet_forward.1} parent=1 // pred_check
      _
    $region79: #{fcnet_forward.1} parent=1 // pred_check_branch
      %159 = sbr.rel (0) target = $region81
    $region80: #{fcnet_forward.1} parent=1 // pred_region
      %160 = dma.done [#allocation14], 1024
    $region81: #{fcnet_forward.1} parent=1 // pred_fallthru
      _
    // Predicated region
    $region82: #{fcnet_forward.1} parent=1 // pred_check
      _
    $region83: #{fcnet_forward.1} parent=1 // pred_check_branch
      %162 = sbr.rel (0) target = $region85
    $region84: #{fcnet_forward.1} parent=1 // pred_region
      %163 = dma.done [#allocation17], 16
    $region85: #{fcnet_forward.1} parent=1 // pred_fallthru
      _
    %v165 = vld [vmem:[%s0] sm:$0xff]
    %v166 = vld [vmem:[%s0 + $0x8] sm:$0xff]
    %v167 = vld [vmem:[%s0 + $0x10] sm:$0xff]
    %v168 = vld [vmem:[%s0 + $0x18] sm:$0xff]
    %v169 = vld [vmem:[%s0 + $0x20] sm:$0xff]
    %v170 = vld [vmem:[%s0 + $0x28] sm:$0xff]
    %v171 = vld [vmem:[%s0 + $0x30] sm:$0xff]
    %v172 = vld [vmem:[%s0 + $0x38] sm:$0xff]
    %v173 = vld [vmem:[%s0 + $0x40] sm:$0xff]
    %v174 = vld [vmem:[%s0 + $0x48] sm:$0xff]
    %v175 = vld [vmem:[%s0 + $0x50] sm:$0xff]
    %v176 = vld [vmem:[%s0 + $0x58] sm:$0xff]
    %v177 = vld [vmem:[%s0 + $0x60] sm:$0xff]
    %v178 = vld [vmem:[%s0 + $0x68] sm:$0xff]
    %v179 = vld [vmem:[%s0 + $0x70] sm:$0xff]
    %v180 = vld [vmem:[%s0 + $0x78] sm:$0xff]
    %v181 = vld [vmem:[%s0 + $0x80] sm:$0xff]
    %v182 = vld [vmem:[%s0 + $0x88] sm:$0xff]
    %v183 = vld [vmem:[%s0 + $0x90] sm:$0xff]
    %v184 = vld [vmem:[%s0 + $0x98] sm:$0xff]
    %v185 = vld [vmem:[%s0 + $0xa0] sm:$0xff]
    %v186 = vld [vmem:[%s0 + $0xa8] sm:$0xff]
    %v187 = vld [vmem:[%s0 + $0xb0] sm:$0xff]
    %v188 = vld [vmem:[%s0 + $0xb8] sm:$0xff]
    %v189 = vld [vmem:[%s0 + $0xc0] sm:$0xff]
    %v190 = vld [vmem:[%s0 + $0xc8] sm:$0xff]
    %v191 = vld [vmem:[%s0 + $0xd0] sm:$0xff]
    %v192 = vld [vmem:[%s0 + $0xd8] sm:$0xff]
    %v193 = vld [vmem:[%s0 + $0xe0] sm:$0xff]
    %v194 = vld [vmem:[%s0 + $0xe8] sm:$0xff]
    %v195 = vld [vmem:[%s0 + $0xf0] sm:$0xff]
    %v196 = vld [vmem:[%s0 + $0xf8] sm:$0xff]
    %v197 = vld [vmem:[%s0 + $0x100] sm:$0xff]
    %v198 = vld [vmem:[%s0 + $0x108] sm:$0xff]
    %v199 = vld [vmem:[%s0 + $0x110] sm:$0xff]
    %v200 = vld [vmem:[%s0 + $0x118] sm:$0xff]
    %v201 = vld [vmem:[%s0 + $0x120] sm:$0xff]
    %v202 = vld [vmem:[%s0 + $0x128] sm:$0xff]
    %v203 = vld [vmem:[%s0 + $0x130] sm:$0xff]
    %v204 = vld [vmem:[%s0 + $0x138] sm:$0xff]
    %v205 = vld [vmem:[%s0 + $0x140] sm:$0xff]
    %v206 = vld [vmem:[%s0 + $0x148] sm:$0xff]
    %v207 = vld [vmem:[%s0 + $0x150] sm:$0xff]
    %v208 = vld [vmem:[%s0 + $0x158] sm:$0xff]
    %v209 = vld [vmem:[%s0 + $0x160] sm:$0xff]
    %v210 = vld [vmem:[%s0 + $0x168] sm:$0xff]
    %v211 = vld [vmem:[%s0 + $0x170] sm:$0xff]
    %v212 = vld [vmem:[%s0 + $0x178] sm:$0xff]
    %v213 = vpack.c.bf16 %v189, %v165
    %v214 = vpack.c.bf16 %v190, %v166
    %v215 = vpack.c.bf16 %v191, %v167
    %v216 = vpack.c.bf16 %v192, %v168
    %v217 = vpack.c.bf16 %v193, %v169
    %v218 = vpack.c.bf16 %v194, %v170
    %v219 = vpack.c.bf16 %v195, %v171
    %v220 = vpack.c.bf16 %v196, %v172
    %v221 = vpack.c.bf16 %v197, %v173
    %v222 = vpack.c.bf16 %v198, %v174
    %v223 = vpack.c.bf16 %v199, %v175
    %v224 = vpack.c.bf16 %v200, %v176
    %v225 = vpack.c.bf16 %v201, %v177
    %v226 = vpack.c.bf16 %v202, %v178
    %v227 = vpack.c.bf16 %v203, %v179
    %v228 = vpack.c.bf16 %v204, %v180
    %v229 = vpack.c.bf16 %v205, %v181
    %v230 = vpack.c.bf16 %v206, %v182
    %v231 = vpack.c.bf16 %v207, %v183
    %v232 = vpack.c.bf16 %v208, %v184
    %v233 = vpack.c.bf16 %v209, %v185
    %v234 = vpack.c.bf16 %v210, %v186
    %v235 = vpack.c.bf16 %v211, %v187
    %v236 = vpack.c.bf16 %v212, %v188
    %v237 = vld [vmem:[#allocation2] sm:$0xff]
    %v238 = vld [vmem:[#allocation2 + $0x8] sm:$0xff]
    %v239 = vld [vmem:[#allocation2 + $0x10] sm:$0xff]
    %v240 = vld [vmem:[#allocation2 + $0x18] sm:$0xff]
    %v241 = vld [vmem:[#allocation2 + $0x20] sm:$0xff]
    %v242 = vld [vmem:[#allocation2 + $0x28] sm:$0xff]
    %v243 = vld [vmem:[#allocation2 + $0x30] sm:$0xff]
    %v244 = vld [vmem:[#allocation2 + $0x38] sm:$0xff]
    %v245 = vld [vmem:[#allocation2 + $0x40] sm:$0xff]
    %v246 = vld [vmem:[#allocation2 + $0x48] sm:$0xff]
    %v247 = vld [vmem:[#allocation2 + $0x50] sm:$0xff]
    %v248 = vld [vmem:[#allocation2 + $0x58] sm:$0xff]
    %v249 = vld [vmem:[#allocation2 + $0x60] sm:$0xff]
    %v250 = vld [vmem:[#allocation2 + $0x68] sm:$0xff]
    %v251 = vld [vmem:[#allocation2 + $0x70] sm:$0xff]
    %v252 = vld [vmem:[#allocation2 + $0x78] sm:$0xff]
    %v253 = vld [vmem:[#allocation2 + $0x80] sm:$0xff]
    %v254 = vld [vmem:[#allocation2 + $0x88] sm:$0xff]
    %v255 = vld [vmem:[#allocation2 + $0x90] sm:$0xff]
    %v256 = vld [vmem:[#allocation2 + $0x98] sm:$0xff]
    %v257 = vld [vmem:[#allocation2 + $0xa0] sm:$0xff]
    %v258 = vld [vmem:[#allocation2 + $0xa8] sm:$0xff]
    %v259 = vld [vmem:[#allocation2 + $0xb0] sm:$0xff]
    %v260 = vld [vmem:[#allocation2 + $0xb8] sm:$0xff]
    %v261 = vld [vmem:[#allocation2 + $0xc0] sm:$0xff]
    %v262 = vld [vmem:[#allocation2 + $0xc8] sm:$0xff]
    %v263 = vld [vmem:[#allocation2 + $0xd0] sm:$0xff]
    %v264 = vld [vmem:[#allocation2 + $0xd8] sm:$0xff]
    %v265 = vld [vmem:[#allocation2 + $0xe0] sm:$0xff]
    %v266 = vld [vmem:[#allocation2 + $0xe8] sm:$0xff]
    %v267 = vld [vmem:[#allocation2 + $0xf0] sm:$0xff]
    %v268 = vld [vmem:[#allocation2 + $0xf8] sm:$0xff]
    %v269 = vld [vmem:[#allocation2 + $0x100] sm:$0xff]
    %v270 = vld [vmem:[#allocation2 + $0x108] sm:$0xff]
    %v271 = vld [vmem:[#allocation2 + $0x110] sm:$0xff]
    %v272 = vld [vmem:[#allocation2 + $0x118] sm:$0xff]
    %v273 = vld [vmem:[#allocation2 + $0x120] sm:$0xff]
    %v274 = vld [vmem:[#allocation2 + $0x128] sm:$0xff]
    %v275 = vld [vmem:[#allocation2 + $0x130] sm:$0xff]
    %v276 = vld [vmem:[#allocation2 + $0x138] sm:$0xff]
    %v277 = vld [vmem:[#allocation2 + $0x140] sm:$0xff]
    %v278 = vld [vmem:[#allocation2 + $0x148] sm:$0xff]
    %v279 = vld [vmem:[#allocation2 + $0x150] sm:$0xff]
    %v280 = vld [vmem:[#allocation2 + $0x158] sm:$0xff]
    %v281 = vld [vmem:[#allocation2 + $0x160] sm:$0xff]
    %v282 = vld [vmem:[#allocation2 + $0x168] sm:$0xff]
    %v283 = vld [vmem:[#allocation2 + $0x170] sm:$0xff]
    %v284 = vld [vmem:[#allocation2 + $0x178] sm:$0xff]
    %v285 = vld [vmem:[#allocation2 + $0x180] sm:$0xff]
    %v286 = vld [vmem:[#allocation2 + $0x188] sm:$0xff]
    %v287 = vld [vmem:[#allocation2 + $0x190] sm:$0xff]
    %v288 = vld [vmem:[#allocation2 + $0x198] sm:$0xff]
    %v289 = vld [vmem:[#allocation2 + $0x1a0] sm:$0xff]
    %v290 = vld [vmem:[#allocation2 + $0x1a8] sm:$0xff]
    %v291 = vld [vmem:[#allocation2 + $0x1b0] sm:$0xff]
    %v292 = vld [vmem:[#allocation2 + $0x1b8] sm:$0xff]
    %v293 = vld [vmem:[#allocation2 + $0x1c0] sm:$0xff]
    %v294 = vld [vmem:[#allocation2 + $0x1c8] sm:$0xff]
    %v295 = vld [vmem:[#allocation2 + $0x1d0] sm:$0xff]
    %v296 = vld [vmem:[#allocation2 + $0x1d8] sm:$0xff]
    %v297 = vld [vmem:[#allocation2 + $0x1e0] sm:$0xff]
    %v298 = vld [vmem:[#allocation2 + $0x1e8] sm:$0xff]
    %v299 = vld [vmem:[#allocation2 + $0x1f0] sm:$0xff]
    %v300 = vld [vmem:[#allocation2 + $0x1f8] sm:$0xff]
    %v301 = vld [vmem:[#allocation2 + $0x200] sm:$0xff]
    %v302 = vld [vmem:[#allocation2 + $0x208] sm:$0xff]
    %v303 = vld [vmem:[#allocation2 + $0x210] sm:$0xff]
    %v304 = vld [vmem:[#allocation2 + $0x218] sm:$0xff]
    %v305 = vld [vmem:[#allocation2 + $0x220] sm:$0xff]
    %v306 = vld [vmem:[#allocation2 + $0x228] sm:$0xff]
    %v307 = vld [vmem:[#allocation2 + $0x230] sm:$0xff]
    %v308 = vld [vmem:[#allocation2 + $0x238] sm:$0xff]
    %v309 = vld [vmem:[#allocation2 + $0x240] sm:$0xff]
    %v310 = vld [vmem:[#allocation2 + $0x248] sm:$0xff]
    %v311 = vld [vmem:[#allocation2 + $0x250] sm:$0xff]
    %v312 = vld [vmem:[#allocation2 + $0x258] sm:$0xff]
    %v313 = vld [vmem:[#allocation2 + $0x260] sm:$0xff]
    %v314 = vld [vmem:[#allocation2 + $0x268] sm:$0xff]
    %v315 = vld [vmem:[#allocation2 + $0x270] sm:$0xff]
    %v316 = vld [vmem:[#allocation2 + $0x278] sm:$0xff]
    %v317 = vld [vmem:[#allocation2 + $0x280] sm:$0xff]
    %v318 = vld [vmem:[#allocation2 + $0x288] sm:$0xff]
    %v319 = vld [vmem:[#allocation2 + $0x290] sm:$0xff]
    %v320 = vld [vmem:[#allocation2 + $0x298] sm:$0xff]
    %v321 = vld [vmem:[#allocation2 + $0x2a0] sm:$0xff]
    %v322 = vld [vmem:[#allocation2 + $0x2a8] sm:$0xff]
    %v323 = vld [vmem:[#allocation2 + $0x2b0] sm:$0xff]
    %v324 = vld [vmem:[#allocation2 + $0x2b8] sm:$0xff]
    %v325 = vld [vmem:[#allocation2 + $0x2c0] sm:$0xff]
    %v326 = vld [vmem:[#allocation2 + $0x2c8] sm:$0xff]
    %v327 = vld [vmem:[#allocation2 + $0x2d0] sm:$0xff]
    %v328 = vld [vmem:[#allocation2 + $0x2d8] sm:$0xff]
    %v329 = vld [vmem:[#allocation2 + $0x2e0] sm:$0xff]
    %v330 = vld [vmem:[#allocation2 + $0x2e8] sm:$0xff]
    %v331 = vld [vmem:[#allocation2 + $0x2f0] sm:$0xff]
    %v332 = vld [vmem:[#allocation2 + $0x2f8] sm:$0xff]
    %v333 = vld [vmem:[#allocation2 + $0x300] sm:$0xff]
    %v334 = vld [vmem:[#allocation2 + $0x308] sm:$0xff]
    %v335 = vld [vmem:[#allocation2 + $0x310] sm:$0xff]
    %v336 = vld [vmem:[#allocation2 + $0x318] sm:$0xff]
    %v337 = vld [vmem:[#allocation2 + $0x320] sm:$0xff]
    %v338 = vld [vmem:[#allocation2 + $0x328] sm:$0xff]
    %v339 = vld [vmem:[#allocation2 + $0x330] sm:$0xff]
    %v340 = vld [vmem:[#allocation2 + $0x338] sm:$0xff]
    %v341 = vld [vmem:[#allocation2 + $0x340] sm:$0xff]
    %v342 = vld [vmem:[#allocation2 + $0x348] sm:$0xff]
    %v343 = vld [vmem:[#allocation2 + $0x350] sm:$0xff]
    %v344 = vld [vmem:[#allocation2 + $0x358] sm:$0xff]
    %v345 = vld [vmem:[#allocation2 + $0x360] sm:$0xff]
    %v346 = vld [vmem:[#allocation2 + $0x368] sm:$0xff]
    %v347 = vld [vmem:[#allocation2 + $0x370] sm:$0xff]
    %v348 = vld [vmem:[#allocation2 + $0x378] sm:$0xff]
    %v349 = vld [vmem:[#allocation2 + $0x380] sm:$0xff]
    %v350 = vld [vmem:[#allocation2 + $0x388] sm:$0xff]
    %v351 = vld [vmem:[#allocation2 + $0x390] sm:$0xff]
    %v352 = vld [vmem:[#allocation2 + $0x398] sm:$0xff]
    %v353 = vld [vmem:[#allocation2 + $0x3a0] sm:$0xff]
    %v354 = vld [vmem:[#allocation2 + $0x3a8] sm:$0xff]
    %v355 = vld [vmem:[#allocation2 + $0x3b0] sm:$0xff]
    %v356 = vld [vmem:[#allocation2 + $0x3b8] sm:$0xff]
    %v357 = vld [vmem:[#allocation2 + $0x3c0] sm:$0xff]
    %v358 = vld [vmem:[#allocation2 + $0x3c8] sm:$0xff]
    %v359 = vld [vmem:[#allocation2 + $0x3d0] sm:$0xff]
    %v360 = vld [vmem:[#allocation2 + $0x3d8] sm:$0xff]
    %v361 = vld [vmem:[#allocation2 + $0x3e0] sm:$0xff]
    %v362 = vld [vmem:[#allocation2 + $0x3e8] sm:$0xff]
    %v363 = vld [vmem:[#allocation2 + $0x3f0] sm:$0xff]
    %v364 = vld [vmem:[#allocation2 + $0x3f8] sm:$0xff]
    %v365 = vld [vmem:[#allocation2 + $0x400] sm:$0xff]
    %v366 = vld [vmem:[#allocation2 + $0x408] sm:$0xff]
    %v367 = vld [vmem:[#allocation2 + $0x410] sm:$0xff]
    %v368 = vld [vmem:[#allocation2 + $0x418] sm:$0xff]
    %v369 = vld [vmem:[#allocation2 + $0x420] sm:$0xff]
    %v370 = vld [vmem:[#allocation2 + $0x428] sm:$0xff]
    %v371 = vld [vmem:[#allocation2 + $0x430] sm:$0xff]
    %v372 = vld [vmem:[#allocation2 + $0x438] sm:$0xff]
    %v373 = vld [vmem:[#allocation2 + $0x440] sm:$0xff]
    %v374 = vld [vmem:[#allocation2 + $0x448] sm:$0xff]
    %v375 = vld [vmem:[#allocation2 + $0x450] sm:$0xff]
    %v376 = vld [vmem:[#allocation2 + $0x458] sm:$0xff]
    %v377 = vld [vmem:[#allocation2 + $0x460] sm:$0xff]
    %v378 = vld [vmem:[#allocation2 + $0x468] sm:$0xff]
    %v379 = vld [vmem:[#allocation2 + $0x470] sm:$0xff]
    %v380 = vld [vmem:[#allocation2 + $0x478] sm:$0xff]
    %v381 = vld [vmem:[#allocation2 + $0x480] sm:$0xff]
    %v382 = vld [vmem:[#allocation2 + $0x488] sm:$0xff]
    %v383 = vld [vmem:[#allocation2 + $0x490] sm:$0xff]
    %v384 = vld [vmem:[#allocation2 + $0x498] sm:$0xff]
    %v385 = vld [vmem:[#allocation2 + $0x4a0] sm:$0xff]
    %v386 = vld [vmem:[#allocation2 + $0x4a8] sm:$0xff]
    %v387 = vld [vmem:[#allocation2 + $0x4b0] sm:$0xff]
    %v388 = vld [vmem:[#allocation2 + $0x4b8] sm:$0xff]
    %v389 = vld [vmem:[#allocation2 + $0x4c0] sm:$0xff]
    %v390 = vld [vmem:[#allocation2 + $0x4c8] sm:$0xff]
    %v391 = vld [vmem:[#allocation2 + $0x4d0] sm:$0xff]
    %v392 = vld [vmem:[#allocation2 + $0x4d8] sm:$0xff]
    %v393 = vld [vmem:[#allocation2 + $0x4e0] sm:$0xff]
    %v394 = vld [vmem:[#allocation2 + $0x4e8] sm:$0xff]
    %v395 = vld [vmem:[#allocation2 + $0x4f0] sm:$0xff]
    %v396 = vld [vmem:[#allocation2 + $0x4f8] sm:$0xff]
    %v397 = vld [vmem:[#allocation2 + $0x500] sm:$0xff]
    %v398 = vld [vmem:[#allocation2 + $0x508] sm:$0xff]
    %v399 = vld [vmem:[#allocation2 + $0x510] sm:$0xff]
    %v400 = vld [vmem:[#allocation2 + $0x518] sm:$0xff]
    %v401 = vld [vmem:[#allocation2 + $0x520] sm:$0xff]
    %v402 = vld [vmem:[#allocation2 + $0x528] sm:$0xff]
    %v403 = vld [vmem:[#allocation2 + $0x530] sm:$0xff]
    %v404 = vld [vmem:[#allocation2 + $0x538] sm:$0xff]
    %v405 = vld [vmem:[#allocation2 + $0x540] sm:$0xff]
    %v406 = vld [vmem:[#allocation2 + $0x548] sm:$0xff]
    %v407 = vld [vmem:[#allocation2 + $0x550] sm:$0xff]
    %v408 = vld [vmem:[#allocation2 + $0x558] sm:$0xff]
    %v409 = vld [vmem:[#allocation2 + $0x560] sm:$0xff]
    %v410 = vld [vmem:[#allocation2 + $0x568] sm:$0xff]
    %v411 = vld [vmem:[#allocation2 + $0x570] sm:$0xff]
    %v412 = vld [vmem:[#allocation2 + $0x578] sm:$0xff]
    %v413 = vld [vmem:[#allocation2 + $0x580] sm:$0xff]
    %v414 = vld [vmem:[#allocation2 + $0x588] sm:$0xff]
    %v415 = vld [vmem:[#allocation2 + $0x590] sm:$0xff]
    %v416 = vld [vmem:[#allocation2 + $0x598] sm:$0xff]
    %v417 = vld [vmem:[#allocation2 + $0x5a0] sm:$0xff]
    %v418 = vld [vmem:[#allocation2 + $0x5a8] sm:$0xff]
    %v419 = vld [vmem:[#allocation2 + $0x5b0] sm:$0xff]
    %v420 = vld [vmem:[#allocation2 + $0x5b8] sm:$0xff]
    %v421 = vld [vmem:[#allocation2 + $0x5c0] sm:$0xff]
    %v422 = vld [vmem:[#allocation2 + $0x5c8] sm:$0xff]
    %v423 = vld [vmem:[#allocation2 + $0x5d0] sm:$0xff]
    %v424 = vld [vmem:[#allocation2 + $0x5d8] sm:$0xff]
    %v425 = vld [vmem:[#allocation2 + $0x5e0] sm:$0xff]
    %v426 = vld [vmem:[#allocation2 + $0x5e8] sm:$0xff]
    %v427 = vld [vmem:[#allocation2 + $0x5f0] sm:$0xff]
    %v428 = vld [vmem:[#allocation2 + $0x5f8] sm:$0xff]
    %v429 = vld [vmem:[#allocation2 + $0x600] sm:$0xff]
    %v430 = vld [vmem:[#allocation2 + $0x608] sm:$0xff]
    %v431 = vld [vmem:[#allocation2 + $0x610] sm:$0xff]
    %v432 = vld [vmem:[#allocation2 + $0x618] sm:$0xff]
    %v433 = vld [vmem:[#allocation2 + $0x620] sm:$0xff]
    %v434 = vld [vmem:[#allocation2 + $0x628] sm:$0xff]
    %v435 = vld [vmem:[#allocation2 + $0x630] sm:$0xff]
    %v436 = vld [vmem:[#allocation2 + $0x638] sm:$0xff]
    %v437 = vld [vmem:[#allocation2 + $0x640] sm:$0xff]
    %v438 = vld [vmem:[#allocation2 + $0x648] sm:$0xff]
    %v439 = vld [vmem:[#allocation2 + $0x650] sm:$0xff]
    %v440 = vld [vmem:[#allocation2 + $0x658] sm:$0xff]
    %v441 = vld [vmem:[#allocation2 + $0x660] sm:$0xff]
    %v442 = vld [vmem:[#allocation2 + $0x668] sm:$0xff]
    %v443 = vld [vmem:[#allocation2 + $0x670] sm:$0xff]
    %v444 = vld [vmem:[#allocation2 + $0x678] sm:$0xff]
    %v445 = vld [vmem:[#allocation2 + $0x680] sm:$0xff]
    %v446 = vld [vmem:[#allocation2 + $0x688] sm:$0xff]
    %v447 = vld [vmem:[#allocation2 + $0x690] sm:$0xff]
    %v448 = vld [vmem:[#allocation2 + $0x698] sm:$0xff]
    %v449 = vld [vmem:[#allocation2 + $0x6a0] sm:$0xff]
    %v450 = vld [vmem:[#allocation2 + $0x6a8] sm:$0xff]
    %v451 = vld [vmem:[#allocation2 + $0x6b0] sm:$0xff]
    %v452 = vld [vmem:[#allocation2 + $0x6b8] sm:$0xff]
    %v453 = vld [vmem:[#allocation2 + $0x6c0] sm:$0xff]
    %v454 = vld [vmem:[#allocation2 + $0x6c8] sm:$0xff]
    %v455 = vld [vmem:[#allocation2 + $0x6d0] sm:$0xff]
    %v456 = vld [vmem:[#allocation2 + $0x6d8] sm:$0xff]
    %v457 = vld [vmem:[#allocation2 + $0x6e0] sm:$0xff]
    %v458 = vld [vmem:[#allocation2 + $0x6e8] sm:$0xff]
    %v459 = vld [vmem:[#allocation2 + $0x6f0] sm:$0xff]
    %v460 = vld [vmem:[#allocation2 + $0x6f8] sm:$0xff]
    %v461 = vld [vmem:[#allocation2 + $0x700] sm:$0xff]
    %v462 = vld [vmem:[#allocation2 + $0x708] sm:$0xff]
    %v463 = vld [vmem:[#allocation2 + $0x710] sm:$0xff]
    %v464 = vld [vmem:[#allocation2 + $0x718] sm:$0xff]
    %v465 = vld [vmem:[#allocation2 + $0x720] sm:$0xff]
    %v466 = vld [vmem:[#allocation2 + $0x728] sm:$0xff]
    %v467 = vld [vmem:[#allocation2 + $0x730] sm:$0xff]
    %v468 = vld [vmem:[#allocation2 + $0x738] sm:$0xff]
    %v469 = vld [vmem:[#allocation2 + $0x740] sm:$0xff]
    %v470 = vld [vmem:[#allocation2 + $0x748] sm:$0xff]
    %v471 = vld [vmem:[#allocation2 + $0x750] sm:$0xff]
    %v472 = vld [vmem:[#allocation2 + $0x758] sm:$0xff]
    %v473 = vld [vmem:[#allocation2 + $0x760] sm:$0xff]
    %v474 = vld [vmem:[#allocation2 + $0x768] sm:$0xff]
    %v475 = vld [vmem:[#allocation2 + $0x770] sm:$0xff]
    %v476 = vld [vmem:[#allocation2 + $0x778] sm:$0xff]
    %v477 = vld [vmem:[#allocation2 + $0x780] sm:$0xff]
    %v478 = vld [vmem:[#allocation2 + $0x788] sm:$0xff]
    %v479 = vld [vmem:[#allocation2 + $0x790] sm:$0xff]
    %v480 = vld [vmem:[#allocation2 + $0x798] sm:$0xff]
    %v481 = vld [vmem:[#allocation2 + $0x7a0] sm:$0xff]
    %v482 = vld [vmem:[#allocation2 + $0x7a8] sm:$0xff]
    %v483 = vld [vmem:[#allocation2 + $0x7b0] sm:$0xff]
    %v484 = vld [vmem:[#allocation2 + $0x7b8] sm:$0xff]
    %v485 = vld [vmem:[#allocation2 + $0x7c0] sm:$0xff]
    %v486 = vld [vmem:[#allocation2 + $0x7c8] sm:$0xff]
    %v487 = vld [vmem:[#allocation2 + $0x7d0] sm:$0xff]
    %v488 = vld [vmem:[#allocation2 + $0x7d8] sm:$0xff]
    %v489 = vld [vmem:[#allocation2 + $0x7e0] sm:$0xff]
    %v490 = vld [vmem:[#allocation2 + $0x7e8] sm:$0xff]
    %v491 = vld [vmem:[#allocation2 + $0x7f0] sm:$0xff]
    %v492 = vld [vmem:[#allocation2 + $0x7f8] sm:$0xff]
    %v493 = vld [vmem:[#allocation2 + $0x800] sm:$0xff]
    %v494 = vld [vmem:[#allocation2 + $0x808] sm:$0xff]
    %v495 = vld [vmem:[#allocation2 + $0x810] sm:$0xff]
    %v496 = vld [vmem:[#allocation2 + $0x818] sm:$0xff]
    %v497 = vld [vmem:[#allocation2 + $0x820] sm:$0xff]
    %v498 = vld [vmem:[#allocation2 + $0x828] sm:$0xff]
    %v499 = vld [vmem:[#allocation2 + $0x830] sm:$0xff]
    %v500 = vld [vmem:[#allocation2 + $0x838] sm:$0xff]
    %v501 = vld [vmem:[#allocation2 + $0x840] sm:$0xff]
    %v502 = vld [vmem:[#allocation2 + $0x848] sm:$0xff]
    %v503 = vld [vmem:[#allocation2 + $0x850] sm:$0xff]
    %v504 = vld [vmem:[#allocation2 + $0x858] sm:$0xff]
    %v505 = vld [vmem:[#allocation2 + $0x860] sm:$0xff]
    %v506 = vld [vmem:[#allocation2 + $0x868] sm:$0xff]
    %v507 = vld [vmem:[#allocation2 + $0x870] sm:$0xff]
    %v508 = vld [vmem:[#allocation2 + $0x878] sm:$0xff]
    %v509 = vld [vmem:[#allocation2 + $0x880] sm:$0xff]
    %v510 = vld [vmem:[#allocation2 + $0x888] sm:$0xff]
    %v511 = vld [vmem:[#allocation2 + $0x890] sm:$0xff]
    %v512 = vld [vmem:[#allocation2 + $0x898] sm:$0xff]
    %v513 = vld [vmem:[#allocation2 + $0x8a0] sm:$0xff]
    %v514 = vld [vmem:[#allocation2 + $0x8a8] sm:$0xff]
    %v515 = vld [vmem:[#allocation2 + $0x8b0] sm:$0xff]
    %v516 = vld [vmem:[#allocation2 + $0x8b8] sm:$0xff]
    %v517 = vld [vmem:[#allocation2 + $0x8c0] sm:$0xff]
    %v518 = vld [vmem:[#allocation2 + $0x8c8] sm:$0xff]
    %v519 = vld [vmem:[#allocation2 + $0x8d0] sm:$0xff]
    %v520 = vld [vmem:[#allocation2 + $0x8d8] sm:$0xff]
    %v521 = vld [vmem:[#allocation2 + $0x8e0] sm:$0xff]
    %v522 = vld [vmem:[#allocation2 + $0x8e8] sm:$0xff]
    %v523 = vld [vmem:[#allocation2 + $0x8f0] sm:$0xff]
    %v524 = vld [vmem:[#allocation2 + $0x8f8] sm:$0xff]
    %v525 = vld [vmem:[#allocation2 + $0x900] sm:$0xff]
    %v526 = vld [vmem:[#allocation2 + $0x908] sm:$0xff]
    %v527 = vld [vmem:[#allocation2 + $0x910] sm:$0xff]
    %v528 = vld [vmem:[#allocation2 + $0x918] sm:$0xff]
    %v529 = vld [vmem:[#allocation2 + $0x920] sm:$0xff]
    %v530 = vld [vmem:[#allocation2 + $0x928] sm:$0xff]
    %v531 = vld [vmem:[#allocation2 + $0x930] sm:$0xff]
    %v532 = vld [vmem:[#allocation2 + $0x938] sm:$0xff]
    %v533 = vld [vmem:[#allocation2 + $0x940] sm:$0xff]
    %v534 = vld [vmem:[#allocation2 + $0x948] sm:$0xff]
    %v535 = vld [vmem:[#allocation2 + $0x950] sm:$0xff]
    %v536 = vld [vmem:[#allocation2 + $0x958] sm:$0xff]
    %v537 = vld [vmem:[#allocation2 + $0x960] sm:$0xff]
    %v538 = vld [vmem:[#allocation2 + $0x968] sm:$0xff]
    %v539 = vld [vmem:[#allocation2 + $0x970] sm:$0xff]
    %v540 = vld [vmem:[#allocation2 + $0x978] sm:$0xff]
    %v541 = vld [vmem:[#allocation2 + $0x980] sm:$0xff]
    %v542 = vld [vmem:[#allocation2 + $0x988] sm:$0xff]
    %v543 = vld [vmem:[#allocation2 + $0x990] sm:$0xff]
    %v544 = vld [vmem:[#allocation2 + $0x998] sm:$0xff]
    %v545 = vld [vmem:[#allocation2 + $0x9a0] sm:$0xff]
    %v546 = vld [vmem:[#allocation2 + $0x9a8] sm:$0xff]
    %v547 = vld [vmem:[#allocation2 + $0x9b0] sm:$0xff]
    %v548 = vld [vmem:[#allocation2 + $0x9b8] sm:$0xff]
    %v549 = vld [vmem:[#allocation2 + $0x9c0] sm:$0xff]
    %v550 = vld [vmem:[#allocation2 + $0x9c8] sm:$0xff]
    %v551 = vld [vmem:[#allocation2 + $0x9d0] sm:$0xff]
    %v552 = vld [vmem:[#allocation2 + $0x9d8] sm:$0xff]
    %v553 = vld [vmem:[#allocation2 + $0x9e0] sm:$0xff]
    %v554 = vld [vmem:[#allocation2 + $0x9e8] sm:$0xff]
    %v555 = vld [vmem:[#allocation2 + $0x9f0] sm:$0xff]
    %v556 = vld [vmem:[#allocation2 + $0x9f8] sm:$0xff]
    %v557 = vld [vmem:[#allocation2 + $0xa00] sm:$0xff]
    %v558 = vld [vmem:[#allocation2 + $0xa08] sm:$0xff]
    %v559 = vld [vmem:[#allocation2 + $0xa10] sm:$0xff]
    %v560 = vld [vmem:[#allocation2 + $0xa18] sm:$0xff]
    %v561 = vld [vmem:[#allocation2 + $0xa20] sm:$0xff]
    %v562 = vld [vmem:[#allocation2 + $0xa28] sm:$0xff]
    %v563 = vld [vmem:[#allocation2 + $0xa30] sm:$0xff]
    %v564 = vld [vmem:[#allocation2 + $0xa38] sm:$0xff]
    %v565 = vld [vmem:[#allocation2 + $0xa40] sm:$0xff]
    %v566 = vld [vmem:[#allocation2 + $0xa48] sm:$0xff]
    %v567 = vld [vmem:[#allocation2 + $0xa50] sm:$0xff]
    %v568 = vld [vmem:[#allocation2 + $0xa58] sm:$0xff]
    %v569 = vld [vmem:[#allocation2 + $0xa60] sm:$0xff]
    %v570 = vld [vmem:[#allocation2 + $0xa68] sm:$0xff]
    %v571 = vld [vmem:[#allocation2 + $0xa70] sm:$0xff]
    %v572 = vld [vmem:[#allocation2 + $0xa78] sm:$0xff]
    %v573 = vld [vmem:[#allocation2 + $0xa80] sm:$0xff]
    %v574 = vld [vmem:[#allocation2 + $0xa88] sm:$0xff]
    %v575 = vld [vmem:[#allocation2 + $0xa90] sm:$0xff]
    %v576 = vld [vmem:[#allocation2 + $0xa98] sm:$0xff]
    %v577 = vld [vmem:[#allocation2 + $0xaa0] sm:$0xff]
    %v578 = vld [vmem:[#allocation2 + $0xaa8] sm:$0xff]
    %v579 = vld [vmem:[#allocation2 + $0xab0] sm:$0xff]
    %v580 = vld [vmem:[#allocation2 + $0xab8] sm:$0xff]
    %v581 = vld [vmem:[#allocation2 + $0xac0] sm:$0xff]
    %v582 = vld [vmem:[#allocation2 + $0xac8] sm:$0xff]
    %v583 = vld [vmem:[#allocation2 + $0xad0] sm:$0xff]
    %v584 = vld [vmem:[#allocation2 + $0xad8] sm:$0xff]
    %v585 = vld [vmem:[#allocation2 + $0xae0] sm:$0xff]
    %v586 = vld [vmem:[#allocation2 + $0xae8] sm:$0xff]
    %v587 = vld [vmem:[#allocation2 + $0xaf0] sm:$0xff]
    %v588 = vld [vmem:[#allocation2 + $0xaf8] sm:$0xff]
    %v589 = vld [vmem:[#allocation2 + $0xb00] sm:$0xff]
    %v590 = vld [vmem:[#allocation2 + $0xb08] sm:$0xff]
    %v591 = vld [vmem:[#allocation2 + $0xb10] sm:$0xff]
    %v592 = vld [vmem:[#allocation2 + $0xb18] sm:$0xff]
    %v593 = vld [vmem:[#allocation2 + $0xb20] sm:$0xff]
    %v594 = vld [vmem:[#allocation2 + $0xb28] sm:$0xff]
    %v595 = vld [vmem:[#allocation2 + $0xb30] sm:$0xff]
    %v596 = vld [vmem:[#allocation2 + $0xb38] sm:$0xff]
    %v597 = vld [vmem:[#allocation2 + $0xb40] sm:$0xff]
    %v598 = vld [vmem:[#allocation2 + $0xb48] sm:$0xff]
    %v599 = vld [vmem:[#allocation2 + $0xb50] sm:$0xff]
    %v600 = vld [vmem:[#allocation2 + $0xb58] sm:$0xff]
    %v601 = vld [vmem:[#allocation2 + $0xb60] sm:$0xff]
    %v602 = vld [vmem:[#allocation2 + $0xb68] sm:$0xff]
    %v603 = vld [vmem:[#allocation2 + $0xb70] sm:$0xff]
    %v604 = vld [vmem:[#allocation2 + $0xb78] sm:$0xff]
    %v605 = vld [vmem:[#allocation2 + $0xb80] sm:$0xff]
    %v606 = vld [vmem:[#allocation2 + $0xb88] sm:$0xff]
    %v607 = vld [vmem:[#allocation2 + $0xb90] sm:$0xff]
    %v608 = vld [vmem:[#allocation2 + $0xb98] sm:$0xff]
    %v609 = vld [vmem:[#allocation2 + $0xba0] sm:$0xff]
    %v610 = vld [vmem:[#allocation2 + $0xba8] sm:$0xff]
    %v611 = vld [vmem:[#allocation2 + $0xbb0] sm:$0xff]
    %v612 = vld [vmem:[#allocation2 + $0xbb8] sm:$0xff]
    %v613 = vld [vmem:[#allocation2 + $0xbc0] sm:$0xff]
    %v614 = vld [vmem:[#allocation2 + $0xbc8] sm:$0xff]
    %v615 = vld [vmem:[#allocation2 + $0xbd0] sm:$0xff]
    %v616 = vld [vmem:[#allocation2 + $0xbd8] sm:$0xff]
    %v617 = vld [vmem:[#allocation2 + $0xbe0] sm:$0xff]
    %v618 = vld [vmem:[#allocation2 + $0xbe8] sm:$0xff]
    %v619 = vld [vmem:[#allocation2 + $0xbf0] sm:$0xff]
    %v620 = vld [vmem:[#allocation2 + $0xbf8] sm:$0xff]
    %v621 = vld [vmem:[#allocation4] sm:$0x3]
    %v623 = vlaneseq
    %v624 = vshrl.u32 %v623, 7
    %v625 = vsub.s32 0, %v624
    %v626 = vrot.slane %v621, %v625
    %v627 = vlaneseq
    %v628 = vshrl.u32 %v627, 7
    %v629 = vsub.s32 1, %v628
    %v630 = vrot.slane %v621, %v629
    %v1017 = vunpack.c.l.b16 %v237
    %v1018 = vunpack.c.h.b16 %v237
    %v1019 = vunpack.c.l.b16 %v238
    %v1020 = vunpack.c.h.b16 %v238
    %v1021 = vunpack.c.l.b16 %v239
    %v1022 = vunpack.c.h.b16 %v239
    %v1023 = vunpack.c.l.b16 %v240
    %v1024 = vunpack.c.h.b16 %v240
    %v1025 = vunpack.c.l.b16 %v241
    %v1026 = vunpack.c.h.b16 %v241
    %v1027 = vunpack.c.l.b16 %v242
    %v1028 = vunpack.c.h.b16 %v242
    %v1029 = vunpack.c.l.b16 %v243
    %v1030 = vunpack.c.h.b16 %v243
    %v1031 = vunpack.c.l.b16 %v244
    %v1032 = vunpack.c.h.b16 %v244
    %v1033 = vunpack.c.l.b16 %v245
    %v1034 = vunpack.c.h.b16 %v245
    %v1035 = vunpack.c.l.b16 %v246
    %v1036 = vunpack.c.h.b16 %v246
    %v1037 = vunpack.c.l.b16 %v247
    %v1038 = vunpack.c.h.b16 %v247
    %v1039 = vunpack.c.l.b16 %v248
    %v1040 = vunpack.c.h.b16 %v248
    %v1041 = vunpack.c.l.b16 %v249
    %v1042 = vunpack.c.h.b16 %v249
    %v1043 = vunpack.c.l.b16 %v250
    %v1044 = vunpack.c.h.b16 %v250
    %v1045 = vunpack.c.l.b16 %v251
    %v1046 = vunpack.c.h.b16 %v251
    %v1047 = vunpack.c.l.b16 %v252
    %v1048 = vunpack.c.h.b16 %v252
    %v1049 = vunpack.c.l.b16 %v253
    %v1050 = vunpack.c.h.b16 %v253
    %v1051 = vunpack.c.l.b16 %v254
    %v1052 = vunpack.c.h.b16 %v254
    %v1053 = vunpack.c.l.b16 %v255
    %v1054 = vunpack.c.h.b16 %v255
    %v1055 = vunpack.c.l.b16 %v256
    %v1056 = vunpack.c.h.b16 %v256
    %v1057 = vunpack.c.l.b16 %v257
    %v1058 = vunpack.c.h.b16 %v257
    %v1059 = vunpack.c.l.b16 %v258
    %v1060 = vunpack.c.h.b16 %v258
    %v1061 = vunpack.c.l.b16 %v259
    %v1062 = vunpack.c.h.b16 %v259
    %v1063 = vunpack.c.l.b16 %v260
    %v1064 = vunpack.c.h.b16 %v260
    %v1065 = vunpack.c.l.b16 %v261
    %v1066 = vunpack.c.h.b16 %v261
    %v1067 = vunpack.c.l.b16 %v262
    %v1068 = vunpack.c.h.b16 %v262
    %v1069 = vunpack.c.l.b16 %v263
    %v1070 = vunpack.c.h.b16 %v263
    %v1071 = vunpack.c.l.b16 %v264
    %v1072 = vunpack.c.h.b16 %v264
    %v1073 = vunpack.c.l.b16 %v265
    %v1074 = vunpack.c.h.b16 %v265
    %v1075 = vunpack.c.l.b16 %v266
    %v1076 = vunpack.c.h.b16 %v266
    %v1077 = vunpack.c.l.b16 %v267
    %v1078 = vunpack.c.h.b16 %v267
    %v1079 = vunpack.c.l.b16 %v268
    %v1080 = vunpack.c.h.b16 %v268
    %v1081 = vunpack.c.l.b16 %v269
    %v1082 = vunpack.c.h.b16 %v269
    %v1083 = vunpack.c.l.b16 %v270
    %v1084 = vunpack.c.h.b16 %v270
    %v1085 = vunpack.c.l.b16 %v271
    %v1086 = vunpack.c.h.b16 %v271
    %v1087 = vunpack.c.l.b16 %v272
    %v1088 = vunpack.c.h.b16 %v272
    %v1089 = vunpack.c.l.b16 %v273
    %v1090 = vunpack.c.h.b16 %v273
    %v1091 = vunpack.c.l.b16 %v274
    %v1092 = vunpack.c.h.b16 %v274
    %v1093 = vunpack.c.l.b16 %v275
    %v1094 = vunpack.c.h.b16 %v275
    %v1095 = vunpack.c.l.b16 %v276
    %v1096 = vunpack.c.h.b16 %v276
    %v1097 = vunpack.c.l.b16 %v277
    %v1098 = vunpack.c.h.b16 %v277
    %v1099 = vunpack.c.l.b16 %v278
    %v1100 = vunpack.c.h.b16 %v278
    %v1101 = vunpack.c.l.b16 %v279
    %v1102 = vunpack.c.h.b16 %v279
    %v1103 = vunpack.c.l.b16 %v280
    %v1104 = vunpack.c.h.b16 %v280
    %v1105 = vunpack.c.l.b16 %v281
    %v1106 = vunpack.c.h.b16 %v281
    %v1107 = vunpack.c.l.b16 %v282
    %v1108 = vunpack.c.h.b16 %v282
    %v1109 = vunpack.c.l.b16 %v283
    %v1110 = vunpack.c.h.b16 %v283
    %v1111 = vunpack.c.l.b16 %v284
    %v1112 = vunpack.c.h.b16 %v284
    %v1113 = vunpack.c.l.b16 %v285
    %v1114 = vunpack.c.h.b16 %v285
    %v1115 = vunpack.c.l.b16 %v286
    %v1116 = vunpack.c.h.b16 %v286
    %v1117 = vunpack.c.l.b16 %v287
    %v1118 = vunpack.c.h.b16 %v287
    %v1119 = vunpack.c.l.b16 %v288
    %v1120 = vunpack.c.h.b16 %v288
    %v1121 = vunpack.c.l.b16 %v289
    %v1122 = vunpack.c.h.b16 %v289
    %v1123 = vunpack.c.l.b16 %v290
    %v1124 = vunpack.c.h.b16 %v290
    %v1125 = vunpack.c.l.b16 %v291
    %v1126 = vunpack.c.h.b16 %v291
    %v1127 = vunpack.c.l.b16 %v292
    %v1128 = vunpack.c.h.b16 %v292
    %v1129 = vunpack.c.l.b16 %v293
    %v1130 = vunpack.c.h.b16 %v293
    %v1131 = vunpack.c.l.b16 %v294
    %v1132 = vunpack.c.h.b16 %v294
    %v1133 = vunpack.c.l.b16 %v295
    %v1134 = vunpack.c.h.b16 %v295
    %v1135 = vunpack.c.l.b16 %v296
    %v1136 = vunpack.c.h.b16 %v296
    %v1137 = vunpack.c.l.b16 %v297
    %v1138 = vunpack.c.h.b16 %v297
    %v1139 = vunpack.c.l.b16 %v298
    %v1140 = vunpack.c.h.b16 %v298
    %v1141 = vunpack.c.l.b16 %v299
    %v1142 = vunpack.c.h.b16 %v299
    %v1143 = vunpack.c.l.b16 %v300
    %v1144 = vunpack.c.h.b16 %v300
    %v1145 = vunpack.c.l.b16 %v301
    %v1146 = vunpack.c.h.b16 %v301
    %v1147 = vunpack.c.l.b16 %v302
    %v1148 = vunpack.c.h.b16 %v302
    %v1149 = vunpack.c.l.b16 %v303
    %v1150 = vunpack.c.h.b16 %v303
    %v1151 = vunpack.c.l.b16 %v304
    %v1152 = vunpack.c.h.b16 %v304
    %v1153 = vunpack.c.l.b16 %v305
    %v1154 = vunpack.c.h.b16 %v305
    %v1155 = vunpack.c.l.b16 %v306
    %v1156 = vunpack.c.h.b16 %v306
    %v1157 = vunpack.c.l.b16 %v307
    %v1158 = vunpack.c.h.b16 %v307
    %v1159 = vunpack.c.l.b16 %v308
    %v1160 = vunpack.c.h.b16 %v308
    %v1161 = vunpack.c.l.b16 %v309
    %v1162 = vunpack.c.h.b16 %v309
    %v1163 = vunpack.c.l.b16 %v310
    %v1164 = vunpack.c.h.b16 %v310
    %v1165 = vunpack.c.l.b16 %v311
    %v1166 = vunpack.c.h.b16 %v311
    %v1167 = vunpack.c.l.b16 %v312
    %v1168 = vunpack.c.h.b16 %v312
    %v1169 = vunpack.c.l.b16 %v313
    %v1170 = vunpack.c.h.b16 %v313
    %v1171 = vunpack.c.l.b16 %v314
    %v1172 = vunpack.c.h.b16 %v314
    %v1173 = vunpack.c.l.b16 %v315
    %v1174 = vunpack.c.h.b16 %v315
    %v1175 = vunpack.c.l.b16 %v316
    %v1176 = vunpack.c.h.b16 %v316
    %v1177 = vunpack.c.l.b16 %v317
    %v1178 = vunpack.c.h.b16 %v317
    %v1179 = vunpack.c.l.b16 %v318
    %v1180 = vunpack.c.h.b16 %v318
    %v1181 = vunpack.c.l.b16 %v319
    %v1182 = vunpack.c.h.b16 %v319
    %v1183 = vunpack.c.l.b16 %v320
    %v1184 = vunpack.c.h.b16 %v320
    %v1185 = vunpack.c.l.b16 %v321
    %v1186 = vunpack.c.h.b16 %v321
    %v1187 = vunpack.c.l.b16 %v322
    %v1188 = vunpack.c.h.b16 %v322
    %v1189 = vunpack.c.l.b16 %v323
    %v1190 = vunpack.c.h.b16 %v323
    %v1191 = vunpack.c.l.b16 %v324
    %v1192 = vunpack.c.h.b16 %v324
    %v1193 = vunpack.c.l.b16 %v325
    %v1194 = vunpack.c.h.b16 %v325
    %v1195 = vunpack.c.l.b16 %v326
    %v1196 = vunpack.c.h.b16 %v326
    %v1197 = vunpack.c.l.b16 %v327
    %v1198 = vunpack.c.h.b16 %v327
    %v1199 = vunpack.c.l.b16 %v328
    %v1200 = vunpack.c.h.b16 %v328
    %v1201 = vunpack.c.l.b16 %v329
    %v1202 = vunpack.c.h.b16 %v329
    %v1203 = vunpack.c.l.b16 %v330
    %v1204 = vunpack.c.h.b16 %v330
    %v1205 = vunpack.c.l.b16 %v331
    %v1206 = vunpack.c.h.b16 %v331
    %v1207 = vunpack.c.l.b16 %v332
    %v1208 = vunpack.c.h.b16 %v332
    %v1209 = vunpack.c.l.b16 %v333
    %v1210 = vunpack.c.h.b16 %v333
    %v1211 = vunpack.c.l.b16 %v334
    %v1212 = vunpack.c.h.b16 %v334
    %v1213 = vunpack.c.l.b16 %v335
    %v1214 = vunpack.c.h.b16 %v335
    %v1215 = vunpack.c.l.b16 %v336
    %v1216 = vunpack.c.h.b16 %v336
    %v1217 = vunpack.c.l.b16 %v337
    %v1218 = vunpack.c.h.b16 %v337
    %v1219 = vunpack.c.l.b16 %v338
    %v1220 = vunpack.c.h.b16 %v338
    %v1221 = vunpack.c.l.b16 %v339
    %v1222 = vunpack.c.h.b16 %v339
    %v1223 = vunpack.c.l.b16 %v340
    %v1224 = vunpack.c.h.b16 %v340
    %v1225 = vunpack.c.l.b16 %v341
    %v1226 = vunpack.c.h.b16 %v341
    %v1227 = vunpack.c.l.b16 %v342
    %v1228 = vunpack.c.h.b16 %v342
    %v1229 = vunpack.c.l.b16 %v343
    %v1230 = vunpack.c.h.b16 %v343
    %v1231 = vunpack.c.l.b16 %v344
    %v1232 = vunpack.c.h.b16 %v344
    %v1233 = vunpack.c.l.b16 %v345
    %v1234 = vunpack.c.h.b16 %v345
    %v1235 = vunpack.c.l.b16 %v346
    %v1236 = vunpack.c.h.b16 %v346
    %v1237 = vunpack.c.l.b16 %v347
    %v1238 = vunpack.c.h.b16 %v347
    %v1239 = vunpack.c.l.b16 %v348
    %v1240 = vunpack.c.h.b16 %v348
    %v1241 = vunpack.c.l.b16 %v349
    %v1242 = vunpack.c.h.b16 %v349
    %v1243 = vunpack.c.l.b16 %v350
    %v1244 = vunpack.c.h.b16 %v350
    %v1245 = vunpack.c.l.b16 %v351
    %v1246 = vunpack.c.h.b16 %v351
    %v1247 = vunpack.c.l.b16 %v352
    %v1248 = vunpack.c.h.b16 %v352
    %v1249 = vunpack.c.l.b16 %v353
    %v1250 = vunpack.c.h.b16 %v353
    %v1251 = vunpack.c.l.b16 %v354
    %v1252 = vunpack.c.h.b16 %v354
    %v1253 = vunpack.c.l.b16 %v355
    %v1254 = vunpack.c.h.b16 %v355
    %v1255 = vunpack.c.l.b16 %v356
    %v1256 = vunpack.c.h.b16 %v356
    %v1257 = vunpack.c.l.b16 %v357
    %v1258 = vunpack.c.h.b16 %v357
    %v1259 = vunpack.c.l.b16 %v358
    %v1260 = vunpack.c.h.b16 %v358
    %v1261 = vunpack.c.l.b16 %v359
    %v1262 = vunpack.c.h.b16 %v359
    %v1263 = vunpack.c.l.b16 %v360
    %v1264 = vunpack.c.h.b16 %v360
    %v1265 = vunpack.c.l.b16 %v361
    %v1266 = vunpack.c.h.b16 %v361
    %v1267 = vunpack.c.l.b16 %v362
    %v1268 = vunpack.c.h.b16 %v362
    %v1269 = vunpack.c.l.b16 %v363
    %v1270 = vunpack.c.h.b16 %v363
    %v1271 = vunpack.c.l.b16 %v364
    %v1272 = vunpack.c.h.b16 %v364
    %v1273 = vunpack.c.l.b16 %v365
    %v1274 = vunpack.c.h.b16 %v365
    %v1275 = vunpack.c.l.b16 %v366
    %v1276 = vunpack.c.h.b16 %v366
    %v1277 = vunpack.c.l.b16 %v367
    %v1278 = vunpack.c.h.b16 %v367
    %v1279 = vunpack.c.l.b16 %v368
    %v1280 = vunpack.c.h.b16 %v368
    %v1281 = vunpack.c.l.b16 %v369
    %v1282 = vunpack.c.h.b16 %v369
    %v1283 = vunpack.c.l.b16 %v370
    %v1284 = vunpack.c.h.b16 %v370
    %v1285 = vunpack.c.l.b16 %v371
    %v1286 = vunpack.c.h.b16 %v371
    %v1287 = vunpack.c.l.b16 %v372
    %v1288 = vunpack.c.h.b16 %v372
    %v1289 = vunpack.c.l.b16 %v373
    %v1290 = vunpack.c.h.b16 %v373
    %v1291 = vunpack.c.l.b16 %v374
    %v1292 = vunpack.c.h.b16 %v374
    %v1293 = vunpack.c.l.b16 %v375
    %v1294 = vunpack.c.h.b16 %v375
    %v1295 = vunpack.c.l.b16 %v376
    %v1296 = vunpack.c.h.b16 %v376
    %v1297 = vunpack.c.l.b16 %v377
    %v1298 = vunpack.c.h.b16 %v377
    %v1299 = vunpack.c.l.b16 %v378
    %v1300 = vunpack.c.h.b16 %v378
    %v1301 = vunpack.c.l.b16 %v379
    %v1302 = vunpack.c.h.b16 %v379
    %v1303 = vunpack.c.l.b16 %v380
    %v1304 = vunpack.c.h.b16 %v380
    %v1305 = vunpack.c.l.b16 %v381
    %v1306 = vunpack.c.h.b16 %v381
    %v1307 = vunpack.c.l.b16 %v382
    %v1308 = vunpack.c.h.b16 %v382
    %v1309 = vunpack.c.l.b16 %v383
    %v1310 = vunpack.c.h.b16 %v383
    %v1311 = vunpack.c.l.b16 %v384
    %v1312 = vunpack.c.h.b16 %v384
    %v1313 = vunpack.c.l.b16 %v385
    %v1314 = vunpack.c.h.b16 %v385
    %v1315 = vunpack.c.l.b16 %v386
    %v1316 = vunpack.c.h.b16 %v386
    %v1317 = vunpack.c.l.b16 %v387
    %v1318 = vunpack.c.h.b16 %v387
    %v1319 = vunpack.c.l.b16 %v388
    %v1320 = vunpack.c.h.b16 %v388
    %v1321 = vunpack.c.l.b16 %v389
    %v1322 = vunpack.c.h.b16 %v389
    %v1323 = vunpack.c.l.b16 %v390
    %v1324 = vunpack.c.h.b16 %v390
    %v1325 = vunpack.c.l.b16 %v391
    %v1326 = vunpack.c.h.b16 %v391
    %v1327 = vunpack.c.l.b16 %v392
    %v1328 = vunpack.c.h.b16 %v392
    %v1329 = vunpack.c.l.b16 %v393
    %v1330 = vunpack.c.h.b16 %v393
    %v1331 = vunpack.c.l.b16 %v394
    %v1332 = vunpack.c.h.b16 %v394
    %v1333 = vunpack.c.l.b16 %v395
    %v1334 = vunpack.c.h.b16 %v395
    %v1335 = vunpack.c.l.b16 %v396
    %v1336 = vunpack.c.h.b16 %v396
    %v1337 = vunpack.c.l.b16 %v397
    %v1338 = vunpack.c.h.b16 %v397
    %v1339 = vunpack.c.l.b16 %v398
    %v1340 = vunpack.c.h.b16 %v398
    %v1341 = vunpack.c.l.b16 %v399
    %v1342 = vunpack.c.h.b16 %v399
    %v1343 = vunpack.c.l.b16 %v400
    %v1344 = vunpack.c.h.b16 %v400
    %v1345 = vunpack.c.l.b16 %v401
    %v1346 = vunpack.c.h.b16 %v401
    %v1347 = vunpack.c.l.b16 %v402
    %v1348 = vunpack.c.h.b16 %v402
    %v1349 = vunpack.c.l.b16 %v403
    %v1350 = vunpack.c.h.b16 %v403
    %v1351 = vunpack.c.l.b16 %v404
    %v1352 = vunpack.c.h.b16 %v404
    %v1353 = vunpack.c.l.b16 %v405
    %v1354 = vunpack.c.h.b16 %v405
    %v1355 = vunpack.c.l.b16 %v406
    %v1356 = vunpack.c.h.b16 %v406
    %v1357 = vunpack.c.l.b16 %v407
    %v1358 = vunpack.c.h.b16 %v407
    %v1359 = vunpack.c.l.b16 %v408
    %v1360 = vunpack.c.h.b16 %v408
    %v1361 = vunpack.c.l.b16 %v409
    %v1362 = vunpack.c.h.b16 %v409
    %v1363 = vunpack.c.l.b16 %v410
    %v1364 = vunpack.c.h.b16 %v410
    %v1365 = vunpack.c.l.b16 %v411
    %v1366 = vunpack.c.h.b16 %v411
    %v1367 = vunpack.c.l.b16 %v412
    %v1368 = vunpack.c.h.b16 %v412
    %v1369 = vunpack.c.l.b16 %v413
    %v1370 = vunpack.c.h.b16 %v413
    %v1371 = vunpack.c.l.b16 %v414
    %v1372 = vunpack.c.h.b16 %v414
    %v1373 = vunpack.c.l.b16 %v415
    %v1374 = vunpack.c.h.b16 %v415
    %v1375 = vunpack.c.l.b16 %v416
    %v1376 = vunpack.c.h.b16 %v416
    %v1377 = vunpack.c.l.b16 %v417
    %v1378 = vunpack.c.h.b16 %v417
    %v1379 = vunpack.c.l.b16 %v418
    %v1380 = vunpack.c.h.b16 %v418
    %v1381 = vunpack.c.l.b16 %v419
    %v1382 = vunpack.c.h.b16 %v419
    %v1383 = vunpack.c.l.b16 %v420
    %v1384 = vunpack.c.h.b16 %v420
    %v1385 = vunpack.c.l.b16 %v421
    %v1386 = vunpack.c.h.b16 %v421
    %v1387 = vunpack.c.l.b16 %v422
    %v1388 = vunpack.c.h.b16 %v422
    %v1389 = vunpack.c.l.b16 %v423
    %v1390 = vunpack.c.h.b16 %v423
    %v1391 = vunpack.c.l.b16 %v424
    %v1392 = vunpack.c.h.b16 %v424
    %v1393 = vunpack.c.l.b16 %v425
    %v1394 = vunpack.c.h.b16 %v425
    %v1395 = vunpack.c.l.b16 %v426
    %v1396 = vunpack.c.h.b16 %v426
    %v1397 = vunpack.c.l.b16 %v427
    %v1398 = vunpack.c.h.b16 %v427
    %v1399 = vunpack.c.l.b16 %v428
    %v1400 = vunpack.c.h.b16 %v428
    %v1401 = vunpack.c.l.b16 %v429
    %v1402 = vunpack.c.h.b16 %v429
    %v1403 = vunpack.c.l.b16 %v430
    %v1404 = vunpack.c.h.b16 %v430
    %v1405 = vunpack.c.l.b16 %v431
    %v1406 = vunpack.c.h.b16 %v431
    %v1407 = vunpack.c.l.b16 %v432
    %v1408 = vunpack.c.h.b16 %v432
    %v1409 = vunpack.c.l.b16 %v433
    %v1410 = vunpack.c.h.b16 %v433
    %v1411 = vunpack.c.l.b16 %v434
    %v1412 = vunpack.c.h.b16 %v434
    %v1413 = vunpack.c.l.b16 %v435
    %v1414 = vunpack.c.h.b16 %v435
    %v1415 = vunpack.c.l.b16 %v436
    %v1416 = vunpack.c.h.b16 %v436
    %v1417 = vunpack.c.l.b16 %v437
    %v1418 = vunpack.c.h.b16 %v437
    %v1419 = vunpack.c.l.b16 %v438
    %v1420 = vunpack.c.h.b16 %v438
    %v1421 = vunpack.c.l.b16 %v439
    %v1422 = vunpack.c.h.b16 %v439
    %v1423 = vunpack.c.l.b16 %v440
    %v1424 = vunpack.c.h.b16 %v440
    %v1425 = vunpack.c.l.b16 %v441
    %v1426 = vunpack.c.h.b16 %v441
    %v1427 = vunpack.c.l.b16 %v442
    %v1428 = vunpack.c.h.b16 %v442
    %v1429 = vunpack.c.l.b16 %v443
    %v1430 = vunpack.c.h.b16 %v443
    %v1431 = vunpack.c.l.b16 %v444
    %v1432 = vunpack.c.h.b16 %v444
    %v1433 = vunpack.c.l.b16 %v445
    %v1434 = vunpack.c.h.b16 %v445
    %v1435 = vunpack.c.l.b16 %v446
    %v1436 = vunpack.c.h.b16 %v446
    %v1437 = vunpack.c.l.b16 %v447
    %v1438 = vunpack.c.h.b16 %v447
    %v1439 = vunpack.c.l.b16 %v448
    %v1440 = vunpack.c.h.b16 %v448
    %v1441 = vunpack.c.l.b16 %v449
    %v1442 = vunpack.c.h.b16 %v449
    %v1443 = vunpack.c.l.b16 %v450
    %v1444 = vunpack.c.h.b16 %v450
    %v1445 = vunpack.c.l.b16 %v451
    %v1446 = vunpack.c.h.b16 %v451
    %v1447 = vunpack.c.l.b16 %v452
    %v1448 = vunpack.c.h.b16 %v452
    %v1449 = vunpack.c.l.b16 %v453
    %v1450 = vunpack.c.h.b16 %v453
    %v1451 = vunpack.c.l.b16 %v454
    %v1452 = vunpack.c.h.b16 %v454
    %v1453 = vunpack.c.l.b16 %v455
    %v1454 = vunpack.c.h.b16 %v455
    %v1455 = vunpack.c.l.b16 %v456
    %v1456 = vunpack.c.h.b16 %v456
    %v1457 = vunpack.c.l.b16 %v457
    %v1458 = vunpack.c.h.b16 %v457
    %v1459 = vunpack.c.l.b16 %v458
    %v1460 = vunpack.c.h.b16 %v458
    %v1461 = vunpack.c.l.b16 %v459
    %v1462 = vunpack.c.h.b16 %v459
    %v1463 = vunpack.c.l.b16 %v460
    %v1464 = vunpack.c.h.b16 %v460
    %v1465 = vunpack.c.l.b16 %v461
    %v1466 = vunpack.c.h.b16 %v461
    %v1467 = vunpack.c.l.b16 %v462
    %v1468 = vunpack.c.h.b16 %v462
    %v1469 = vunpack.c.l.b16 %v463
    %v1470 = vunpack.c.h.b16 %v463
    %v1471 = vunpack.c.l.b16 %v464
    %v1472 = vunpack.c.h.b16 %v464
    %v1473 = vunpack.c.l.b16 %v465
    %v1474 = vunpack.c.h.b16 %v465
    %v1475 = vunpack.c.l.b16 %v466
    %v1476 = vunpack.c.h.b16 %v466
    %v1477 = vunpack.c.l.b16 %v467
    %v1478 = vunpack.c.h.b16 %v467
    %v1479 = vunpack.c.l.b16 %v468
    %v1480 = vunpack.c.h.b16 %v468
    %v1481 = vunpack.c.l.b16 %v469
    %v1482 = vunpack.c.h.b16 %v469
    %v1483 = vunpack.c.l.b16 %v470
    %v1484 = vunpack.c.h.b16 %v470
    %v1485 = vunpack.c.l.b16 %v471
    %v1486 = vunpack.c.h.b16 %v471
    %v1487 = vunpack.c.l.b16 %v472
    %v1488 = vunpack.c.h.b16 %v472
    %v1489 = vunpack.c.l.b16 %v473
    %v1490 = vunpack.c.h.b16 %v473
    %v1491 = vunpack.c.l.b16 %v474
    %v1492 = vunpack.c.h.b16 %v474
    %v1493 = vunpack.c.l.b16 %v475
    %v1494 = vunpack.c.h.b16 %v475
    %v1495 = vunpack.c.l.b16 %v476
    %v1496 = vunpack.c.h.b16 %v476
    %v1497 = vunpack.c.l.b16 %v477
    %v1498 = vunpack.c.h.b16 %v477
    %v1499 = vunpack.c.l.b16 %v478
    %v1500 = vunpack.c.h.b16 %v478
    %v1501 = vunpack.c.l.b16 %v479
    %v1502 = vunpack.c.h.b16 %v479
    %v1503 = vunpack.c.l.b16 %v480
    %v1504 = vunpack.c.h.b16 %v480
    %v1505 = vunpack.c.l.b16 %v481
    %v1506 = vunpack.c.h.b16 %v481
    %v1507 = vunpack.c.l.b16 %v482
    %v1508 = vunpack.c.h.b16 %v482
    %v1509 = vunpack.c.l.b16 %v483
    %v1510 = vunpack.c.h.b16 %v483
    %v1511 = vunpack.c.l.b16 %v484
    %v1512 = vunpack.c.h.b16 %v484
    %v1513 = vunpack.c.l.b16 %v485
    %v1514 = vunpack.c.h.b16 %v485
    %v1515 = vunpack.c.l.b16 %v486
    %v1516 = vunpack.c.h.b16 %v486
    %v1517 = vunpack.c.l.b16 %v487
    %v1518 = vunpack.c.h.b16 %v487
    %v1519 = vunpack.c.l.b16 %v488
    %v1520 = vunpack.c.h.b16 %v488
    %v1521 = vunpack.c.l.b16 %v489
    %v1522 = vunpack.c.h.b16 %v489
    %v1523 = vunpack.c.l.b16 %v490
    %v1524 = vunpack.c.h.b16 %v490
    %v1525 = vunpack.c.l.b16 %v491
    %v1526 = vunpack.c.h.b16 %v491
    %v1527 = vunpack.c.l.b16 %v492
    %v1528 = vunpack.c.h.b16 %v492
    %v1529 = vunpack.c.l.b16 %v493
    %v1530 = vunpack.c.h.b16 %v493
    %v1531 = vunpack.c.l.b16 %v494
    %v1532 = vunpack.c.h.b16 %v494
    %v1533 = vunpack.c.l.b16 %v495
    %v1534 = vunpack.c.h.b16 %v495
    %v1535 = vunpack.c.l.b16 %v496
    %v1536 = vunpack.c.h.b16 %v496
    %v1537 = vunpack.c.l.b16 %v497
    %v1538 = vunpack.c.h.b16 %v497
    %v1539 = vunpack.c.l.b16 %v498
    %v1540 = vunpack.c.h.b16 %v498
    %v1541 = vunpack.c.l.b16 %v499
    %v1542 = vunpack.c.h.b16 %v499
    %v1543 = vunpack.c.l.b16 %v500
    %v1544 = vunpack.c.h.b16 %v500
    %v1545 = vunpack.c.l.b16 %v501
    %v1546 = vunpack.c.h.b16 %v501
    %v1547 = vunpack.c.l.b16 %v502
    %v1548 = vunpack.c.h.b16 %v502
    %v1549 = vunpack.c.l.b16 %v503
    %v1550 = vunpack.c.h.b16 %v503
    %v1551 = vunpack.c.l.b16 %v504
    %v1552 = vunpack.c.h.b16 %v504
    %v1553 = vunpack.c.l.b16 %v505
    %v1554 = vunpack.c.h.b16 %v505
    %v1555 = vunpack.c.l.b16 %v506
    %v1556 = vunpack.c.h.b16 %v506
    %v1557 = vunpack.c.l.b16 %v507
    %v1558 = vunpack.c.h.b16 %v507
    %v1559 = vunpack.c.l.b16 %v508
    %v1560 = vunpack.c.h.b16 %v508
    %v1561 = vunpack.c.l.b16 %v509
    %v1562 = vunpack.c.h.b16 %v509
    %v1563 = vunpack.c.l.b16 %v510
    %v1564 = vunpack.c.h.b16 %v510
    %v1565 = vunpack.c.l.b16 %v511
    %v1566 = vunpack.c.h.b16 %v511
    %v1567 = vunpack.c.l.b16 %v512
    %v1568 = vunpack.c.h.b16 %v512
    %v1569 = vunpack.c.l.b16 %v513
    %v1570 = vunpack.c.h.b16 %v513
    %v1571 = vunpack.c.l.b16 %v514
    %v1572 = vunpack.c.h.b16 %v514
    %v1573 = vunpack.c.l.b16 %v515
    %v1574 = vunpack.c.h.b16 %v515
    %v1575 = vunpack.c.l.b16 %v516
    %v1576 = vunpack.c.h.b16 %v516
    %v1577 = vunpack.c.l.b16 %v517
    %v1578 = vunpack.c.h.b16 %v517
    %v1579 = vunpack.c.l.b16 %v518
    %v1580 = vunpack.c.h.b16 %v518
    %v1581 = vunpack.c.l.b16 %v519
    %v1582 = vunpack.c.h.b16 %v519
    %v1583 = vunpack.c.l.b16 %v520
    %v1584 = vunpack.c.h.b16 %v520
    %v1585 = vunpack.c.l.b16 %v521
    %v1586 = vunpack.c.h.b16 %v521
    %v1587 = vunpack.c.l.b16 %v522
    %v1588 = vunpack.c.h.b16 %v522
    %v1589 = vunpack.c.l.b16 %v523
    %v1590 = vunpack.c.h.b16 %v523
    %v1591 = vunpack.c.l.b16 %v524
    %v1592 = vunpack.c.h.b16 %v524
    %v1593 = vunpack.c.l.b16 %v525
    %v1594 = vunpack.c.h.b16 %v525
    %v1595 = vunpack.c.l.b16 %v526
    %v1596 = vunpack.c.h.b16 %v526
    %v1597 = vunpack.c.l.b16 %v527
    %v1598 = vunpack.c.h.b16 %v527
    %v1599 = vunpack.c.l.b16 %v528
    %v1600 = vunpack.c.h.b16 %v528
    %v1601 = vunpack.c.l.b16 %v529
    %v1602 = vunpack.c.h.b16 %v529
    %v1603 = vunpack.c.l.b16 %v530
    %v1604 = vunpack.c.h.b16 %v530
    %v1605 = vunpack.c.l.b16 %v531
    %v1606 = vunpack.c.h.b16 %v531
    %v1607 = vunpack.c.l.b16 %v532
    %v1608 = vunpack.c.h.b16 %v532
    %v1609 = vunpack.c.l.b16 %v533
    %v1610 = vunpack.c.h.b16 %v533
    %v1611 = vunpack.c.l.b16 %v534
    %v1612 = vunpack.c.h.b16 %v534
    %v1613 = vunpack.c.l.b16 %v535
    %v1614 = vunpack.c.h.b16 %v535
    %v1615 = vunpack.c.l.b16 %v536
    %v1616 = vunpack.c.h.b16 %v536
    %v1617 = vunpack.c.l.b16 %v537
    %v1618 = vunpack.c.h.b16 %v537
    %v1619 = vunpack.c.l.b16 %v538
    %v1620 = vunpack.c.h.b16 %v538
    %v1621 = vunpack.c.l.b16 %v539
    %v1622 = vunpack.c.h.b16 %v539
    %v1623 = vunpack.c.l.b16 %v540
    %v1624 = vunpack.c.h.b16 %v540
    %v1625 = vunpack.c.l.b16 %v541
    %v1626 = vunpack.c.h.b16 %v541
    %v1627 = vunpack.c.l.b16 %v542
    %v1628 = vunpack.c.h.b16 %v542
    %v1629 = vunpack.c.l.b16 %v543
    %v1630 = vunpack.c.h.b16 %v543
    %v1631 = vunpack.c.l.b16 %v544
    %v1632 = vunpack.c.h.b16 %v544
    %v1633 = vunpack.c.l.b16 %v545
    %v1634 = vunpack.c.h.b16 %v545
    %v1635 = vunpack.c.l.b16 %v546
    %v1636 = vunpack.c.h.b16 %v546
    %v1637 = vunpack.c.l.b16 %v547
    %v1638 = vunpack.c.h.b16 %v547
    %v1639 = vunpack.c.l.b16 %v548
    %v1640 = vunpack.c.h.b16 %v548
    %v1641 = vunpack.c.l.b16 %v549
    %v1642 = vunpack.c.h.b16 %v549
    %v1643 = vunpack.c.l.b16 %v550
    %v1644 = vunpack.c.h.b16 %v550
    %v1645 = vunpack.c.l.b16 %v551
    %v1646 = vunpack.c.h.b16 %v551
    %v1647 = vunpack.c.l.b16 %v552
    %v1648 = vunpack.c.h.b16 %v552
    %v1649 = vunpack.c.l.b16 %v553
    %v1650 = vunpack.c.h.b16 %v553
    %v1651 = vunpack.c.l.b16 %v554
    %v1652 = vunpack.c.h.b16 %v554
    %v1653 = vunpack.c.l.b16 %v555
    %v1654 = vunpack.c.h.b16 %v555
    %v1655 = vunpack.c.l.b16 %v556
    %v1656 = vunpack.c.h.b16 %v556
    %v1657 = vunpack.c.l.b16 %v557
    %v1658 = vunpack.c.h.b16 %v557
    %v1659 = vunpack.c.l.b16 %v558
    %v1660 = vunpack.c.h.b16 %v558
    %v1661 = vunpack.c.l.b16 %v559
    %v1662 = vunpack.c.h.b16 %v559
    %v1663 = vunpack.c.l.b16 %v560
    %v1664 = vunpack.c.h.b16 %v560
    %v1665 = vunpack.c.l.b16 %v561
    %v1666 = vunpack.c.h.b16 %v561
    %v1667 = vunpack.c.l.b16 %v562
    %v1668 = vunpack.c.h.b16 %v562
    %v1669 = vunpack.c.l.b16 %v563
    %v1670 = vunpack.c.h.b16 %v563
    %v1671 = vunpack.c.l.b16 %v564
    %v1672 = vunpack.c.h.b16 %v564
    %v1673 = vunpack.c.l.b16 %v565
    %v1674 = vunpack.c.h.b16 %v565
    %v1675 = vunpack.c.l.b16 %v566
    %v1676 = vunpack.c.h.b16 %v566
    %v1677 = vunpack.c.l.b16 %v567
    %v1678 = vunpack.c.h.b16 %v567
    %v1679 = vunpack.c.l.b16 %v568
    %v1680 = vunpack.c.h.b16 %v568
    %v1681 = vunpack.c.l.b16 %v569
    %v1682 = vunpack.c.h.b16 %v569
    %v1683 = vunpack.c.l.b16 %v570
    %v1684 = vunpack.c.h.b16 %v570
    %v1685 = vunpack.c.l.b16 %v571
    %v1686 = vunpack.c.h.b16 %v571
    %v1687 = vunpack.c.l.b16 %v572
    %v1688 = vunpack.c.h.b16 %v572
    %v1689 = vunpack.c.l.b16 %v573
    %v1690 = vunpack.c.h.b16 %v573
    %v1691 = vunpack.c.l.b16 %v574
    %v1692 = vunpack.c.h.b16 %v574
    %v1693 = vunpack.c.l.b16 %v575
    %v1694 = vunpack.c.h.b16 %v575
    %v1695 = vunpack.c.l.b16 %v576
    %v1696 = vunpack.c.h.b16 %v576
    %v1697 = vunpack.c.l.b16 %v577
    %v1698 = vunpack.c.h.b16 %v577
    %v1699 = vunpack.c.l.b16 %v578
    %v1700 = vunpack.c.h.b16 %v578
    %v1701 = vunpack.c.l.b16 %v579
    %v1702 = vunpack.c.h.b16 %v579
    %v1703 = vunpack.c.l.b16 %v580
    %v1704 = vunpack.c.h.b16 %v580
    %v1705 = vunpack.c.l.b16 %v581
    %v1706 = vunpack.c.h.b16 %v581
    %v1707 = vunpack.c.l.b16 %v582
    %v1708 = vunpack.c.h.b16 %v582
    %v1709 = vunpack.c.l.b16 %v583
    %v1710 = vunpack.c.h.b16 %v583
    %v1711 = vunpack.c.l.b16 %v584
    %v1712 = vunpack.c.h.b16 %v584
    %v1713 = vunpack.c.l.b16 %v585
    %v1714 = vunpack.c.h.b16 %v585
    %v1715 = vunpack.c.l.b16 %v586
    %v1716 = vunpack.c.h.b16 %v586
    %v1717 = vunpack.c.l.b16 %v587
    %v1718 = vunpack.c.h.b16 %v587
    %v1719 = vunpack.c.l.b16 %v588
    %v1720 = vunpack.c.h.b16 %v588
    %v1721 = vunpack.c.l.b16 %v589
    %v1722 = vunpack.c.h.b16 %v589
    %v1723 = vunpack.c.l.b16 %v590
    %v1724 = vunpack.c.h.b16 %v590
    %v1725 = vunpack.c.l.b16 %v591
    %v1726 = vunpack.c.h.b16 %v591
    %v1727 = vunpack.c.l.b16 %v592
    %v1728 = vunpack.c.h.b16 %v592
    %v1729 = vunpack.c.l.b16 %v593
    %v1730 = vunpack.c.h.b16 %v593
    %v1731 = vunpack.c.l.b16 %v594
    %v1732 = vunpack.c.h.b16 %v594
    %v1733 = vunpack.c.l.b16 %v595
    %v1734 = vunpack.c.h.b16 %v595
    %v1735 = vunpack.c.l.b16 %v596
    %v1736 = vunpack.c.h.b16 %v596
    %v1737 = vunpack.c.l.b16 %v597
    %v1738 = vunpack.c.h.b16 %v597
    %v1739 = vunpack.c.l.b16 %v598
    %v1740 = vunpack.c.h.b16 %v598
    %v1741 = vunpack.c.l.b16 %v599
    %v1742 = vunpack.c.h.b16 %v599
    %v1743 = vunpack.c.l.b16 %v600
    %v1744 = vunpack.c.h.b16 %v600
    %v1745 = vunpack.c.l.b16 %v601
    %v1746 = vunpack.c.h.b16 %v601
    %v1747 = vunpack.c.l.b16 %v602
    %v1748 = vunpack.c.h.b16 %v602
    %v1749 = vunpack.c.l.b16 %v603
    %v1750 = vunpack.c.h.b16 %v603
    %v1751 = vunpack.c.l.b16 %v604
    %v1752 = vunpack.c.h.b16 %v604
    %v1753 = vunpack.c.l.b16 %v605
    %v1754 = vunpack.c.h.b16 %v605
    %v1755 = vunpack.c.l.b16 %v606
    %v1756 = vunpack.c.h.b16 %v606
    %v1757 = vunpack.c.l.b16 %v607
    %v1758 = vunpack.c.h.b16 %v607
    %v1759 = vunpack.c.l.b16 %v608
    %v1760 = vunpack.c.h.b16 %v608
    %v1761 = vunpack.c.l.b16 %v609
    %v1762 = vunpack.c.h.b16 %v609
    %v1763 = vunpack.c.l.b16 %v610
    %v1764 = vunpack.c.h.b16 %v610
    %v1765 = vunpack.c.l.b16 %v611
    %v1766 = vunpack.c.h.b16 %v611
    %v1767 = vunpack.c.l.b16 %v612
    %v1768 = vunpack.c.h.b16 %v612
    %v1769 = vunpack.c.l.b16 %v613
    %v1770 = vunpack.c.h.b16 %v613
    %v1771 = vunpack.c.l.b16 %v614
    %v1772 = vunpack.c.h.b16 %v614
    %v1773 = vunpack.c.l.b16 %v615
    %v1774 = vunpack.c.h.b16 %v615
    %v1775 = vunpack.c.l.b16 %v616
    %v1776 = vunpack.c.h.b16 %v616
    %v1777 = vunpack.c.l.b16 %v617
    %v1778 = vunpack.c.h.b16 %v617
    %v1779 = vunpack.c.l.b16 %v618
    %v1780 = vunpack.c.h.b16 %v618
    %v1781 = vunpack.c.l.b16 %v619
    %v1782 = vunpack.c.h.b16 %v619
    %v1783 = vunpack.c.l.b16 %v620
    %v1784 = vunpack.c.h.b16 %v620
    %v1785 = vpack.c.b16 %v1019, %v1017
    %v1786 = vpack.c.b16 %v1020, %v1018
    %v1787 = vpack.c.b16 %v1023, %v1021
    %v1788 = vpack.c.b16 %v1024, %v1022
    %v1789 = vpack.c.b16 %v1027, %v1025
    %v1790 = vpack.c.b16 %v1028, %v1026
    %v1791 = vpack.c.b16 %v1031, %v1029
    %v1792 = vpack.c.b16 %v1032, %v1030
    %v1793 = vpack.c.b16 %v1035, %v1033
    %v1794 = vpack.c.b16 %v1036, %v1034
    %v1795 = vpack.c.b16 %v1039, %v1037
    %v1796 = vpack.c.b16 %v1040, %v1038
    %v1797 = vpack.c.b16 %v1043, %v1041
    %v1798 = vpack.c.b16 %v1044, %v1042
    %v1799 = vpack.c.b16 %v1047, %v1045
    %v1800 = vpack.c.b16 %v1048, %v1046
    %v1801 = vpack.c.b16 %v1051, %v1049
    %v1802 = vpack.c.b16 %v1052, %v1050
    %v1803 = vpack.c.b16 %v1055, %v1053
    %v1804 = vpack.c.b16 %v1056, %v1054
    %v1805 = vpack.c.b16 %v1059, %v1057
    %v1806 = vpack.c.b16 %v1060, %v1058
    %v1807 = vpack.c.b16 %v1063, %v1061
    %v1808 = vpack.c.b16 %v1064, %v1062
    %v1809 = vpack.c.b16 %v1067, %v1065
    %v1810 = vpack.c.b16 %v1068, %v1066
    %v1811 = vpack.c.b16 %v1071, %v1069
    %v1812 = vpack.c.b16 %v1072, %v1070
    %v1813 = vpack.c.b16 %v1075, %v1073
    %v1814 = vpack.c.b16 %v1076, %v1074
    %v1815 = vpack.c.b16 %v1079, %v1077
    %v1816 = vpack.c.b16 %v1080, %v1078
    %v1817 = vpack.c.b16 %v1083, %v1081
    %v1818 = vpack.c.b16 %v1084, %v1082
    %v1819 = vpack.c.b16 %v1087, %v1085
    %v1820 = vpack.c.b16 %v1088, %v1086
    %v1821 = vpack.c.b16 %v1091, %v1089
    %v1822 = vpack.c.b16 %v1092, %v1090
    %v1823 = vpack.c.b16 %v1095, %v1093
    %v1824 = vpack.c.b16 %v1096, %v1094
    %v1825 = vpack.c.b16 %v1099, %v1097
    %v1826 = vpack.c.b16 %v1100, %v1098
    %v1827 = vpack.c.b16 %v1103, %v1101
    %v1828 = vpack.c.b16 %v1104, %v1102
    %v1829 = vpack.c.b16 %v1107, %v1105
    %v1830 = vpack.c.b16 %v1108, %v1106
    %v1831 = vpack.c.b16 %v1111, %v1109
    %v1832 = vpack.c.b16 %v1112, %v1110
    %v1833 = vpack.c.b16 %v1115, %v1113
    %v1834 = vpack.c.b16 %v1116, %v1114
    %v1835 = vpack.c.b16 %v1119, %v1117
    %v1836 = vpack.c.b16 %v1120, %v1118
    %v1837 = vpack.c.b16 %v1123, %v1121
    %v1838 = vpack.c.b16 %v1124, %v1122
    %v1839 = vpack.c.b16 %v1127, %v1125
    %v1840 = vpack.c.b16 %v1128, %v1126
    %v1841 = vpack.c.b16 %v1131, %v1129
    %v1842 = vpack.c.b16 %v1132, %v1130
    %v1843 = vpack.c.b16 %v1135, %v1133
    %v1844 = vpack.c.b16 %v1136, %v1134
    %v1845 = vpack.c.b16 %v1139, %v1137
    %v1846 = vpack.c.b16 %v1140, %v1138
    %v1847 = vpack.c.b16 %v1143, %v1141
    %v1848 = vpack.c.b16 %v1144, %v1142
    %v1849 = vpack.c.b16 %v1147, %v1145
    %v1850 = vpack.c.b16 %v1148, %v1146
    %v1851 = vpack.c.b16 %v1151, %v1149
    %v1852 = vpack.c.b16 %v1152, %v1150
    %v1853 = vpack.c.b16 %v1155, %v1153
    %v1854 = vpack.c.b16 %v1156, %v1154
    %v1855 = vpack.c.b16 %v1159, %v1157
    %v1856 = vpack.c.b16 %v1160, %v1158
    %v1857 = vpack.c.b16 %v1163, %v1161
    %v1858 = vpack.c.b16 %v1164, %v1162
    %v1859 = vpack.c.b16 %v1167, %v1165
    %v1860 = vpack.c.b16 %v1168, %v1166
    %v1861 = vpack.c.b16 %v1171, %v1169
    %v1862 = vpack.c.b16 %v1172, %v1170
    %v1863 = vpack.c.b16 %v1175, %v1173
    %v1864 = vpack.c.b16 %v1176, %v1174
    %v1865 = vpack.c.b16 %v1179, %v1177
    %v1866 = vpack.c.b16 %v1180, %v1178
    %v1867 = vpack.c.b16 %v1183, %v1181
    %v1868 = vpack.c.b16 %v1184, %v1182
    %v1869 = vpack.c.b16 %v1187, %v1185
    %v1870 = vpack.c.b16 %v1188, %v1186
    %v1871 = vpack.c.b16 %v1191, %v1189
    %v1872 = vpack.c.b16 %v1192, %v1190
    %v1873 = vpack.c.b16 %v1195, %v1193
    %v1874 = vpack.c.b16 %v1196, %v1194
    %v1875 = vpack.c.b16 %v1199, %v1197
    %v1876 = vpack.c.b16 %v1200, %v1198
    %v1877 = vpack.c.b16 %v1203, %v1201
    %v1878 = vpack.c.b16 %v1204, %v1202
    %v1879 = vpack.c.b16 %v1207, %v1205
    %v1880 = vpack.c.b16 %v1208, %v1206
    %v1881 = vpack.c.b16 %v1211, %v1209
    %v1882 = vpack.c.b16 %v1212, %v1210
    %v1883 = vpack.c.b16 %v1215, %v1213
    %v1884 = vpack.c.b16 %v1216, %v1214
    %v1885 = vpack.c.b16 %v1219, %v1217
    %v1886 = vpack.c.b16 %v1220, %v1218
    %v1887 = vpack.c.b16 %v1223, %v1221
    %v1888 = vpack.c.b16 %v1224, %v1222
    %v1889 = vpack.c.b16 %v1227, %v1225
    %v1890 = vpack.c.b16 %v1228, %v1226
    %v1891 = vpack.c.b16 %v1231, %v1229
    %v1892 = vpack.c.b16 %v1232, %v1230
    %v1893 = vpack.c.b16 %v1235, %v1233
    %v1894 = vpack.c.b16 %v1236, %v1234
    %v1895 = vpack.c.b16 %v1239, %v1237
    %v1896 = vpack.c.b16 %v1240, %v1238
    %v1897 = vpack.c.b16 %v1243, %v1241
    %v1898 = vpack.c.b16 %v1244, %v1242
    %v1899 = vpack.c.b16 %v1247, %v1245
    %v1900 = vpack.c.b16 %v1248, %v1246
    %v1901 = vpack.c.b16 %v1251, %v1249
    %v1902 = vpack.c.b16 %v1252, %v1250
    %v1903 = vpack.c.b16 %v1255, %v1253
    %v1904 = vpack.c.b16 %v1256, %v1254
    %v1905 = vpack.c.b16 %v1259, %v1257
    %v1906 = vpack.c.b16 %v1260, %v1258
    %v1907 = vpack.c.b16 %v1263, %v1261
    %v1908 = vpack.c.b16 %v1264, %v1262
    %v1909 = vpack.c.b16 %v1267, %v1265
    %v1910 = vpack.c.b16 %v1268, %v1266
    %v1911 = vpack.c.b16 %v1271, %v1269
    %v1912 = vpack.c.b16 %v1272, %v1270
    %v1913 = vpack.c.b16 %v1275, %v1273
    %v1914 = vpack.c.b16 %v1276, %v1274
    %v1915 = vpack.c.b16 %v1279, %v1277
    %v1916 = vpack.c.b16 %v1280, %v1278
    %v1917 = vpack.c.b16 %v1283, %v1281
    %v1918 = vpack.c.b16 %v1284, %v1282
    %v1919 = vpack.c.b16 %v1287, %v1285
    %v1920 = vpack.c.b16 %v1288, %v1286
    %v1921 = vpack.c.b16 %v1291, %v1289
    %v1922 = vpack.c.b16 %v1292, %v1290
    %v1923 = vpack.c.b16 %v1295, %v1293
    %v1924 = vpack.c.b16 %v1296, %v1294
    %v1925 = vpack.c.b16 %v1299, %v1297
    %v1926 = vpack.c.b16 %v1300, %v1298
    %v1927 = vpack.c.b16 %v1303, %v1301
    %v1928 = vpack.c.b16 %v1304, %v1302
    %v1929 = vpack.c.b16 %v1307, %v1305
    %v1930 = vpack.c.b16 %v1308, %v1306
    %v1931 = vpack.c.b16 %v1311, %v1309
    %v1932 = vpack.c.b16 %v1312, %v1310
    %v1933 = vpack.c.b16 %v1315, %v1313
    %v1934 = vpack.c.b16 %v1316, %v1314
    %v1935 = vpack.c.b16 %v1319, %v1317
    %v1936 = vpack.c.b16 %v1320, %v1318
    %v1937 = vpack.c.b16 %v1323, %v1321
    %v1938 = vpack.c.b16 %v1324, %v1322
    %v1939 = vpack.c.b16 %v1327, %v1325
    %v1940 = vpack.c.b16 %v1328, %v1326
    %v1941 = vpack.c.b16 %v1331, %v1329
    %v1942 = vpack.c.b16 %v1332, %v1330
    %v1943 = vpack.c.b16 %v1335, %v1333
    %v1944 = vpack.c.b16 %v1336, %v1334
    %v1945 = vpack.c.b16 %v1339, %v1337
    %v1946 = vpack.c.b16 %v1340, %v1338
    %v1947 = vpack.c.b16 %v1343, %v1341
    %v1948 = vpack.c.b16 %v1344, %v1342
    %v1949 = vpack.c.b16 %v1347, %v1345
    %v1950 = vpack.c.b16 %v1348, %v1346
    %v1951 = vpack.c.b16 %v1351, %v1349
    %v1952 = vpack.c.b16 %v1352, %v1350
    %v1953 = vpack.c.b16 %v1355, %v1353
    %v1954 = vpack.c.b16 %v1356, %v1354
    %v1955 = vpack.c.b16 %v1359, %v1357
    %v1956 = vpack.c.b16 %v1360, %v1358
    %v1957 = vpack.c.b16 %v1363, %v1361
    %v1958 = vpack.c.b16 %v1364, %v1362
    %v1959 = vpack.c.b16 %v1367, %v1365
    %v1960 = vpack.c.b16 %v1368, %v1366
    %v1961 = vpack.c.b16 %v1371, %v1369
    %v1962 = vpack.c.b16 %v1372, %v1370
    %v1963 = vpack.c.b16 %v1375, %v1373
    %v1964 = vpack.c.b16 %v1376, %v1374
    %v1965 = vpack.c.b16 %v1379, %v1377
    %v1966 = vpack.c.b16 %v1380, %v1378
    %v1967 = vpack.c.b16 %v1383, %v1381
    %v1968 = vpack.c.b16 %v1384, %v1382
    %v1969 = vpack.c.b16 %v1387, %v1385
    %v1970 = vpack.c.b16 %v1388, %v1386
    %v1971 = vpack.c.b16 %v1391, %v1389
    %v1972 = vpack.c.b16 %v1392, %v1390
    %v1973 = vpack.c.b16 %v1395, %v1393
    %v1974 = vpack.c.b16 %v1396, %v1394
    %v1975 = vpack.c.b16 %v1399, %v1397
    %v1976 = vpack.c.b16 %v1400, %v1398
    %v1977 = vpack.c.b16 %v1403, %v1401
    %v1978 = vpack.c.b16 %v1404, %v1402
    %v1979 = vpack.c.b16 %v1407, %v1405
    %v1980 = vpack.c.b16 %v1408, %v1406
    %v1981 = vpack.c.b16 %v1411, %v1409
    %v1982 = vpack.c.b16 %v1412, %v1410
    %v1983 = vpack.c.b16 %v1415, %v1413
    %v1984 = vpack.c.b16 %v1416, %v1414
    %v1985 = vpack.c.b16 %v1419, %v1417
    %v1986 = vpack.c.b16 %v1420, %v1418
    %v1987 = vpack.c.b16 %v1423, %v1421
    %v1988 = vpack.c.b16 %v1424, %v1422
    %v1989 = vpack.c.b16 %v1427, %v1425
    %v1990 = vpack.c.b16 %v1428, %v1426
    %v1991 = vpack.c.b16 %v1431, %v1429
    %v1992 = vpack.c.b16 %v1432, %v1430
    %v1993 = vpack.c.b16 %v1435, %v1433
    %v1994 = vpack.c.b16 %v1436, %v1434
    %v1995 = vpack.c.b16 %v1439, %v1437
    %v1996 = vpack.c.b16 %v1440, %v1438
    %v1997 = vpack.c.b16 %v1443, %v1441
    %v1998 = vpack.c.b16 %v1444, %v1442
    %v1999 = vpack.c.b16 %v1447, %v1445
    %v2000 = vpack.c.b16 %v1448, %v1446
    %v2001 = vpack.c.b16 %v1451, %v1449
    %v2002 = vpack.c.b16 %v1452, %v1450
    %v2003 = vpack.c.b16 %v1455, %v1453
    %v2004 = vpack.c.b16 %v1456, %v1454
    %v2005 = vpack.c.b16 %v1459, %v1457
    %v2006 = vpack.c.b16 %v1460, %v1458
    %v2007 = vpack.c.b16 %v1463, %v1461
    %v2008 = vpack.c.b16 %v1464, %v1462
    %v2009 = vpack.c.b16 %v1467, %v1465
    %v2010 = vpack.c.b16 %v1468, %v1466
    %v2011 = vpack.c.b16 %v1471, %v1469
    %v2012 = vpack.c.b16 %v1472, %v1470
    %v2013 = vpack.c.b16 %v1475, %v1473
    %v2014 = vpack.c.b16 %v1476, %v1474
    %v2015 = vpack.c.b16 %v1479, %v1477
    %v2016 = vpack.c.b16 %v1480, %v1478
    %v2017 = vpack.c.b16 %v1483, %v1481
    %v2018 = vpack.c.b16 %v1484, %v1482
    %v2019 = vpack.c.b16 %v1487, %v1485
    %v2020 = vpack.c.b16 %v1488, %v1486
    %v2021 = vpack.c.b16 %v1491, %v1489
    %v2022 = vpack.c.b16 %v1492, %v1490
    %v2023 = vpack.c.b16 %v1495, %v1493
    %v2024 = vpack.c.b16 %v1496, %v1494
    %v2025 = vpack.c.b16 %v1499, %v1497
    %v2026 = vpack.c.b16 %v1500, %v1498
    %v2027 = vpack.c.b16 %v1503, %v1501
    %v2028 = vpack.c.b16 %v1504, %v1502
    %v2029 = vpack.c.b16 %v1507, %v1505
    %v2030 = vpack.c.b16 %v1508, %v1506
    %v2031 = vpack.c.b16 %v1511, %v1509
    %v2032 = vpack.c.b16 %v1512, %v1510
    %v2033 = vpack.c.b16 %v1515, %v1513
    %v2034 = vpack.c.b16 %v1516, %v1514
    %v2035 = vpack.c.b16 %v1519, %v1517
    %v2036 = vpack.c.b16 %v1520, %v1518
    %v2037 = vpack.c.b16 %v1523, %v1521
    %v2038 = vpack.c.b16 %v1524, %v1522
    %v2039 = vpack.c.b16 %v1527, %v1525
    %v2040 = vpack.c.b16 %v1528, %v1526
    %v2041 = vpack.c.b16 %v1531, %v1529
    %v2042 = vpack.c.b16 %v1532, %v1530
    %v2043 = vpack.c.b16 %v1535, %v1533
    %v2044 = vpack.c.b16 %v1536, %v1534
    %v2045 = vpack.c.b16 %v1539, %v1537
    %v2046 = vpack.c.b16 %v1540, %v1538
    %v2047 = vpack.c.b16 %v1543, %v1541
    %v2048 = vpack.c.b16 %v1544, %v1542
    %v2049 = vpack.c.b16 %v1547, %v1545
    %v2050 = vpack.c.b16 %v1548, %v1546
    %v2051 = vpack.c.b16 %v1551, %v1549
    %v2052 = vpack.c.b16 %v1552, %v1550
    %v2053 = vpack.c.b16 %v1555, %v1553
    %v2054 = vpack.c.b16 %v1556, %v1554
    %v2055 = vpack.c.b16 %v1559, %v1557
    %v2056 = vpack.c.b16 %v1560, %v1558
    %v2057 = vpack.c.b16 %v1563, %v1561
    %v2058 = vpack.c.b16 %v1564, %v1562
    %v2059 = vpack.c.b16 %v1567, %v1565
    %v2060 = vpack.c.b16 %v1568, %v1566
    %v2061 = vpack.c.b16 %v1571, %v1569
    %v2062 = vpack.c.b16 %v1572, %v1570
    %v2063 = vpack.c.b16 %v1575, %v1573
    %v2064 = vpack.c.b16 %v1576, %v1574
    %v2065 = vpack.c.b16 %v1579, %v1577
    %v2066 = vpack.c.b16 %v1580, %v1578
    %v2067 = vpack.c.b16 %v1583, %v1581
    %v2068 = vpack.c.b16 %v1584, %v1582
    %v2069 = vpack.c.b16 %v1587, %v1585
    %v2070 = vpack.c.b16 %v1588, %v1586
    %v2071 = vpack.c.b16 %v1591, %v1589
    %v2072 = vpack.c.b16 %v1592, %v1590
    %v2073 = vpack.c.b16 %v1595, %v1593
    %v2074 = vpack.c.b16 %v1596, %v1594
    %v2075 = vpack.c.b16 %v1599, %v1597
    %v2076 = vpack.c.b16 %v1600, %v1598
    %v2077 = vpack.c.b16 %v1603, %v1601
    %v2078 = vpack.c.b16 %v1604, %v1602
    %v2079 = vpack.c.b16 %v1607, %v1605
    %v2080 = vpack.c.b16 %v1608, %v1606
    %v2081 = vpack.c.b16 %v1611, %v1609
    %v2082 = vpack.c.b16 %v1612, %v1610
    %v2083 = vpack.c.b16 %v1615, %v1613
    %v2084 = vpack.c.b16 %v1616, %v1614
    %v2085 = vpack.c.b16 %v1619, %v1617
    %v2086 = vpack.c.b16 %v1620, %v1618
    %v2087 = vpack.c.b16 %v1623, %v1621
    %v2088 = vpack.c.b16 %v1624, %v1622
    %v2089 = vpack.c.b16 %v1627, %v1625
    %v2090 = vpack.c.b16 %v1628, %v1626
    %v2091 = vpack.c.b16 %v1631, %v1629
    %v2092 = vpack.c.b16 %v1632, %v1630
    %v2093 = vpack.c.b16 %v1635, %v1633
    %v2094 = vpack.c.b16 %v1636, %v1634
    %v2095 = vpack.c.b16 %v1639, %v1637
    %v2096 = vpack.c.b16 %v1640, %v1638
    %v2097 = vpack.c.b16 %v1643, %v1641
    %v2098 = vpack.c.b16 %v1644, %v1642
    %v2099 = vpack.c.b16 %v1647, %v1645
    %v2100 = vpack.c.b16 %v1648, %v1646
    %v2101 = vpack.c.b16 %v1651, %v1649
    %v2102 = vpack.c.b16 %v1652, %v1650
    %v2103 = vpack.c.b16 %v1655, %v1653
    %v2104 = vpack.c.b16 %v1656, %v1654
    %v2105 = vpack.c.b16 %v1659, %v1657
    %v2106 = vpack.c.b16 %v1660, %v1658
    %v2107 = vpack.c.b16 %v1663, %v1661
    %v2108 = vpack.c.b16 %v1664, %v1662
    %v2109 = vpack.c.b16 %v1667, %v1665
    %v2110 = vpack.c.b16 %v1668, %v1666
    %v2111 = vpack.c.b16 %v1671, %v1669
    %v2112 = vpack.c.b16 %v1672, %v1670
    %v2113 = vpack.c.b16 %v1675, %v1673
    %v2114 = vpack.c.b16 %v1676, %v1674
    %v2115 = vpack.c.b16 %v1679, %v1677
    %v2116 = vpack.c.b16 %v1680, %v1678
    %v2117 = vpack.c.b16 %v1683, %v1681
    %v2118 = vpack.c.b16 %v1684, %v1682
    %v2119 = vpack.c.b16 %v1687, %v1685
    %v2120 = vpack.c.b16 %v1688, %v1686
    %v2121 = vpack.c.b16 %v1691, %v1689
    %v2122 = vpack.c.b16 %v1692, %v1690
    %v2123 = vpack.c.b16 %v1695, %v1693
    %v2124 = vpack.c.b16 %v1696, %v1694
    %v2125 = vpack.c.b16 %v1699, %v1697
    %v2126 = vpack.c.b16 %v1700, %v1698
    %v2127 = vpack.c.b16 %v1703, %v1701
    %v2128 = vpack.c.b16 %v1704, %v1702
    %v2129 = vpack.c.b16 %v1707, %v1705
    %v2130 = vpack.c.b16 %v1708, %v1706
    %v2131 = vpack.c.b16 %v1711, %v1709
    %v2132 = vpack.c.b16 %v1712, %v1710
    %v2133 = vpack.c.b16 %v1715, %v1713
    %v2134 = vpack.c.b16 %v1716, %v1714
    %v2135 = vpack.c.b16 %v1719, %v1717
    %v2136 = vpack.c.b16 %v1720, %v1718
    %v2137 = vpack.c.b16 %v1723, %v1721
    %v2138 = vpack.c.b16 %v1724, %v1722
    %v2139 = vpack.c.b16 %v1727, %v1725
    %v2140 = vpack.c.b16 %v1728, %v1726
    %v2141 = vpack.c.b16 %v1731, %v1729
    %v2142 = vpack.c.b16 %v1732, %v1730
    %v2143 = vpack.c.b16 %v1735, %v1733
    %v2144 = vpack.c.b16 %v1736, %v1734
    %v2145 = vpack.c.b16 %v1739, %v1737
    %v2146 = vpack.c.b16 %v1740, %v1738
    %v2147 = vpack.c.b16 %v1743, %v1741
    %v2148 = vpack.c.b16 %v1744, %v1742
    %v2149 = vpack.c.b16 %v1747, %v1745
    %v2150 = vpack.c.b16 %v1748, %v1746
    %v2151 = vpack.c.b16 %v1751, %v1749
    %v2152 = vpack.c.b16 %v1752, %v1750
    %v2153 = vpack.c.b16 %v1755, %v1753
    %v2154 = vpack.c.b16 %v1756, %v1754
    %v2155 = vpack.c.b16 %v1759, %v1757
    %v2156 = vpack.c.b16 %v1760, %v1758
    %v2157 = vpack.c.b16 %v1763, %v1761
    %v2158 = vpack.c.b16 %v1764, %v1762
    %v2159 = vpack.c.b16 %v1767, %v1765
    %v2160 = vpack.c.b16 %v1768, %v1766
    %v2161 = vpack.c.b16 %v1771, %v1769
    %v2162 = vpack.c.b16 %v1772, %v1770
    %v2163 = vpack.c.b16 %v1775, %v1773
    %v2164 = vpack.c.b16 %v1776, %v1774
    %v2165 = vpack.c.b16 %v1779, %v1777
    %v2166 = vpack.c.b16 %v1780, %v1778
    %v2167 = vpack.c.b16 %v1783, %v1781
    %v2168 = vpack.c.b16 %v1784, %v1782
    %2553 = vmatprep.subr.bf16.mxu0 %v1800
    %2554 = vmatpush1.bf16.msra.mxu0 %v1799
    %2555 = vmatprep.subr.bf16.mxu0 %v1798
    %2556 = vmatpush1.bf16.msra.mxu0 %v1797
    %2557 = vmatprep.subr.bf16.mxu0 %v1796
    %2558 = vmatpush1.bf16.msra.mxu0 %v1795
    %2559 = vmatprep.subr.bf16.mxu0 %v1794
    %2560 = vmatpush1.bf16.msra.mxu0 %v1793
    %2561 = vmatprep.subr.bf16.mxu0 %v1792
    %2562 = vmatpush1.bf16.msra.mxu0 %v1791
    %2563 = vmatprep.subr.bf16.mxu0 %v1790
    %2564 = vmatpush1.bf16.msra.mxu0 %v1789
    %2565 = vmatprep.subr.bf16.mxu0 %v1788
    %2566 = vmatpush1.bf16.msra.mxu0 %v1787
    %2567 = vmatprep.subr.bf16.mxu0 %v1786
    %2568 = vmatpush1.bf16.msra.mxu0 %v1785
    %2569 = vmatprep.subr.bf16.mxu0 %v1816
    %2570 = vmatpush2.bf16.msra.mxu0 %v1815
    %2571 = vmatprep.subr.bf16.mxu0 %v1814
    %2572 = vmatpush2.bf16.msra.mxu0 %v1813
    %2573 = vmatprep.subr.bf16.mxu0 %v1812
    %2574 = vmatpush2.bf16.msra.mxu0 %v1811
    %2575 = vmatprep.subr.bf16.mxu0 %v1810
    %2576 = vmatpush2.bf16.msra.mxu0 %v1809
    %2577 = vmatprep.subr.bf16.mxu0 %v1808
    %2578 = vmatpush2.bf16.msra.mxu0 %v1807
    %2579 = vmatprep.subr.bf16.mxu0 %v1806
    %2580 = vmatpush2.bf16.msra.mxu0 %v1805
    %2581 = vmatprep.subr.bf16.mxu0 %v1804
    %2582 = vmatpush2.bf16.msra.mxu0 %v1803
    %2583 = vmatprep.subr.bf16.mxu0 %v1802
    %2584 = vmatpush2.bf16.msra.mxu0 %v1801
    %2585 = vmatprep.mubr.bf16.mxu0 %v214
    %2586 = vmatmul.mubr.bf16.gmra.mxu0 %v213
    %v2587 = vpop.f32.mrf.mxu0
    %v2588 = vadd.f32 %v626, %v2587
    %v2589 = vpop.f32.mrf.mxu0
    %v2590 = vadd.f32 %v630, %v2589
    %v2591 = vpop.f32.mrf.mxu0
    %v2592 = vadd.f32 %v626, %v2591
    %v2593 = vpop.f32.mrf.mxu0
    %v2594 = vadd.f32 %v630, %v2593
    %2595 = vdwg.mxu0
    %2596 = vmatprep.subr.bf16.mxu0 %v1832
    %2597 = vmatpush1.bf16.msra.mxu0 %v1831
    %2598 = vmatprep.subr.bf16.mxu0 %v1830
    %2599 = vmatpush1.bf16.msra.mxu0 %v1829
    %2600 = vmatprep.subr.bf16.mxu0 %v1828
    %2601 = vmatpush1.bf16.msra.mxu0 %v1827
    %2602 = vmatprep.subr.bf16.mxu0 %v1826
    %2603 = vmatpush1.bf16.msra.mxu0 %v1825
    %2604 = vmatprep.subr.bf16.mxu0 %v1824
    %2605 = vmatpush1.bf16.msra.mxu0 %v1823
    %2606 = vmatprep.subr.bf16.mxu0 %v1822
    %2607 = vmatpush1.bf16.msra.mxu0 %v1821
    %2608 = vmatprep.subr.bf16.mxu0 %v1820
    %2609 = vmatpush1.bf16.msra.mxu0 %v1819
    %2610 = vmatprep.subr.bf16.mxu0 %v1818
    %2611 = vmatpush1.bf16.msra.mxu0 %v1817
    %2612 = vmatprep.subr.bf16.mxu0 %v1848
    %2613 = vmatpush2.bf16.msra.mxu0 %v1847
    %2614 = vmatprep.subr.bf16.mxu0 %v1846
    %2615 = vmatpush2.bf16.msra.mxu0 %v1845
    %2616 = vmatprep.subr.bf16.mxu0 %v1844
    %2617 = vmatpush2.bf16.msra.mxu0 %v1843
    %2618 = vmatprep.subr.bf16.mxu0 %v1842
    %2619 = vmatpush2.bf16.msra.mxu0 %v1841
    %2620 = vmatprep.subr.bf16.mxu0 %v1840
    %2621 = vmatpush2.bf16.msra.mxu0 %v1839
    %2622 = vmatprep.subr.bf16.mxu0 %v1838
    %2623 = vmatpush2.bf16.msra.mxu0 %v1837
    %2624 = vmatprep.subr.bf16.mxu0 %v1836
    %2625 = vmatpush2.bf16.msra.mxu0 %v1835
    %2626 = vmatprep.subr.bf16.mxu0 %v1834
    %2627 = vmatpush2.bf16.msra.mxu0 %v1833
    %2628 = vmatprep.mubr.bf16.mxu0 %v216
    %2629 = vmatmul.mubr.bf16.gmra.mxu0 %v215
    %v2630 = vpop.f32.mrf.mxu0
    %v2631 = vadd.f32 %v2588, %v2630
    %v2632 = vpop.f32.mrf.mxu0
    %v2633 = vadd.f32 %v2590, %v2632
    %v2634 = vpop.f32.mrf.mxu0
    %v2635 = vadd.f32 %v2592, %v2634
    %v2636 = vpop.f32.mrf.mxu0
    %v2637 = vadd.f32 %v2594, %v2636
    %2638 = vdwg.mxu0
    %2639 = vmatprep.subr.bf16.mxu0 %v1864
    %2640 = vmatpush1.bf16.msra.mxu0 %v1863
    %2641 = vmatprep.subr.bf16.mxu0 %v1862
    %2642 = vmatpush1.bf16.msra.mxu0 %v1861
    %2643 = vmatprep.subr.bf16.mxu0 %v1860
    %2644 = vmatpush1.bf16.msra.mxu0 %v1859
    %2645 = vmatprep.subr.bf16.mxu0 %v1858
    %2646 = vmatpush1.bf16.msra.mxu0 %v1857
    %2647 = vmatprep.subr.bf16.mxu0 %v1856
    %2648 = vmatpush1.bf16.msra.mxu0 %v1855
    %2649 = vmatprep.subr.bf16.mxu0 %v1854
    %2650 = vmatpush1.bf16.msra.mxu0 %v1853
    %2651 = vmatprep.subr.bf16.mxu0 %v1852
    %2652 = vmatpush1.bf16.msra.mxu0 %v1851
    %2653 = vmatprep.subr.bf16.mxu0 %v1850
    %2654 = vmatpush1.bf16.msra.mxu0 %v1849
    %2655 = vmatprep.subr.bf16.mxu0 %v1880
    %2656 = vmatpush2.bf16.msra.mxu0 %v1879
    %2657 = vmatprep.subr.bf16.mxu0 %v1878
    %2658 = vmatpush2.bf16.msra.mxu0 %v1877
    %2659 = vmatprep.subr.bf16.mxu0 %v1876
    %2660 = vmatpush2.bf16.msra.mxu0 %v1875
    %2661 = vmatprep.subr.bf16.mxu0 %v1874
    %2662 = vmatpush2.bf16.msra.mxu0 %v1873
    %2663 = vmatprep.subr.bf16.mxu0 %v1872
    %2664 = vmatpush2.bf16.msra.mxu0 %v1871
    %2665 = vmatprep.subr.bf16.mxu0 %v1870
    %2666 = vmatpush2.bf16.msra.mxu0 %v1869
    %2667 = vmatprep.subr.bf16.mxu0 %v1868
    %2668 = vmatpush2.bf16.msra.mxu0 %v1867
    %2669 = vmatprep.subr.bf16.mxu0 %v1866
    %2670 = vmatpush2.bf16.msra.mxu0 %v1865
    %2671 = vmatprep.mubr.bf16.mxu0 %v218
    %2672 = vmatmul.mubr.bf16.gmra.mxu0 %v217
    %v2673 = vpop.f32.mrf.mxu0
    %v2674 = vadd.f32 %v2631, %v2673
    %v2675 = vpop.f32.mrf.mxu0
    %v2676 = vadd.f32 %v2633, %v2675
    %v2677 = vpop.f32.mrf.mxu0
    %v2678 = vadd.f32 %v2635, %v2677
    %v2679 = vpop.f32.mrf.mxu0
    %v2680 = vadd.f32 %v2637, %v2679
    %2681 = vdwg.mxu0
    %2682 = vmatprep.subr.bf16.mxu0 %v1896
    %2683 = vmatpush1.bf16.msra.mxu0 %v1895
    %2684 = vmatprep.subr.bf16.mxu0 %v1894
    %2685 = vmatpush1.bf16.msra.mxu0 %v1893
    %2686 = vmatprep.subr.bf16.mxu0 %v1892
    %2687 = vmatpush1.bf16.msra.mxu0 %v1891
    %2688 = vmatprep.subr.bf16.mxu0 %v1890
    %2689 = vmatpush1.bf16.msra.mxu0 %v1889
    %2690 = vmatprep.subr.bf16.mxu0 %v1888
    %2691 = vmatpush1.bf16.msra.mxu0 %v1887
    %2692 = vmatprep.subr.bf16.mxu0 %v1886
    %2693 = vmatpush1.bf16.msra.mxu0 %v1885
    %2694 = vmatprep.subr.bf16.mxu0 %v1884
    %2695 = vmatpush1.bf16.msra.mxu0 %v1883
    %2696 = vmatprep.subr.bf16.mxu0 %v1882
    %2697 = vmatpush1.bf16.msra.mxu0 %v1881
    %2698 = vmatprep.subr.bf16.mxu0 %v1912
    %2699 = vmatpush2.bf16.msra.mxu0 %v1911
    %2700 = vmatprep.subr.bf16.mxu0 %v1910
    %2701 = vmatpush2.bf16.msra.mxu0 %v1909
    %2702 = vmatprep.subr.bf16.mxu0 %v1908
    %2703 = vmatpush2.bf16.msra.mxu0 %v1907
    %2704 = vmatprep.subr.bf16.mxu0 %v1906
    %2705 = vmatpush2.bf16.msra.mxu0 %v1905
    %2706 = vmatprep.subr.bf16.mxu0 %v1904
    %2707 = vmatpush2.bf16.msra.mxu0 %v1903
    %2708 = vmatprep.subr.bf16.mxu0 %v1902
    %2709 = vmatpush2.bf16.msra.mxu0 %v1901
    %2710 = vmatprep.subr.bf16.mxu0 %v1900
    %2711 = vmatpush2.bf16.msra.mxu0 %v1899
    %2712 = vmatprep.subr.bf16.mxu0 %v1898
    %2713 = vmatpush2.bf16.msra.mxu0 %v1897
    %2714 = vmatprep.mubr.bf16.mxu0 %v220
    %2715 = vmatmul.mubr.bf16.gmra.mxu0 %v219
    %v2716 = vpop.f32.mrf.mxu0
    %v2717 = vadd.f32 %v2674, %v2716
    %v2718 = vpop.f32.mrf.mxu0
    %v2719 = vadd.f32 %v2676, %v2718
    %v2720 = vpop.f32.mrf.mxu0
    %v2721 = vadd.f32 %v2678, %v2720
    %v2722 = vpop.f32.mrf.mxu0
    %v2723 = vadd.f32 %v2680, %v2722
    %2724 = vdwg.mxu0
    %2725 = vmatprep.subr.bf16.mxu0 %v1928
    %2726 = vmatpush1.bf16.msra.mxu0 %v1927
    %2727 = vmatprep.subr.bf16.mxu0 %v1926
    %2728 = vmatpush1.bf16.msra.mxu0 %v1925
    %2729 = vmatprep.subr.bf16.mxu0 %v1924
    %2730 = vmatpush1.bf16.msra.mxu0 %v1923
    %2731 = vmatprep.subr.bf16.mxu0 %v1922
    %2732 = vmatpush1.bf16.msra.mxu0 %v1921
    %2733 = vmatprep.subr.bf16.mxu0 %v1920
    %2734 = vmatpush1.bf16.msra.mxu0 %v1919
    %2735 = vmatprep.subr.bf16.mxu0 %v1918
    %2736 = vmatpush1.bf16.msra.mxu0 %v1917
    %2737 = vmatprep.subr.bf16.mxu0 %v1916
    %2738 = vmatpush1.bf16.msra.mxu0 %v1915
    %2739 = vmatprep.subr.bf16.mxu0 %v1914
    %2740 = vmatpush1.bf16.msra.mxu0 %v1913
    %2741 = vmatprep.subr.bf16.mxu0 %v1944
    %2742 = vmatpush2.bf16.msra.mxu0 %v1943
    %2743 = vmatprep.subr.bf16.mxu0 %v1942
    %2744 = vmatpush2.bf16.msra.mxu0 %v1941
    %2745 = vmatprep.subr.bf16.mxu0 %v1940
    %2746 = vmatpush2.bf16.msra.mxu0 %v1939
    %2747 = vmatprep.subr.bf16.mxu0 %v1938
    %2748 = vmatpush2.bf16.msra.mxu0 %v1937
    %2749 = vmatprep.subr.bf16.mxu0 %v1936
    %2750 = vmatpush2.bf16.msra.mxu0 %v1935
    %2751 = vmatprep.subr.bf16.mxu0 %v1934
    %2752 = vmatpush2.bf16.msra.mxu0 %v1933
    %2753 = vmatprep.subr.bf16.mxu0 %v1932
    %2754 = vmatpush2.bf16.msra.mxu0 %v1931
    %2755 = vmatprep.subr.bf16.mxu0 %v1930
    %2756 = vmatpush2.bf16.msra.mxu0 %v1929
    %2757 = vmatprep.mubr.bf16.mxu0 %v222
    %2758 = vmatmul.mubr.bf16.gmra.mxu0 %v221
    %v2759 = vpop.f32.mrf.mxu0
    %v2760 = vadd.f32 %v2717, %v2759
    %v2761 = vpop.f32.mrf.mxu0
    %v2762 = vadd.f32 %v2719, %v2761
    %v2763 = vpop.f32.mrf.mxu0
    %v2764 = vadd.f32 %v2721, %v2763
    %v2765 = vpop.f32.mrf.mxu0
    %v2766 = vadd.f32 %v2723, %v2765
    %2767 = vdwg.mxu0
    %2768 = vmatprep.subr.bf16.mxu0 %v1960
    %2769 = vmatpush1.bf16.msra.mxu0 %v1959
    %2770 = vmatprep.subr.bf16.mxu0 %v1958
    %2771 = vmatpush1.bf16.msra.mxu0 %v1957
    %2772 = vmatprep.subr.bf16.mxu0 %v1956
    %2773 = vmatpush1.bf16.msra.mxu0 %v1955
    %2774 = vmatprep.subr.bf16.mxu0 %v1954
    %2775 = vmatpush1.bf16.msra.mxu0 %v1953
    %2776 = vmatprep.subr.bf16.mxu0 %v1952
    %2777 = vmatpush1.bf16.msra.mxu0 %v1951
    %2778 = vmatprep.subr.bf16.mxu0 %v1950
    %2779 = vmatpush1.bf16.msra.mxu0 %v1949
    %2780 = vmatprep.subr.bf16.mxu0 %v1948
    %2781 = vmatpush1.bf16.msra.mxu0 %v1947
    %2782 = vmatprep.subr.bf16.mxu0 %v1946
    %2783 = vmatpush1.bf16.msra.mxu0 %v1945
    %2784 = vmatprep.subr.bf16.mxu0 %v1976
    %2785 = vmatpush2.bf16.msra.mxu0 %v1975
    %2786 = vmatprep.subr.bf16.mxu0 %v1974
    %2787 = vmatpush2.bf16.msra.mxu0 %v1973
    %2788 = vmatprep.subr.bf16.mxu0 %v1972
    %2789 = vmatpush2.bf16.msra.mxu0 %v1971
    %2790 = vmatprep.subr.bf16.mxu0 %v1970
    %2791 = vmatpush2.bf16.msra.mxu0 %v1969
    %2792 = vmatprep.subr.bf16.mxu0 %v1968
    %2793 = vmatpush2.bf16.msra.mxu0 %v1967
    %2794 = vmatprep.subr.bf16.mxu0 %v1966
    %2795 = vmatpush2.bf16.msra.mxu0 %v1965
    %2796 = vmatprep.subr.bf16.mxu0 %v1964
    %2797 = vmatpush2.bf16.msra.mxu0 %v1963
    %2798 = vmatprep.subr.bf16.mxu0 %v1962
    %2799 = vmatpush2.bf16.msra.mxu0 %v1961
    %2800 = vmatprep.mubr.bf16.mxu0 %v224
    %2801 = vmatmul.mubr.bf16.gmra.mxu0 %v223
    %v2802 = vpop.f32.mrf.mxu0
    %v2803 = vadd.f32 %v2760, %v2802
    %v2804 = vpop.f32.mrf.mxu0
    %v2805 = vadd.f32 %v2762, %v2804
    %v2806 = vpop.f32.mrf.mxu0
    %v2807 = vadd.f32 %v2764, %v2806
    %v2808 = vpop.f32.mrf.mxu0
    %v2809 = vadd.f32 %v2766, %v2808
    %2810 = vdwg.mxu0
    %2811 = vmatprep.subr.bf16.mxu0 %v1992
    %2812 = vmatpush1.bf16.msra.mxu0 %v1991
    %2813 = vmatprep.subr.bf16.mxu0 %v1990
    %2814 = vmatpush1.bf16.msra.mxu0 %v1989
    %2815 = vmatprep.subr.bf16.mxu0 %v1988
    %2816 = vmatpush1.bf16.msra.mxu0 %v1987
    %2817 = vmatprep.subr.bf16.mxu0 %v1986
    %2818 = vmatpush1.bf16.msra.mxu0 %v1985
    %2819 = vmatprep.subr.bf16.mxu0 %v1984
    %2820 = vmatpush1.bf16.msra.mxu0 %v1983
    %2821 = vmatprep.subr.bf16.mxu0 %v1982
    %2822 = vmatpush1.bf16.msra.mxu0 %v1981
    %2823 = vmatprep.subr.bf16.mxu0 %v1980
    %2824 = vmatpush1.bf16.msra.mxu0 %v1979
    %2825 = vmatprep.subr.bf16.mxu0 %v1978
    %2826 = vmatpush1.bf16.msra.mxu0 %v1977
    %2827 = vmatprep.subr.bf16.mxu0 %v2008
    %2828 = vmatpush2.bf16.msra.mxu0 %v2007
    %2829 = vmatprep.subr.bf16.mxu0 %v2006
    %2830 = vmatpush2.bf16.msra.mxu0 %v2005
    %2831 = vmatprep.subr.bf16.mxu0 %v2004
    %2832 = vmatpush2.bf16.msra.mxu0 %v2003
    %2833 = vmatprep.subr.bf16.mxu0 %v2002
    %2834 = vmatpush2.bf16.msra.mxu0 %v2001
    %2835 = vmatprep.subr.bf16.mxu0 %v2000
    %2836 = vmatpush2.bf16.msra.mxu0 %v1999
    %2837 = vmatprep.subr.bf16.mxu0 %v1998
    %2838 = vmatpush2.bf16.msra.mxu0 %v1997
    %2839 = vmatprep.subr.bf16.mxu0 %v1996
    %2840 = vmatpush2.bf16.msra.mxu0 %v1995
    %2841 = vmatprep.subr.bf16.mxu0 %v1994
    %2842 = vmatpush2.bf16.msra.mxu0 %v1993
    %2843 = vmatprep.mubr.bf16.mxu0 %v226
    %2844 = vmatmul.mubr.bf16.gmra.mxu0 %v225
    %v2845 = vpop.f32.mrf.mxu0
    %v2846 = vadd.f32 %v2803, %v2845
    %v2847 = vpop.f32.mrf.mxu0
    %v2848 = vadd.f32 %v2805, %v2847
    %v2849 = vpop.f32.mrf.mxu0
    %v2850 = vadd.f32 %v2807, %v2849
    %v2851 = vpop.f32.mrf.mxu0
    %v2852 = vadd.f32 %v2809, %v2851
    %2853 = vdwg.mxu0
    %2854 = vmatprep.subr.bf16.mxu0 %v2024
    %2855 = vmatpush1.bf16.msra.mxu0 %v2023
    %2856 = vmatprep.subr.bf16.mxu0 %v2022
    %2857 = vmatpush1.bf16.msra.mxu0 %v2021
    %2858 = vmatprep.subr.bf16.mxu0 %v2020
    %2859 = vmatpush1.bf16.msra.mxu0 %v2019
    %2860 = vmatprep.subr.bf16.mxu0 %v2018
    %2861 = vmatpush1.bf16.msra.mxu0 %v2017
    %2862 = vmatprep.subr.bf16.mxu0 %v2016
    %2863 = vmatpush1.bf16.msra.mxu0 %v2015
    %2864 = vmatprep.subr.bf16.mxu0 %v2014
    %2865 = vmatpush1.bf16.msra.mxu0 %v2013
    %2866 = vmatprep.subr.bf16.mxu0 %v2012
    %2867 = vmatpush1.bf16.msra.mxu0 %v2011
    %2868 = vmatprep.subr.bf16.mxu0 %v2010
    %2869 = vmatpush1.bf16.msra.mxu0 %v2009
    %2870 = vmatprep.subr.bf16.mxu0 %v2040
    %2871 = vmatpush2.bf16.msra.mxu0 %v2039
    %2872 = vmatprep.subr.bf16.mxu0 %v2038
    %2873 = vmatpush2.bf16.msra.mxu0 %v2037
    %2874 = vmatprep.subr.bf16.mxu0 %v2036
    %2875 = vmatpush2.bf16.msra.mxu0 %v2035
    %2876 = vmatprep.subr.bf16.mxu0 %v2034
    %2877 = vmatpush2.bf16.msra.mxu0 %v2033
    %2878 = vmatprep.subr.bf16.mxu0 %v2032
    %2879 = vmatpush2.bf16.msra.mxu0 %v2031
    %2880 = vmatprep.subr.bf16.mxu0 %v2030
    %2881 = vmatpush2.bf16.msra.mxu0 %v2029
    %2882 = vmatprep.subr.bf16.mxu0 %v2028
    %2883 = vmatpush2.bf16.msra.mxu0 %v2027
    %2884 = vmatprep.subr.bf16.mxu0 %v2026
    %2885 = vmatpush2.bf16.msra.mxu0 %v2025
    %2886 = vmatprep.mubr.bf16.mxu0 %v228
    %2887 = vmatmul.mubr.bf16.gmra.mxu0 %v227
    %v2888 = vpop.f32.mrf.mxu0
    %v2889 = vadd.f32 %v2846, %v2888
    %v2890 = vpop.f32.mrf.mxu0
    %v2891 = vadd.f32 %v2848, %v2890
    %v2892 = vpop.f32.mrf.mxu0
    %v2893 = vadd.f32 %v2850, %v2892
    %v2894 = vpop.f32.mrf.mxu0
    %v2895 = vadd.f32 %v2852, %v2894
    %2896 = vdwg.mxu0
    %2897 = vmatprep.subr.bf16.mxu0 %v2056
    %2898 = vmatpush1.bf16.msra.mxu0 %v2055
    %2899 = vmatprep.subr.bf16.mxu0 %v2054
    %2900 = vmatpush1.bf16.msra.mxu0 %v2053
    %2901 = vmatprep.subr.bf16.mxu0 %v2052
    %2902 = vmatpush1.bf16.msra.mxu0 %v2051
    %2903 = vmatprep.subr.bf16.mxu0 %v2050
    %2904 = vmatpush1.bf16.msra.mxu0 %v2049
    %2905 = vmatprep.subr.bf16.mxu0 %v2048
    %2906 = vmatpush1.bf16.msra.mxu0 %v2047
    %2907 = vmatprep.subr.bf16.mxu0 %v2046
    %2908 = vmatpush1.bf16.msra.mxu0 %v2045
    %2909 = vmatprep.subr.bf16.mxu0 %v2044
    %2910 = vmatpush1.bf16.msra.mxu0 %v2043
    %2911 = vmatprep.subr.bf16.mxu0 %v2042
    %2912 = vmatpush1.bf16.msra.mxu0 %v2041
    %2913 = vmatprep.subr.bf16.mxu0 %v2072
    %2914 = vmatpush2.bf16.msra.mxu0 %v2071
    %2915 = vmatprep.subr.bf16.mxu0 %v2070
    %2916 = vmatpush2.bf16.msra.mxu0 %v2069
    %2917 = vmatprep.subr.bf16.mxu0 %v2068
    %2918 = vmatpush2.bf16.msra.mxu0 %v2067
    %2919 = vmatprep.subr.bf16.mxu0 %v2066
    %2920 = vmatpush2.bf16.msra.mxu0 %v2065
    %2921 = vmatprep.subr.bf16.mxu0 %v2064
    %2922 = vmatpush2.bf16.msra.mxu0 %v2063
    %2923 = vmatprep.subr.bf16.mxu0 %v2062
    %2924 = vmatpush2.bf16.msra.mxu0 %v2061
    %2925 = vmatprep.subr.bf16.mxu0 %v2060
    %2926 = vmatpush2.bf16.msra.mxu0 %v2059
    %2927 = vmatprep.subr.bf16.mxu0 %v2058
    %2928 = vmatpush2.bf16.msra.mxu0 %v2057
    %2929 = vmatprep.mubr.bf16.mxu0 %v230
    %2930 = vmatmul.mubr.bf16.gmra.mxu0 %v229
    %v2931 = vpop.f32.mrf.mxu0
    %v2932 = vadd.f32 %v2889, %v2931
    %v2933 = vpop.f32.mrf.mxu0
    %v2934 = vadd.f32 %v2891, %v2933
    %v2935 = vpop.f32.mrf.mxu0
    %v2936 = vadd.f32 %v2893, %v2935
    %v2937 = vpop.f32.mrf.mxu0
    %v2938 = vadd.f32 %v2895, %v2937
    %2939 = vdwg.mxu0
    %2940 = vmatprep.subr.bf16.mxu0 %v2088
    %2941 = vmatpush1.bf16.msra.mxu0 %v2087
    %2942 = vmatprep.subr.bf16.mxu0 %v2086
    %2943 = vmatpush1.bf16.msra.mxu0 %v2085
    %2944 = vmatprep.subr.bf16.mxu0 %v2084
    %2945 = vmatpush1.bf16.msra.mxu0 %v2083
    %2946 = vmatprep.subr.bf16.mxu0 %v2082
    %2947 = vmatpush1.bf16.msra.mxu0 %v2081
    %2948 = vmatprep.subr.bf16.mxu0 %v2080
    %2949 = vmatpush1.bf16.msra.mxu0 %v2079
    %2950 = vmatprep.subr.bf16.mxu0 %v2078
    %2951 = vmatpush1.bf16.msra.mxu0 %v2077
    %2952 = vmatprep.subr.bf16.mxu0 %v2076
    %2953 = vmatpush1.bf16.msra.mxu0 %v2075
    %2954 = vmatprep.subr.bf16.mxu0 %v2074
    %2955 = vmatpush1.bf16.msra.mxu0 %v2073
    %2956 = vmatprep.subr.bf16.mxu0 %v2104
    %2957 = vmatpush2.bf16.msra.mxu0 %v2103
    %2958 = vmatprep.subr.bf16.mxu0 %v2102
    %2959 = vmatpush2.bf16.msra.mxu0 %v2101
    %2960 = vmatprep.subr.bf16.mxu0 %v2100
    %2961 = vmatpush2.bf16.msra.mxu0 %v2099
    %2962 = vmatprep.subr.bf16.mxu0 %v2098
    %2963 = vmatpush2.bf16.msra.mxu0 %v2097
    %2964 = vmatprep.subr.bf16.mxu0 %v2096
    %2965 = vmatpush2.bf16.msra.mxu0 %v2095
    %2966 = vmatprep.subr.bf16.mxu0 %v2094
    %2967 = vmatpush2.bf16.msra.mxu0 %v2093
    %2968 = vmatprep.subr.bf16.mxu0 %v2092
    %2969 = vmatpush2.bf16.msra.mxu0 %v2091
    %2970 = vmatprep.subr.bf16.mxu0 %v2090
    %2971 = vmatpush2.bf16.msra.mxu0 %v2089
    %2972 = vmatprep.mubr.bf16.mxu0 %v232
    %2973 = vmatmul.mubr.bf16.gmra.mxu0 %v231
    %v2974 = vpop.f32.mrf.mxu0
    %v2975 = vadd.f32 %v2932, %v2974
    %v2976 = vpop.f32.mrf.mxu0
    %v2977 = vadd.f32 %v2934, %v2976
    %v2978 = vpop.f32.mrf.mxu0
    %v2979 = vadd.f32 %v2936, %v2978
    %v2980 = vpop.f32.mrf.mxu0
    %v2981 = vadd.f32 %v2938, %v2980
    %2982 = vdwg.mxu0
    %2983 = vmatprep.subr.bf16.mxu0 %v2120
    %2984 = vmatpush1.bf16.msra.mxu0 %v2119
    %2985 = vmatprep.subr.bf16.mxu0 %v2118
    %2986 = vmatpush1.bf16.msra.mxu0 %v2117
    %2987 = vmatprep.subr.bf16.mxu0 %v2116
    %2988 = vmatpush1.bf16.msra.mxu0 %v2115
    %2989 = vmatprep.subr.bf16.mxu0 %v2114
    %2990 = vmatpush1.bf16.msra.mxu0 %v2113
    %2991 = vmatprep.subr.bf16.mxu0 %v2112
    %2992 = vmatpush1.bf16.msra.mxu0 %v2111
    %2993 = vmatprep.subr.bf16.mxu0 %v2110
    %2994 = vmatpush1.bf16.msra.mxu0 %v2109
    %2995 = vmatprep.subr.bf16.mxu0 %v2108
    %2996 = vmatpush1.bf16.msra.mxu0 %v2107
    %2997 = vmatprep.subr.bf16.mxu0 %v2106
    %2998 = vmatpush1.bf16.msra.mxu0 %v2105
    %2999 = vmatprep.subr.bf16.mxu0 %v2136
    %3000 = vmatpush2.bf16.msra.mxu0 %v2135
    %3001 = vmatprep.subr.bf16.mxu0 %v2134
    %3002 = vmatpush2.bf16.msra.mxu0 %v2133
    %3003 = vmatprep.subr.bf16.mxu0 %v2132
    %3004 = vmatpush2.bf16.msra.mxu0 %v2131
    %3005 = vmatprep.subr.bf16.mxu0 %v2130
    %3006 = vmatpush2.bf16.msra.mxu0 %v2129
    %3007 = vmatprep.subr.bf16.mxu0 %v2128
    %3008 = vmatpush2.bf16.msra.mxu0 %v2127
    %3009 = vmatprep.subr.bf16.mxu0 %v2126
    %3010 = vmatpush2.bf16.msra.mxu0 %v2125
    %3011 = vmatprep.subr.bf16.mxu0 %v2124
    %3012 = vmatpush2.bf16.msra.mxu0 %v2123
    %3013 = vmatprep.subr.bf16.mxu0 %v2122
    %3014 = vmatpush2.bf16.msra.mxu0 %v2121
    %3015 = vmatprep.mubr.bf16.mxu0 %v234
    %3016 = vmatmul.mubr.bf16.gmra.mxu0 %v233
    %v3017 = vpop.f32.mrf.mxu0
    %v3018 = vadd.f32 %v2975, %v3017
    %v3019 = vpop.f32.mrf.mxu0
    %v3020 = vadd.f32 %v2977, %v3019
    %v3021 = vpop.f32.mrf.mxu0
    %v3022 = vadd.f32 %v2979, %v3021
    %v3023 = vpop.f32.mrf.mxu0
    %v3024 = vadd.f32 %v2981, %v3023
    %3025 = vdwg.mxu0
    %3026 = vmatprep.subr.bf16.mxu0 %v2152
    %3027 = vmatpush1.bf16.msra.mxu0 %v2151
    %3028 = vmatprep.subr.bf16.mxu0 %v2150
    %3029 = vmatpush1.bf16.msra.mxu0 %v2149
    %3030 = vmatprep.subr.bf16.mxu0 %v2148
    %3031 = vmatpush1.bf16.msra.mxu0 %v2147
    %3032 = vmatprep.subr.bf16.mxu0 %v2146
    %3033 = vmatpush1.bf16.msra.mxu0 %v2145
    %3034 = vmatprep.subr.bf16.mxu0 %v2144
    %3035 = vmatpush1.bf16.msra.mxu0 %v2143
    %3036 = vmatprep.subr.bf16.mxu0 %v2142
    %3037 = vmatpush1.bf16.msra.mxu0 %v2141
    %3038 = vmatprep.subr.bf16.mxu0 %v2140
    %3039 = vmatpush1.bf16.msra.mxu0 %v2139
    %3040 = vmatprep.subr.bf16.mxu0 %v2138
    %3041 = vmatpush1.bf16.msra.mxu0 %v2137
    %3042 = vmatprep.subr.bf16.mxu0 %v2168
    %3043 = vmatpush2.bf16.msra.mxu0 %v2167
    %3044 = vmatprep.subr.bf16.mxu0 %v2166
    %3045 = vmatpush2.bf16.msra.mxu0 %v2165
    %3046 = vmatprep.subr.bf16.mxu0 %v2164
    %3047 = vmatpush2.bf16.msra.mxu0 %v2163
    %3048 = vmatprep.subr.bf16.mxu0 %v2162
    %3049 = vmatpush2.bf16.msra.mxu0 %v2161
    %3050 = vmatprep.subr.bf16.mxu0 %v2160
    %3051 = vmatpush2.bf16.msra.mxu0 %v2159
    %3052 = vmatprep.subr.bf16.mxu0 %v2158
    %3053 = vmatpush2.bf16.msra.mxu0 %v2157
    %3054 = vmatprep.subr.bf16.mxu0 %v2156
    %3055 = vmatpush2.bf16.msra.mxu0 %v2155
    %3056 = vmatprep.subr.bf16.mxu0 %v2154
    %3057 = vmatpush2.bf16.msra.mxu0 %v2153
    %3058 = vmatprep.mubr.bf16.mxu0 %v236
    %3059 = vmatmul.mubr.bf16.gmra.mxu0 %v235
    %v3060 = vpop.f32.mrf.mxu0
    %v3061 = vadd.f32 %v3018, %v3060
    %v3062 = vpop.f32.mrf.mxu0
    %v3063 = vadd.f32 %v3020, %v3062
    %v3064 = vpop.f32.mrf.mxu0
    %v3065 = vadd.f32 %v3022, %v3064
    %v3066 = vpop.f32.mrf.mxu0
    %v3067 = vadd.f32 %v3024, %v3066
    %3068 = vdwg.mxu0
    %v3069 = vmax.f32 %v3061, 0.0
    %v3070 = vmax.f32 %v3063, 0.0
    %v3071 = vmax.f32 %v3065, 0.0
    %v3072 = vmax.f32 %v3067, 0.0
    %v3073 = vpack.c.bf16 %v3071, %v3069
    %v3074 = vpack.c.bf16 %v3072, %v3070
    %v3075 = vld [vmem:[#allocation6] sm:$0xf]
    %v3076 = vld [vmem:[#allocation6 + $0x4] sm:$0xf]
    %v3077 = vld [vmem:[#allocation6 + $0x8] sm:$0xf]
    %v3078 = vld [vmem:[#allocation6 + $0xc] sm:$0xf]
    %v3079 = vld [vmem:[#allocation6 + $0x10] sm:$0xf]
    %v3080 = vld [vmem:[#allocation6 + $0x14] sm:$0xf]
    %v3081 = vld [vmem:[#allocation6 + $0x18] sm:$0xf]
    %v3082 = vld [vmem:[#allocation6 + $0x1c] sm:$0xf]
    %v3083 = vld [vmem:[#allocation6 + $0x20] sm:$0xf]
    %v3084 = vld [vmem:[#allocation6 + $0x24] sm:$0xf]
    %v3085 = vld [vmem:[#allocation6 + $0x28] sm:$0xf]
    %v3086 = vld [vmem:[#allocation6 + $0x2c] sm:$0xf]
    %v3087 = vld [vmem:[#allocation6 + $0x30] sm:$0xf]
    %v3088 = vld [vmem:[#allocation6 + $0x34] sm:$0xf]
    %v3089 = vld [vmem:[#allocation6 + $0x38] sm:$0xf]
    %v3090 = vld [vmem:[#allocation6 + $0x3c] sm:$0xf]
    %v3091 = vld [vmem:[#allocation6 + $0x40] sm:$0xf]
    %v3092 = vld [vmem:[#allocation6 + $0x44] sm:$0xf]
    %v3093 = vld [vmem:[#allocation6 + $0x48] sm:$0xf]
    %v3094 = vld [vmem:[#allocation6 + $0x4c] sm:$0xf]
    %v3095 = vld [vmem:[#allocation6 + $0x50] sm:$0xf]
    %v3096 = vld [vmem:[#allocation6 + $0x54] sm:$0xf]
    %v3097 = vld [vmem:[#allocation6 + $0x58] sm:$0xf]
    %v3098 = vld [vmem:[#allocation6 + $0x5c] sm:$0xf]
    %v3099 = vld [vmem:[#allocation6 + $0x60] sm:$0xf]
    %v3100 = vld [vmem:[#allocation6 + $0x64] sm:$0xf]
    %v3101 = vld [vmem:[#allocation6 + $0x68] sm:$0xf]
    %v3102 = vld [vmem:[#allocation6 + $0x6c] sm:$0xf]
    %v3103 = vld [vmem:[#allocation6 + $0x70] sm:$0xf]
    %v3104 = vld [vmem:[#allocation6 + $0x74] sm:$0xf]
    %v3105 = vld [vmem:[#allocation6 + $0x78] sm:$0xf]
    %v3106 = vld [vmem:[#allocation6 + $0x7c] sm:$0xf]
    %v3107 = vld [vmem:[#allocation7] sm:$0x1]
    %v3109 = vlaneseq
    %v3110 = vshrl.u32 %v3109, 7
    %v3111 = vsub.s32 0, %v3110
    %v3112 = vrot.slane %v3107, %v3111
    %v3146 = vunpack.c.l.b16 %v3075
    %v3147 = vunpack.c.l.b16 %v3076
    %v3148 = vunpack.c.l.b16 %v3077
    %v3149 = vunpack.c.l.b16 %v3078
    %v3150 = vunpack.c.l.b16 %v3079
    %v3151 = vunpack.c.l.b16 %v3080
    %v3152 = vunpack.c.l.b16 %v3081
    %v3153 = vunpack.c.l.b16 %v3082
    %v3154 = vunpack.c.l.b16 %v3083
    %v3155 = vunpack.c.l.b16 %v3084
    %v3156 = vunpack.c.l.b16 %v3085
    %v3157 = vunpack.c.l.b16 %v3086
    %v3158 = vunpack.c.l.b16 %v3087
    %v3159 = vunpack.c.l.b16 %v3088
    %v3160 = vunpack.c.l.b16 %v3089
    %v3161 = vunpack.c.l.b16 %v3090
    %v3162 = vunpack.c.l.b16 %v3091
    %v3163 = vunpack.c.l.b16 %v3092
    %v3164 = vunpack.c.l.b16 %v3093
    %v3165 = vunpack.c.l.b16 %v3094
    %v3166 = vunpack.c.l.b16 %v3095
    %v3167 = vunpack.c.l.b16 %v3096
    %v3168 = vunpack.c.l.b16 %v3097
    %v3169 = vunpack.c.l.b16 %v3098
    %v3170 = vunpack.c.l.b16 %v3099
    %v3171 = vunpack.c.l.b16 %v3100
    %v3172 = vunpack.c.l.b16 %v3101
    %v3173 = vunpack.c.l.b16 %v3102
    %v3174 = vunpack.c.l.b16 %v3103
    %v3175 = vunpack.c.l.b16 %v3104
    %v3176 = vunpack.c.l.b16 %v3105
    %v3177 = vunpack.c.l.b16 %v3106
    %v3178 = vpack.c.b16 %v3147, %v3146
    %v3179 = vpack.c.b16 %v3149, %v3148
    %v3180 = vpack.c.b16 %v3151, %v3150
    %v3181 = vpack.c.b16 %v3153, %v3152
    %v3182 = vpack.c.b16 %v3155, %v3154
    %v3183 = vpack.c.b16 %v3157, %v3156
    %v3184 = vpack.c.b16 %v3159, %v3158
    %v3185 = vpack.c.b16 %v3161, %v3160
    %v3186 = vpack.c.b16 %v3163, %v3162
    %v3187 = vpack.c.b16 %v3165, %v3164
    %v3188 = vpack.c.b16 %v3167, %v3166
    %v3189 = vpack.c.b16 %v3169, %v3168
    %v3190 = vpack.c.b16 %v3171, %v3170
    %v3191 = vpack.c.b16 %v3173, %v3172
    %v3192 = vpack.c.b16 %v3175, %v3174
    %v3193 = vpack.c.b16 %v3177, %v3176
    %3210 = vmatprep.subr.bf16.mxu0 0
    %3211 = vmatpush1.bf16.msra.mxu0 %v3185
    %3212 = vmatprep.subr.bf16.mxu0 0
    %3213 = vmatpush1.bf16.msra.mxu0 %v3184
    %3214 = vmatprep.subr.bf16.mxu0 0
    %3215 = vmatpush1.bf16.msra.mxu0 %v3183
    %3216 = vmatprep.subr.bf16.mxu0 0
    %3217 = vmatpush1.bf16.msra.mxu0 %v3182
    %3218 = vmatprep.subr.bf16.mxu0 0
    %3219 = vmatpush1.bf16.msra.mxu0 %v3181
    %3220 = vmatprep.subr.bf16.mxu0 0
    %3221 = vmatpush1.bf16.msra.mxu0 %v3180
    %3222 = vmatprep.subr.bf16.mxu0 0
    %3223 = vmatpush1.bf16.msra.mxu0 %v3179
    %3224 = vmatprep.subr.bf16.mxu0 0
    %3225 = vmatpush1.bf16.msra.mxu0 %v3178
    %3226 = vmatprep.subr.bf16.mxu0 0
    %3227 = vmatpush2.bf16.msra.mxu0 %v3193
    %3228 = vmatprep.subr.bf16.mxu0 0
    %3229 = vmatpush2.bf16.msra.mxu0 %v3192
    %3230 = vmatprep.subr.bf16.mxu0 0
    %3231 = vmatpush2.bf16.msra.mxu0 %v3191
    %3232 = vmatprep.subr.bf16.mxu0 0
    %3233 = vmatpush2.bf16.msra.mxu0 %v3190
    %3234 = vmatprep.subr.bf16.mxu0 0
    %3235 = vmatpush2.bf16.msra.mxu0 %v3189
    %3236 = vmatprep.subr.bf16.mxu0 0
    %3237 = vmatpush2.bf16.msra.mxu0 %v3188
    %3238 = vmatprep.subr.bf16.mxu0 0
    %3239 = vmatpush2.bf16.msra.mxu0 %v3187
    %3240 = vmatprep.subr.bf16.mxu0 0
    %3241 = vmatpush2.bf16.msra.mxu0 %v3186
    %3242 = vmatprep.mubr.bf16.mxu0 %v3074
    %3243 = vmatmul.mubr.bf16.gmra.mxu0 %v3073
    %v3244 = vpop.f32.mrf.mxu0
    %v3245 = vadd.f32 %v3112, %v3244
    %v3246 = vpop.f32.mrf.mxu0
    %v3247 = vpop.f32.mrf.mxu0
    %v3248 = vadd.f32 %v3112, %v3247
    %v3249 = vpop.f32.mrf.mxu0
    %3250 = vdwg.mxu0
    %v3251 = vmax.f32 %v3245, 0.0
    %v3252 = vmax.f32 %v3248, 0.0
    %v3253 = vpack.c.bf16 %v3252, %v3251
    %v3254 = vld [vmem:[#allocation9] sm:$0xf]
    %v3255 = vld [vmem:[#allocation9 + $0x4] sm:$0xf]
    %v3256 = vld [vmem:[#allocation9 + $0x8] sm:$0xf]
    %v3257 = vld [vmem:[#allocation9 + $0xc] sm:$0xf]
    %v3258 = vld [vmem:[#allocation9 + $0x10] sm:$0xf]
    %v3259 = vld [vmem:[#allocation9 + $0x14] sm:$0xf]
    %v3260 = vld [vmem:[#allocation9 + $0x18] sm:$0xf]
    %v3261 = vld [vmem:[#allocation9 + $0x1c] sm:$0xf]
    %v3262 = vld [vmem:[#allocation9 + $0x20] sm:$0xf]
    %v3263 = vld [vmem:[#allocation9 + $0x24] sm:$0xf]
    %v3264 = vld [vmem:[#allocation9 + $0x28] sm:$0xf]
    %v3265 = vld [vmem:[#allocation9 + $0x2c] sm:$0xf]
    %v3266 = vld [vmem:[#allocation9 + $0x30] sm:$0xf]
    %v3267 = vld [vmem:[#allocation9 + $0x34] sm:$0xf]
    %v3268 = vld [vmem:[#allocation9 + $0x38] sm:$0xf]
    %v3269 = vld [vmem:[#allocation9 + $0x3c] sm:$0xf]
    %v3270 = vld [vmem:[#allocation10] sm:$0x1]
    %v3272 = vlaneseq
    %v3273 = vshrl.u32 %v3272, 7
    %v3274 = vsub.s32 0, %v3273
    %v3275 = vrot.slane %v3270, %v3274
    %v3293 = vunpack.c.l.b16 %v3254
    %v3294 = vunpack.c.l.b16 %v3255
    %v3295 = vunpack.c.l.b16 %v3256
    %v3296 = vunpack.c.l.b16 %v3257
    %v3297 = vunpack.c.l.b16 %v3258
    %v3298 = vunpack.c.l.b16 %v3259
    %v3299 = vunpack.c.l.b16 %v3260
    %v3300 = vunpack.c.l.b16 %v3261
    %v3301 = vunpack.c.l.b16 %v3262
    %v3302 = vunpack.c.l.b16 %v3263
    %v3303 = vunpack.c.l.b16 %v3264
    %v3304 = vunpack.c.l.b16 %v3265
    %v3305 = vunpack.c.l.b16 %v3266
    %v3306 = vunpack.c.l.b16 %v3267
    %v3307 = vunpack.c.l.b16 %v3268
    %v3308 = vunpack.c.l.b16 %v3269
    %v3309 = vpack.c.b16 %v3294, %v3293
    %v3310 = vpack.c.b16 %v3296, %v3295
    %v3311 = vpack.c.b16 %v3298, %v3297
    %v3312 = vpack.c.b16 %v3300, %v3299
    %v3313 = vpack.c.b16 %v3302, %v3301
    %v3314 = vpack.c.b16 %v3304, %v3303
    %v3315 = vpack.c.b16 %v3306, %v3305
    %v3316 = vpack.c.b16 %v3308, %v3307
    %3325 = vmatprep.subr.bf16.mxu0 0
    %3326 = vmatpush1.bf16.msra.mxu0 %v3316
    %3327 = vmatprep.subr.bf16.mxu0 0
    %3328 = vmatpush1.bf16.msra.mxu0 %v3315
    %3329 = vmatprep.subr.bf16.mxu0 0
    %3330 = vmatpush1.bf16.msra.mxu0 %v3314
    %3331 = vmatprep.subr.bf16.mxu0 0
    %3332 = vmatpush1.bf16.msra.mxu0 %v3313
    %3333 = vmatprep.subr.bf16.mxu0 0
    %3334 = vmatpush1.bf16.msra.mxu0 %v3312
    %3335 = vmatprep.subr.bf16.mxu0 0
    %3336 = vmatpush1.bf16.msra.mxu0 %v3311
    %3337 = vmatprep.subr.bf16.mxu0 0
    %3338 = vmatpush1.bf16.msra.mxu0 %v3310
    %3339 = vmatprep.subr.bf16.mxu0 0
    %3340 = vmatpush1.bf16.msra.mxu0 %v3309
    %3341 = vmatprep.subr.bf16.mxu0 0
    %3342 = vmatpush2.bf16.msra.mxu0 0
    %3343 = vmatprep.subr.bf16.mxu0 0
    %3344 = vmatpush2.bf16.msra.mxu0 0
    %3345 = vmatprep.subr.bf16.mxu0 0
    %3346 = vmatpush2.bf16.msra.mxu0 0
    %3347 = vmatprep.subr.bf16.mxu0 0
    %3348 = vmatpush2.bf16.msra.mxu0 0
    %3349 = vmatprep.subr.bf16.mxu0 0
    %3350 = vmatpush2.bf16.msra.mxu0 0
    %3351 = vmatprep.subr.bf16.mxu0 0
    %3352 = vmatpush2.bf16.msra.mxu0 0
    %3353 = vmatprep.subr.bf16.mxu0 0
    %3354 = vmatpush2.bf16.msra.mxu0 0
    %3355 = vmatprep.subr.bf16.mxu0 0
    %3356 = vmatpush2.bf16.msra.mxu0 0
    %3357 = vmatprep.mubr.bf16.mxu0 0
    %3358 = vmatmul.mubr.bf16.gmra.mxu0 %v3253
    %v3359 = vpop.f32.mrf.mxu0
    %v3360 = vadd.f32 %v3275, %v3359
    %v3361 = vpop.f32.mrf.mxu0
    %v3362 = vpop.f32.mrf.mxu0
    %v3363 = vadd.f32 %v3275, %v3362
    %v3364 = vpop.f32.mrf.mxu0
    %3365 = vdwg.mxu0
    %v3366 = vmax.f32 %v3360, 0.0
    %v3367 = vmax.f32 %v3363, 0.0
    %v3368 = vpack.c.bf16 %v3367, %v3366
    %v3369 = vld [vmem:[#allocation12] sm:$0xf]
    %v3370 = vld [vmem:[#allocation12 + $0x4] sm:$0xf]
    %v3371 = vld [vmem:[#allocation12 + $0x8] sm:$0xf]
    %v3372 = vld [vmem:[#allocation12 + $0xc] sm:$0xf]
    %v3373 = vld [vmem:[#allocation12 + $0x10] sm:$0xf]
    %v3374 = vld [vmem:[#allocation12 + $0x14] sm:$0xf]
    %v3375 = vld [vmem:[#allocation12 + $0x18] sm:$0xf]
    %v3376 = vld [vmem:[#allocation12 + $0x1c] sm:$0xf]
    %v3377 = vld [vmem:[#allocation12 + $0x20] sm:$0xf]
    %v3378 = vld [vmem:[#allocation12 + $0x24] sm:$0xf]
    %v3379 = vld [vmem:[#allocation12 + $0x28] sm:$0xf]
    %v3380 = vld [vmem:[#allocation12 + $0x2c] sm:$0xf]
    %v3381 = vld [vmem:[#allocation12 + $0x30] sm:$0xf]
    %v3382 = vld [vmem:[#allocation12 + $0x34] sm:$0xf]
    %v3383 = vld [vmem:[#allocation12 + $0x38] sm:$0xf]
    %v3384 = vld [vmem:[#allocation12 + $0x3c] sm:$0xf]
    %v3385 = vld [vmem:[#allocation13] sm:$0x1]
    %v3387 = vlaneseq
    %v3388 = vshrl.u32 %v3387, 7
    %v3389 = vsub.s32 0, %v3388
    %v3390 = vrot.slane %v3385, %v3389
    %v3408 = vunpack.c.l.b16 %v3369
    %v3409 = vunpack.c.l.b16 %v3370
    %v3410 = vunpack.c.l.b16 %v3371
    %v3411 = vunpack.c.l.b16 %v3372
    %v3412 = vunpack.c.l.b16 %v3373
    %v3413 = vunpack.c.l.b16 %v3374
    %v3414 = vunpack.c.l.b16 %v3375
    %v3415 = vunpack.c.l.b16 %v3376
    %v3416 = vunpack.c.l.b16 %v3377
    %v3417 = vunpack.c.l.b16 %v3378
    %v3418 = vunpack.c.l.b16 %v3379
    %v3419 = vunpack.c.l.b16 %v3380
    %v3420 = vunpack.c.l.b16 %v3381
    %v3421 = vunpack.c.l.b16 %v3382
    %v3422 = vunpack.c.l.b16 %v3383
    %v3423 = vunpack.c.l.b16 %v3384
    %v3424 = vpack.c.b16 %v3409, %v3408
    %v3425 = vpack.c.b16 %v3411, %v3410
    %v3426 = vpack.c.b16 %v3413, %v3412
    %v3427 = vpack.c.b16 %v3415, %v3414
    %v3428 = vpack.c.b16 %v3417, %v3416
    %v3429 = vpack.c.b16 %v3419, %v3418
    %v3430 = vpack.c.b16 %v3421, %v3420
    %v3431 = vpack.c.b16 %v3423, %v3422
    %3440 = vmatprep.subr.bf16.mxu0 0
    %3441 = vmatpush1.bf16.msra.mxu0 %v3431
    %3442 = vmatprep.subr.bf16.mxu0 0
    %3443 = vmatpush1.bf16.msra.mxu0 %v3430
    %3444 = vmatprep.subr.bf16.mxu0 0
    %3445 = vmatpush1.bf16.msra.mxu0 %v3429
    %3446 = vmatprep.subr.bf16.mxu0 0
    %3447 = vmatpush1.bf16.msra.mxu0 %v3428
    %3448 = vmatprep.subr.bf16.mxu0 0
    %3449 = vmatpush1.bf16.msra.mxu0 %v3427
    %3450 = vmatprep.subr.bf16.mxu0 0
    %3451 = vmatpush1.bf16.msra.mxu0 %v3426
    %3452 = vmatprep.subr.bf16.mxu0 0
    %3453 = vmatpush1.bf16.msra.mxu0 %v3425
    %3454 = vmatprep.subr.bf16.mxu0 0
    %3455 = vmatpush1.bf16.msra.mxu0 %v3424
    %3456 = vmatprep.subr.bf16.mxu0 0
    %3457 = vmatpush2.bf16.msra.mxu0 0
    %3458 = vmatprep.subr.bf16.mxu0 0
    %3459 = vmatpush2.bf16.msra.mxu0 0
    %3460 = vmatprep.subr.bf16.mxu0 0
    %3461 = vmatpush2.bf16.msra.mxu0 0
    %3462 = vmatprep.subr.bf16.mxu0 0
    %3463 = vmatpush2.bf16.msra.mxu0 0
    %3464 = vmatprep.subr.bf16.mxu0 0
    %3465 = vmatpush2.bf16.msra.mxu0 0
    %3466 = vmatprep.subr.bf16.mxu0 0
    %3467 = vmatpush2.bf16.msra.mxu0 0
    %3468 = vmatprep.subr.bf16.mxu0 0
    %3469 = vmatpush2.bf16.msra.mxu0 0
    %3470 = vmatprep.subr.bf16.mxu0 0
    %3471 = vmatpush2.bf16.msra.mxu0 0
    %3472 = vmatprep.mubr.bf16.mxu0 0
    %3473 = vmatmul.mubr.bf16.gmra.mxu0 %v3368
    %v3474 = vpop.f32.mrf.mxu0
    %v3475 = vadd.f32 %v3390, %v3474
    %v3476 = vpop.f32.mrf.mxu0
    %v3477 = vpop.f32.mrf.mxu0
    %v3478 = vadd.f32 %v3390, %v3477
    %v3479 = vpop.f32.mrf.mxu0
    %3480 = vdwg.mxu0
    %v3481 = vmax.f32 %v3475, 0.0
    %v3482 = vmax.f32 %v3478, 0.0
    %v3483 = vpack.c.bf16 %v3482, %v3481
    %v3484 = vld [vmem:[#allocation15] sm:$0xf]
    %v3485 = vld [vmem:[#allocation15 + $0x4] sm:$0xf]
    %v3486 = vld [vmem:[#allocation15 + $0x8] sm:$0xf]
    %v3487 = vld [vmem:[#allocation15 + $0xc] sm:$0xf]
    %v3488 = vld [vmem:[#allocation15 + $0x10] sm:$0xf]
    %v3489 = vld [vmem:[#allocation15 + $0x14] sm:$0xf]
    %v3490 = vld [vmem:[#allocation15 + $0x18] sm:$0xf]
    %v3491 = vld [vmem:[#allocation15 + $0x1c] sm:$0xf]
    %v3492 = vld [vmem:[#allocation15 + $0x20] sm:$0xf]
    %v3493 = vld [vmem:[#allocation15 + $0x24] sm:$0xf]
    %v3494 = vld [vmem:[#allocation15 + $0x28] sm:$0xf]
    %v3495 = vld [vmem:[#allocation15 + $0x2c] sm:$0xf]
    %v3496 = vld [vmem:[#allocation15 + $0x30] sm:$0xf]
    %v3497 = vld [vmem:[#allocation15 + $0x34] sm:$0xf]
    %v3498 = vld [vmem:[#allocation15 + $0x38] sm:$0xf]
    %v3499 = vld [vmem:[#allocation15 + $0x3c] sm:$0xf]
    %v3500 = vld [vmem:[#allocation16] sm:$0x1]
    %v3502 = vlaneseq
    %v3503 = vshrl.u32 %v3502, 7
    %v3504 = vsub.s32 0, %v3503
    %v3505 = vrot.slane %v3500, %v3504
    %v3523 = vunpack.c.l.b16 %v3484
    %v3524 = vunpack.c.l.b16 %v3485
    %v3525 = vunpack.c.l.b16 %v3486
    %v3526 = vunpack.c.l.b16 %v3487
    %v3527 = vunpack.c.l.b16 %v3488
    %v3528 = vunpack.c.l.b16 %v3489
    %v3529 = vunpack.c.l.b16 %v3490
    %v3530 = vunpack.c.l.b16 %v3491
    %v3531 = vunpack.c.l.b16 %v3492
    %v3532 = vunpack.c.l.b16 %v3493
    %v3533 = vunpack.c.l.b16 %v3494
    %v3534 = vunpack.c.l.b16 %v3495
    %v3535 = vunpack.c.l.b16 %v3496
    %v3536 = vunpack.c.l.b16 %v3497
    %v3537 = vunpack.c.l.b16 %v3498
    %v3538 = vunpack.c.l.b16 %v3499
    %v3539 = vpack.c.b16 %v3524, %v3523
    %v3540 = vpack.c.b16 %v3526, %v3525
    %v3541 = vpack.c.b16 %v3528, %v3527
    %v3542 = vpack.c.b16 %v3530, %v3529
    %v3543 = vpack.c.b16 %v3532, %v3531
    %v3544 = vpack.c.b16 %v3534, %v3533
    %v3545 = vpack.c.b16 %v3536, %v3535
    %v3546 = vpack.c.b16 %v3538, %v3537
    %3555 = vmatprep.subr.bf16.mxu0 0
    %3556 = vmatpush1.bf16.msra.mxu0 %v3546
    %3557 = vmatprep.subr.bf16.mxu0 0
    %3558 = vmatpush1.bf16.msra.mxu0 %v3545
    %3559 = vmatprep.subr.bf16.mxu0 0
    %3560 = vmatpush1.bf16.msra.mxu0 %v3544
    %3561 = vmatprep.subr.bf16.mxu0 0
    %3562 = vmatpush1.bf16.msra.mxu0 %v3543
    %3563 = vmatprep.subr.bf16.mxu0 0
    %3564 = vmatpush1.bf16.msra.mxu0 %v3542
    %3565 = vmatprep.subr.bf16.mxu0 0
    %3566 = vmatpush1.bf16.msra.mxu0 %v3541
    %3567 = vmatprep.subr.bf16.mxu0 0
    %3568 = vmatpush1.bf16.msra.mxu0 %v3540
    %3569 = vmatprep.subr.bf16.mxu0 0
    %3570 = vmatpush1.bf16.msra.mxu0 %v3539
    %3571 = vmatprep.subr.bf16.mxu0 0
    %3572 = vmatpush2.bf16.msra.mxu0 0
    %3573 = vmatprep.subr.bf16.mxu0 0
    %3574 = vmatpush2.bf16.msra.mxu0 0
    %3575 = vmatprep.subr.bf16.mxu0 0
    %3576 = vmatpush2.bf16.msra.mxu0 0
    %3577 = vmatprep.subr.bf16.mxu0 0
    %3578 = vmatpush2.bf16.msra.mxu0 0
    %3579 = vmatprep.subr.bf16.mxu0 0
    %3580 = vmatpush2.bf16.msra.mxu0 0
    %3581 = vmatprep.subr.bf16.mxu0 0
    %3582 = vmatpush2.bf16.msra.mxu0 0
    %3583 = vmatprep.subr.bf16.mxu0 0
    %3584 = vmatpush2.bf16.msra.mxu0 0
    %3585 = vmatprep.subr.bf16.mxu0 0
    %3586 = vmatpush2.bf16.msra.mxu0 0
    %3587 = vmatprep.mubr.bf16.mxu0 0
    %3588 = vmatmul.mubr.bf16.gmra.mxu0 %v3483
    %v3589 = vpop.f32.mrf.mxu0
    %v3590 = vadd.f32 %v3505, %v3589
    %v3591 = vpop.f32.mrf.mxu0
    %v3592 = vpop.f32.mrf.mxu0
    %v3593 = vadd.f32 %v3505, %v3592
    %v3594 = vpop.f32.mrf.mxu0
    %3595 = vdwg.mxu0
    %3596 = vst [vmem:[%s11] sm:$0xff] %v3590
    %3597 = vst [vmem:[%s11 + $0x8] sm:$0xff] %v3593
    // Predicated region
    $region86: #{fcnet_forward.1} parent=1 // pred_check
      _
    $region87: #{fcnet_forward.1} parent=1 // pred_check_branch
      %3599 = sbr.rel (0) target = $region89
    $region88: #{fcnet_forward.1} parent=1 // pred_region
      _
    $region89: #{fcnet_forward.1} parent=1 // pred_fallthru
      _
    // Predicated region
    $region90: #{fcnet_forward.1} parent=1 // pred_check
      _
    $region91: #{fcnet_forward.1} parent=1 // pred_check_branch
      %3601 = sbr.rel (0) target = $region93
    $region92: #{fcnet_forward.1} parent=1 // pred_region
      _
    $region93: #{fcnet_forward.1} parent=1 // pred_fallthru
      _
    %3602 = vsyncpa [#allocation3], 1
    %3603 = vsyncpa [#allocation5], 1
    %3604 = vsyncpa [#allocation8], 1
    %3605 = vsyncpa [#allocation11], 1
    %3606 = vsyncpa [#allocation14], 1
    %3607 = vsyncpa [#allocation17], 1

</llo_original>
